<compile_context>
chip_gen: v7x
topology: tpu7x:2x2x1
jax: 0.10.0
libtpu: 0.0.40
codegen_flags: <defaults>
</compile_context>

<pallas_src>
import functools

import jax
import jax.numpy as jnp
from jax import lax
from jax.experimental import pallas as pl
from jax.experimental.pallas import tpu as pltpu

C_LANES = 128  # lane-dense conv output width


def _round_up(x, m):
    return (x + m - 1) // m * m


def _full_spec(shape):
    return pl.BlockSpec(shape, lambda i: (0,) * len(shape))


# ----------------------------------------------------------------------------
# Fused conv layer kernel:
#   matmul (bf16->f32 MXU) + per-tile BN partial sums + BN(train) apply + ReLU
# ----------------------------------------------------------------------------
def _conv_bn_relu_kernel(cols_ref, w_ref, gamma_ref, beta_ref, out_ref,
                         sum_ref, sq_ref, *, m_valid, eps):
    i = pl.program_id(0)
    tm = cols_ref.shape[0]

    @pl.when(i == 0)
    def _():
        sum_ref[...] = jnp.zeros_like(sum_ref)
        sq_ref[...] = jnp.zeros_like(sq_ref)

    # MXU: bf16 operands, f32 accumulate; 128-lane output -> unmasked stores.
    y = jnp.dot(cols_ref[...], w_ref[...], preferred_element_type=jnp.float32)
    row0 = pl.multiple_of(i * tm, 8)
    out_ref[pl.ds(row0, tm), :] = y          # output block is VMEM-resident

    # Per-tile BN partial sums (XLU column reductions; zero-padded rows of the
    # cols tile produce y == 0 and contribute nothing).
    sum_ref[...] += jnp.sum(y, axis=0, keepdims=True)
    sq_ref[...] += jnp.sum(y * y, axis=0, keepdims=True)

    @pl.when(i == pl.num_programs(0) - 1)
    def _():
        inv_m = jnp.float32(1.0 / m_valid)
        mean = sum_ref[...] * inv_m
        # Biased train-mode batch stats; clamp to avoid negative variance from
        # catastrophic cancellation in the E[y^2]-E[y]^2 form.
        var = jnp.maximum(sq_ref[...] * inv_m - mean * mean, 0.0)
        scale = gamma_ref[...] * lax.rsqrt(var + eps)
        shift = beta_ref[...] - mean * scale
        # Single apply pass over the resident output (f32 VPU).
        out_ref[...] = jnp.maximum(out_ref[...] * scale + shift, 0.0)


def _im2col(x_nhwc, ksize, stride):
    B, H, W, C = x_nhwc.shape
    OH = (H - ksize) // stride + 1
    OW = (W - ksize) // stride + 1
    patches = []
    for kh in range(ksize):
        for kw in range(ksize):
            patches.append(
                x_nhwc[:,
                       kh:kh + stride * (OH - 1) + 1:stride,
                       kw:kw + stride * (OW - 1) + 1:stride,
                       :])
    p = jnp.stack(patches, axis=3)              # (B, OH, OW, K*K, C)
    return p.reshape(B * OH * OW, ksize * ksize * C), (B, OH, OW)


def conv_bn_relu(x_nhwc, w_oihw, gamma, beta, stride, eps=1e-5, tm_max=1024):
    """Fused Conv2d (no bias; cancelled by train-mode BN) + BatchNorm2d + ReLU.

    Returns the 128-lane padded output (m_pad, 128) plus logical (B, OH, OW, C).
    """
    C_out, C_in, KH, KW = w_oihw.shape
    assert C_out <= C_LANES
    cols, (B, OH, OW) = _im2col(x_nhwc, KH, stride)     # (M, K) f32
    M, K = cols.shape
    # torch (O,I,KH,KW) -> (KH,KW,I,O) to match the (kh, kw, c) patch ordering,
    # then zero-pad to 128 output lanes (lane-dense MXU / stores).
    w_mat = jnp.transpose(w_oihw, (2, 3, 1, 0)).reshape(K, C_out)
    w_mat = jnp.pad(w_mat, ((0, 0), (0, C_LANES - C_out)))
    gamma_p = jnp.pad(gamma.reshape(1, C_out), ((0, 0), (0, C_LANES - C_out)))
    beta_p = jnp.pad(beta.reshape(1, C_out), ((0, 0), (0, C_LANES - C_out)))

    tm = min(tm_max, _round_up(M, 8))
    m_pad = _round_up(M, tm)
    if m_pad != M:
        cols = jnp.pad(cols, ((0, m_pad - M), (0, 0)))
    n_tiles = m_pad // tm

    kernel = functools.partial(_conv_bn_relu_kernel,
                               m_valid=float(M), eps=float(eps))
    out = pl.pallas_call(
        kernel,
        grid=(n_tiles,),
        out_shape=jax.ShapeDtypeStruct((m_pad, C_LANES), jnp.float32),
        in_specs=[
            pl.BlockSpec((tm, K), lambda i: (i, 0)),          # cols tile (bf16)
            pl.BlockSpec((K, C_LANES), lambda i: (0, 0)),     # weight (bf16)
            pl.BlockSpec((1, C_LANES), lambda i: (0, 0)),     # gamma
            pl.BlockSpec((1, C_LANES), lambda i: (0, 0)),     # beta
        ],
        out_specs=pl.BlockSpec((m_pad, C_LANES), lambda i: (0, 0)),  # resident
        scratch_shapes=[pltpu.VMEM((1, C_LANES), jnp.float32),   # sum(y)
                        pltpu.VMEM((1, C_LANES), jnp.float32)],  # sum(y*y)
        compiler_params=pltpu.CompilerParams(
            dimension_semantics=("arbitrary",),
            vmem_limit_bytes=32 * 1024 * 1024),
    )(cols.astype(jnp.bfloat16), w_mat.astype(jnp.bfloat16),
      gamma_p.astype(jnp.float32), beta_p.astype(jnp.float32))
    return out, (B, OH, OW, C_out)


# ----------------------------------------------------------------------------
# Fused FC heads: (A_fc & V_fc hidden) -> LeakyReLU -> (A & V) -> dueling combine
# ----------------------------------------------------------------------------
def _heads_kernel(x_ref, w1_ref, b1_ref, w2_ref, b2_ref, o_ref, *, ac_dim):
    # (B, 3072) bf16 @ (3072, 256) bf16 -> f32 ; lane-dense 256-wide hidden
    h = jnp.dot(x_ref[...], w1_ref[...], preferred_element_type=jnp.float32)
    h = h + b1_ref[...]
    h = jnp.where(h >= 0.0, h, 0.01 * h)        # torch LeakyReLU default slope
    # block-diagonal second layer, zero-padded to 128 lanes: cols [0:ac_dim]=A,
    # col [ac_dim]=V, rest zero.
    out = jnp.dot(h.astype(jnp.bfloat16), w2_ref[...],
                  preferred_element_type=jnp.float32) + b2_ref[...]
    a = out[:, :ac_dim]
    v = out[:, ac_dim:ac_dim + 1]
    # Q = V + (A - A.mean())  -- global scalar mean, exactly as in the PyTorch code
    o_ref[...] = v + (a - jnp.mean(a))


def _prep_head_params(params, oh, ow, c, ac_dim):
    """Permute/pad head weights so the conv3 output needs NO flatten transpose.

    First-layer weight rows go from PyTorch flatten order (c, h, w) to the conv
    kernel's natural (h, w, c_pad[0:128]) order; rows for padded channels are 0.
    """
    def expand_w1(w):                                  # (c*oh*ow, H)
        w = w.reshape(c, oh, ow, -1)
        w = jnp.transpose(w, (1, 2, 0, 3))             # (oh, ow, c, H)
        w = jnp.pad(w, ((0, 0), (0, 0), (0, C_LANES - c), (0, 0)))
        return w.reshape(oh * ow * C_LANES, -1)

    w1 = jnp.concatenate([expand_w1(params["a_w1"]),
                          expand_w1(params["v_w1"])], axis=1)       # (3072, 256)
    b1 = jnp.concatenate([params["a_b1"], params["v_b1"]], axis=0)  # (256,)

    w2 = jnp.zeros((256, C_LANES), jnp.float32)
    w2 = w2.at[:128, :ac_dim].set(params["a_w2"])
    w2 = w2.at[128:, ac_dim:ac_dim + 1].set(params["v_w2"])
    b2 = jnp.zeros((C_LANES,), jnp.float32)
    b2 = b2.at[:ac_dim].set(params["a_b2"])
    b2 = b2.at[ac_dim:ac_dim + 1].set(params["v_b2"])
    return w1, b1, w2, b2


def dueling_heads(flat, w1, b1, w2, b2, ac_dim):
    B, F = flat.shape
    H2 = w1.shape[1]
    kernel = functools.partial(_heads_kernel, ac_dim=ac_dim)
    # TODO(synk): for large batch, tile over B with a grid + two-pass global mean;
    # at inference batch sizes a single VMEM-resident call is overhead-optimal.
    return pl.pallas_call(
        kernel,
        grid=(1,),
        out_shape=jax.ShapeDtypeStruct((B, ac_dim), jnp.float32),
        in_specs=[_full_spec((B, F)), _full_spec((F, H2)), _full_spec((1, H2)),
                  _full_spec((H2, C_LANES)), _full_spec((1, C_LANES))],
        out_specs=_full_spec((B, ac_dim)),
        compiler_params=pltpu.CompilerParams(
            vmem_limit_bytes=32 * 1024 * 1024),
    )(flat.astype(jnp.bfloat16), w1.astype(jnp.bfloat16),
      b1.reshape(1, H2).astype(jnp.float32),
      w2.astype(jnp.bfloat16), b2.reshape(1, C_LANES).astype(jnp.float32))


# ----------------------------------------------------------------------------
# DuelingDQN forward
# ----------------------------------------------------------------------------
def dueling_dqn_forward(params, ob):
    squeeze = (ob.ndim == 3)
    if squeeze:
        ob = ob[None]
    x = jnp.transpose(ob.astype(jnp.float32), (0, 2, 3, 1))   # NCHW -> NHWC

    y1, (B, oh1, ow1, c1) = conv_bn_relu(x, params["c1_w"], params["bn1_g"],
                                         params["bn1_b"], stride=4)
    x1 = y1[:B * oh1 * ow1, :c1].reshape(B, oh1, ow1, c1)
    y2, (B, oh2, ow2, c2) = conv_bn_relu(x1, params["c2_w"], params["bn2_g"],
                                         params["bn2_b"], stride=2)
    x2 = y2[:B * oh2 * ow2, :c2].reshape(B, oh2, ow2, c2)
    y3, (B, oh3, ow3, c3) = conv_bn_relu(x2, params["c3_w"], params["bn3_g"],
                                         params["bn3_b"], stride=1)

    # No flatten transpose: keep conv3's 128-lane padded channel layout and
    # reshape straight to (B, OH*OW*128); the head weights were re-ordered to
    # (h, w, c_pad) so the extra lanes multiply zero weight rows.
    flat = y3[:B * oh3 * ow3].reshape(B, oh3 * ow3 * C_LANES)

    ac_dim = params["a_w2"].shape[1]
    w1, b1, w2, b2 = _prep_head_params(params, oh3, ow3, c3, ac_dim)
    q = dueling_heads(flat, w1, b1, w2, b2, ac_dim)
    if squeeze:
        q = q[0]
    return q


# ----------------------------------------------------------------------------
# Deterministic parameter construction (synthetic init, PyTorch-style fan_in bound)
# ----------------------------------------------------------------------------
def init_params(key, ac_dim):
    def uniform(key, shape, fan_in):
        bound = 1.0 / jnp.sqrt(float(fan_in))
        return jax.random.uniform(key, shape, jnp.float32, -bound, bound)

    keys = jax.random.split(key, 16)
    p = {}
    p["c1_w"] = uniform(keys[0], (32, 4, 8, 8), 4 * 8 * 8)
    # conv biases: cancelled exactly by train-mode BatchNorm mean subtraction;
    # kept for parameter-set fidelity, not used in the forward pass.
    p["c1_b"] = uniform(keys[1], (32,), 4 * 8 * 8)
    p["bn1_g"] = jnp.ones((32,), jnp.float32)
    p["bn1_b"] = jnp.zeros((32,), jnp.float32)
    p["c2_w"] = uniform(keys[2], (64, 32, 4, 4), 32 * 4 * 4)
    p["c2_b"] = uniform(keys[3], (64,), 32 * 4 * 4)
    p["bn2_g"] = jnp.ones((64,), jnp.float32)
    p["bn2_b"] = jnp.zeros((64,), jnp.float32)
    p["c3_w"] = uniform(keys[4], (64, 64, 3, 3), 64 * 3 * 3)
    p["c3_b"] = uniform(keys[5], (64,), 64 * 3 * 3)
    p["bn3_g"] = jnp.ones((64,), jnp.float32)
    p["bn3_b"] = jnp.zeros((64,), jnp.float32)

    F = 6 * 4 * 64  # 1536, PyTorch flatten (c, h, w) row order
    p["a_w1"] = uniform(keys[6], (F, 128), F)
    p["a_b1"] = uniform(keys[7], (128,), F)
    p["a_w2"] = uniform(keys[8], (128, ac_dim), 128)
    p["a_b2"] = uniform(keys[9], (ac_dim,), 128)
    p["v_w1"] = uniform(keys[10], (F, 128), F)
    p["v_b1"] = uniform(keys[11], (128,), F)
    p["v_w2"] = uniform(keys[12], (128, 1), 128)
    p["v_b2"] = uniform(keys[13], (1,), 128)
    return p


if __name__ == "__main__":
    ac_dim = 6
    B = 2
    # Input spatial size is fixed by the architecture: 76x60 -> 18x14 -> 8x6 -> 6x4
    x = jax.random.normal(jax.random.PRNGKey(0), (B, 4, 76, 60), jnp.float32)
    params = init_params(jax.random.PRNGKey(42), ac_dim)

    fwd = jax.jit(dueling_dqn_forward)
    q = fwd(params, x)
    q = jax.block_until_ready(q)

    assert q.shape == (B, ac_dim), q.shape
    assert q.dtype == jnp.float32
    assert bool(jnp.all(jnp.isfinite(q)))
    print("KERNEL_OK")
</pallas_src>

<mosaic_0001>
module attributes {stable_mosaic.version = 11 : i64} {
  func.func @_conv_bn_relu_kernel(%arg0: i32, %arg1: memref<504x256xbf16, #tpu.memory_space<vmem>>, %arg2: memref<256x128xbf16, #tpu.memory_space<vmem>>, %arg3: memref<1x128xf32, #tpu.memory_space<vmem>>, %arg4: memref<1x128xf32, #tpu.memory_space<vmem>>, %arg5: memref<504x128xf32, #tpu.memory_space<vmem>>, %arg6: memref<1x128xf32, #tpu.memory_space<vmem>>, %arg7: memref<1x128xf32, #tpu.memory_space<vmem>>) attributes {dimension_semantics = [#tpu.dimension_semantics<arbitrary>], iteration_bounds = array<i64: 1>, scalar_prefetch = 0 : i64, scratch_operands = 2 : i64, tpu.core_type = #tpu.core_type<tc>, window_params = [{transform_indices = @transform_0, window_bounds = array<i64: 504, 256>}, {pipeline_mode = #tpu.pipeline_mode<synchronous>, transform_indices = @transform_1, window_bounds = array<i64: 256, 128>}, {pipeline_mode = #tpu.pipeline_mode<synchronous>, transform_indices = @transform_2, window_bounds = array<i64: 1, 128>}, {pipeline_mode = #tpu.pipeline_mode<synchronous>, transform_indices = @transform_3, window_bounds = array<i64: 1, 128>}, {pipeline_mode = #tpu.pipeline_mode<synchronous>, transform_indices = @transform_4, window_bounds = array<i64: 504, 128>}]} {
    %c0_i32 = arith.constant 0 : i32
    %0 = arith.cmpi eq, %arg0, %c0_i32 : i32
    %1 = arith.extui %0 : i1 to i32
    %c0_i32_0 = arith.constant 0 : i32
    %2 = arith.cmpi ne, %1, %c0_i32_0 : i32
    scf.if %2 {
      %cst_17 = arith.constant 0.000000e+00 : f32
      %24 = vector.broadcast %cst_17 : f32 to vector<1x128xf32>
      %c0_18 = arith.constant 0 : index
      %c0_19 = arith.constant 0 : index
      %25 = vector.load %arg6[%c0_18, %c0_19] : memref<1x128xf32, #tpu.memory_space<vmem>>, vector<1x128xf32>
      tpu.vector_store %arg6[%c0_18, %c0_19], %24 {strides = array<i32>} : memref<1x128xf32, #tpu.memory_space<vmem>>, vector<1x128xf32>,
      %cst_20 = arith.constant 0.000000e+00 : f32
      %26 = vector.broadcast %cst_20 : f32 to vector<1x128xf32>
      %c0_21 = arith.constant 0 : index
      %c0_22 = arith.constant 0 : index
      %27 = vector.load %arg7[%c0_21, %c0_22] : memref<1x128xf32, #tpu.memory_space<vmem>>, vector<1x128xf32>
      tpu.vector_store %arg7[%c0_21, %c0_22], %26 {strides = array<i32>} : memref<1x128xf32, #tpu.memory_space<vmem>>, vector<1x128xf32>,
    } else {
    }
    %c0 = arith.constant 0 : index
    %c0_1 = arith.constant 0 : index
    %3 = vector.load %arg1[%c0, %c0_1] : memref<504x256xbf16, #tpu.memory_space<vmem>>, vector<504x256xbf16>
    %c0_2 = arith.constant 0 : index
    %c0_3 = arith.constant 0 : index
    %4 = vector.load %arg2[%c0_2, %c0_3] : memref<256x128xbf16, #tpu.memory_space<vmem>>, vector<256x128xbf16>
    %cst = arith.constant dense<0.000000e+00> : vector<504x128xf32>
    %5 = tpu.matmul %3, %4, %cst {dimension_numbers = #tpu.dot_dimension_numbers<[1], [0], [0], [1], [0, 0, 1, 1], [], []>} : vector<504x256xbf16>, vector<256x128xbf16>, vector<504x128xf32> -> vector<504x128xf32>
    %c504_i32 = arith.constant 504 : i32
    %6 = arith.muli %arg0, %c504_i32 : i32
    %7 = tpu.assume_multiple %6, 8 : i32
    %8 = arith.index_cast %7 : i32 to index
    %c0_4 = arith.constant 0 : index
    %9 = vector.load %arg5[%8, %c0_4] : memref<504x128xf32, #tpu.memory_space<vmem>>, vector<504x128xf32>
    tpu.vector_store %arg5[%8, %c0_4], %5 {strides = array<i32>} : memref<504x128xf32, #tpu.memory_space<vmem>>, vector<504x128xf32>,
    %c0_5 = arith.constant 0 : index
    %c0_6 = arith.constant 0 : index
    %10 = vector.load %arg6[%c0_5, %c0_6] : memref<1x128xf32, #tpu.memory_space<vmem>>, vector<1x128xf32>
    %cst_7 = arith.constant dense<0.000000e+00> : vector<128xf32>
    %11 = vector.multi_reduction <add>, %5, %cst_7 [0] : vector<504x128xf32> to vector<128xf32>
    %12 = vector.shape_cast %11 : vector<128xf32> to vector<1x128xf32>
    %13 = arith.addf %10, %12 : vector<1x128xf32>
    %c0_8 = arith.constant 0 : index
    %c0_9 = arith.constant 0 : index
    %14 = vector.load %arg6[%c0_8, %c0_9] : memref<1x128xf32, #tpu.memory_space<vmem>>, vector<1x128xf32>
    tpu.vector_store %arg6[%c0_8, %c0_9], %13 {strides = array<i32>} : memref<1x128xf32, #tpu.memory_space<vmem>>, vector<1x128xf32>,
    %c0_10 = arith.constant 0 : index
    %c0_11 = arith.constant 0 : index
    %15 = vector.load %arg7[%c0_10, %c0_11] : memref<1x128xf32, #tpu.memory_space<vmem>>, vector<1x128xf32>
    %16 = arith.mulf %5, %5 : vector<504x128xf32>
    %cst_12 = arith.constant dense<0.000000e+00> : vector<128xf32>
    %17 = vector.multi_reduction <add>, %16, %cst_12 [0] : vector<504x128xf32> to vector<128xf32>
    %18 = vector.shape_cast %17 : vector<128xf32> to vector<1x128xf32>
    %19 = arith.addf %15, %18 : vector<1x128xf32>
    %c0_13 = arith.constant 0 : index
    %c0_14 = arith.constant 0 : index
    %20 = vector.load %arg7[%c0_13, %c0_14] : memref<1x128xf32, #tpu.memory_space<vmem>>, vector<1x128xf32>
    tpu.vector_store %arg7[%c0_13, %c0_14], %19 {strides = array<i32>} : memref<1x128xf32, #tpu.memory_space<vmem>>, vector<1x128xf32>,
    %c0_i32_15 = arith.constant 0 : i32
    %21 = arith.cmpi eq, %arg0, %c0_i32_15 : i32
    %22 = arith.extui %21 : i1 to i32
    %c0_i32_16 = arith.constant 0 : i32
    %23 = arith.cmpi ne, %22, %c0_i32_16 : i32
    scf.if %23 {
      %c0_17 = arith.constant 0 : index
      %c0_18 = arith.constant 0 : index
      %24 = vector.load %arg6[%c0_17, %c0_18] : memref<1x128xf32, #tpu.memory_space<vmem>>, vector<1x128xf32>
      %cst_19 = arith.constant 0.0019841271 : f32
      %25 = vector.broadcast %cst_19 : f32 to vector<1x128xf32>
      %26 = arith.mulf %24, %25 : vector<1x128xf32>
      %c0_20 = arith.constant 0 : index
      %c0_21 = arith.constant 0 : index
      %27 = vector.load %arg7[%c0_20, %c0_21] : memref<1x128xf32, #tpu.memory_space<vmem>>, vector<1x128xf32>
      %cst_22 = arith.constant 0.0019841271 : f32
      %28 = vector.broadcast %cst_22 : f32 to vector<1x128xf32>
      %29 = arith.mulf %27, %28 : vector<1x128xf32>
      %30 = arith.mulf %26, %26 : vector<1x128xf32>
      %31 = arith.subf %29, %30 : vector<1x128xf32>
      %cst_23 = arith.constant 0.000000e+00 : f32
      %32 = vector.broadcast %cst_23 : f32 to vector<1x128xf32>
      %33 = arith.maximumf %31, %32 : vector<1x128xf32>
      %c0_24 = arith.constant 0 : index
      %c0_25 = arith.constant 0 : index
      %34 = vector.load %arg3[%c0_24, %c0_25] : memref<1x128xf32, #tpu.memory_space<vmem>>, vector<1x128xf32>
      %cst_26 = arith.constant 9.99999974E-6 : f32
      %35 = vector.broadcast %cst_26 : f32 to vector<1x128xf32>
      %36 = arith.addf %33, %35 : vector<1x128xf32>
      %37 = math.rsqrt %36 : vector<1x128xf32>
      %38 = arith.mulf %34, %37 : vector<1x128xf32>
      %c0_27 = arith.constant 0 : index
      %c0_28 = arith.constant 0 : index
      %39 = vector.load %arg4[%c0_27, %c0_28] : memref<1x128xf32, #tpu.memory_space<vmem>>, vector<1x128xf32>
      %40 = arith.mulf %26, %38 : vector<1x128xf32>
      %41 = arith.subf %39, %40 : vector<1x128xf32>
      %c0_29 = arith.constant 0 : index
      %c0_30 = arith.constant 0 : index
      %42 = vector.load %arg5[%c0_29, %c0_30] : memref<504x128xf32, #tpu.memory_space<vmem>>, vector<504x128xf32>
      %43 = vector.broadcast %38 : vector<1x128xf32> to vector<504x128xf32>
      %44 = arith.mulf %42, %43 : vector<504x128xf32>
      %45 = vector.broadcast %41 : vector<1x128xf32> to vector<504x128xf32>
      %46 = arith.addf %44, %45 : vector<504x128xf32>
      %cst_31 = arith.constant 0.000000e+00 : f32
      %47 = vector.broadcast %cst_31 : f32 to vector<504x128xf32>
      %48 = arith.maximumf %46, %47 : vector<504x128xf32>
      %c0_32 = arith.constant 0 : index
      %c0_33 = arith.constant 0 : index
      %49 = vector.load %arg5[%c0_32, %c0_33] : memref<504x128xf32, #tpu.memory_space<vmem>>, vector<504x128xf32>
      tpu.vector_store %arg5[%c0_32, %c0_33], %48 {strides = array<i32>} : memref<504x128xf32, #tpu.memory_space<vmem>>, vector<504x128xf32>,
    } else {
    }
    return
  }
  func.func @transform_0(%arg0: i32) -> (i32, i32) {
    %c0_i32 = arith.constant 0 : i32
    %c0_i32_0 = arith.constant 0 : i32
    return %arg0, %c0_i32 : i32, i32
  }
  func.func @transform_1(%arg0: i32) -> (i32, i32) {
    %c0_i32 = arith.constant 0 : i32
    %c0_i32_0 = arith.constant 0 : i32
    %c0_i32_1 = arith.constant 0 : i32
    return %c0_i32, %c0_i32_0 : i32, i32
  }
  func.func @transform_2(%arg0: i32) -> (i32, i32) {
    %c0_i32 = arith.constant 0 : i32
    %c0_i32_0 = arith.constant 0 : i32
    %c0_i32_1 = arith.constant 0 : i32
    return %c0_i32, %c0_i32_0 : i32, i32
  }
  func.func @transform_3(%arg0: i32) -> (i32, i32) {
    %c0_i32 = arith.constant 0 : i32
    %c0_i32_0 = arith.constant 0 : i32
    %c0_i32_1 = arith.constant 0 : i32
    return %c0_i32, %c0_i32_0 : i32, i32
  }
  func.func @transform_4(%arg0: i32) -> (i32, i32) {
    %c0_i32 = arith.constant 0 : i32
    %c0_i32_0 = arith.constant 0 : i32
    %c0_i32_1 = arith.constant 0 : i32
    return %c0_i32, %c0_i32_0 : i32, i32
  }
}

module attributes {stable_mosaic.version = 11 : i64} {
  func.func @_conv_bn_relu_kernel(%arg0: i32, %arg1: memref<96x512xbf16, #tpu.memory_space<vmem>>, %arg2: memref<512x128xbf16, #tpu.memory_space<vmem>>, %arg3: memref<1x128xf32, #tpu.memory_space<vmem>>, %arg4: memref<1x128xf32, #tpu.memory_space<vmem>>, %arg5: memref<96x128xf32, #tpu.memory_space<vmem>>, %arg6: memref<1x128xf32, #tpu.memory_space<vmem>>, %arg7: memref<1x128xf32, #tpu.memory_space<vmem>>) attributes {dimension_semantics = [#tpu.dimension_semantics<arbitrary>], iteration_bounds = array<i64: 1>, scalar_prefetch = 0 : i64, scratch_operands = 2 : i64, tpu.core_type = #tpu.core_type<tc>, window_params = [{transform_indices = @transform_0, window_bounds = array<i64: 96, 512>}, {pipeline_mode = #tpu.pipeline_mode<synchronous>, transform_indices = @transform_1, window_bounds = array<i64: 512, 128>}, {pipeline_mode = #tpu.pipeline_mode<synchronous>, transform_indices = @transform_2, window_bounds = array<i64: 1, 128>}, {pipeline_mode = #tpu.pipeline_mode<synchronous>, transform_indices = @transform_3, window_bounds = array<i64: 1, 128>}, {pipeline_mode = #tpu.pipeline_mode<synchronous>, transform_indices = @transform_4, window_bounds = array<i64: 96, 128>}]} {
    %c0_i32 = arith.constant 0 : i32
    %0 = arith.cmpi eq, %arg0, %c0_i32 : i32
    %1 = arith.extui %0 : i1 to i32
    %c0_i32_0 = arith.constant 0 : i32
    %2 = arith.cmpi ne, %1, %c0_i32_0 : i32
    scf.if %2 {
      %cst_17 = arith.constant 0.000000e+00 : f32
      %24 = vector.broadcast %cst_17 : f32 to vector<1x128xf32>
      %c0_18 = arith.constant 0 : index
      %c0_19 = arith.constant 0 : index
      %25 = vector.load %arg6[%c0_18, %c0_19] : memref<1x128xf32, #tpu.memory_space<vmem>>, vector<1x128xf32>
      tpu.vector_store %arg6[%c0_18, %c0_19], %24 {strides = array<i32>} : memref<1x128xf32, #tpu.memory_space<vmem>>, vector<1x128xf32>,
      %cst_20 = arith.constant 0.000000e+00 : f32
      %26 = vector.broadcast %cst_20 : f32 to vector<1x128xf32>
      %c0_21 = arith.constant 0 : index
      %c0_22 = arith.constant 0 : index
      %27 = vector.load %arg7[%c0_21, %c0_22] : memref<1x128xf32, #tpu.memory_space<vmem>>, vector<1x128xf32>
      tpu.vector_store %arg7[%c0_21, %c0_22], %26 {strides = array<i32>} : memref<1x128xf32, #tpu.memory_space<vmem>>, vector<1x128xf32>,
    } else {
    }
    %c0 = arith.constant 0 : index
    %c0_1 = arith.constant 0 : index
    %3 = vector.load %arg1[%c0, %c0_1] : memref<96x512xbf16, #tpu.memory_space<vmem>>, vector<96x512xbf16>
    %c0_2 = arith.constant 0 : index
    %c0_3 = arith.constant 0 : index
    %4 = vector.load %arg2[%c0_2, %c0_3] : memref<512x128xbf16, #tpu.memory_space<vmem>>, vector<512x128xbf16>
    %cst = arith.constant dense<0.000000e+00> : vector<96x128xf32>
    %5 = tpu.matmul %3, %4, %cst {dimension_numbers = #tpu.dot_dimension_numbers<[1], [0], [0], [1], [0, 0, 1, 1], [], []>} : vector<96x512xbf16>, vector<512x128xbf16>, vector<96x128xf32> -> vector<96x128xf32>
    %c96_i32 = arith.constant 96 : i32
    %6 = arith.muli %arg0, %c96_i32 : i32
    %7 = tpu.assume_multiple %6, 8 : i32
    %8 = arith.index_cast %7 : i32 to index
    %c0_4 = arith.constant 0 : index
    %9 = vector.load %arg5[%8, %c0_4] : memref<96x128xf32, #tpu.memory_space<vmem>>, vector<96x128xf32>
    tpu.vector_store %arg5[%8, %c0_4], %5 {strides = array<i32>} : memref<96x128xf32, #tpu.memory_space<vmem>>, vector<96x128xf32>,
    %c0_5 = arith.constant 0 : index
    %c0_6 = arith.constant 0 : index
    %10 = vector.load %arg6[%c0_5, %c0_6] : memref<1x128xf32, #tpu.memory_space<vmem>>, vector<1x128xf32>
    %cst_7 = arith.constant dense<0.000000e+00> : vector<128xf32>
    %11 = vector.multi_reduction <add>, %5, %cst_7 [0] : vector<96x128xf32> to vector<128xf32>
    %12 = vector.shape_cast %11 : vector<128xf32> to vector<1x128xf32>
    %13 = arith.addf %10, %12 : vector<1x128xf32>
    %c0_8 = arith.constant 0 : index
    %c0_9 = arith.constant 0 : index
    %14 = vector.load %arg6[%c0_8, %c0_9] : memref<1x128xf32, #tpu.memory_space<vmem>>, vector<1x128xf32>
    tpu.vector_store %arg6[%c0_8, %c0_9], %13 {strides = array<i32>} : memref<1x128xf32, #tpu.memory_space<vmem>>, vector<1x128xf32>,
    %c0_10 = arith.constant 0 : index
    %c0_11 = arith.constant 0 : index
    %15 = vector.load %arg7[%c0_10, %c0_11] : memref<1x128xf32, #tpu.memory_space<vmem>>, vector<1x128xf32>
    %16 = arith.mulf %5, %5 : vector<96x128xf32>
    %cst_12 = arith.constant dense<0.000000e+00> : vector<128xf32>
    %17 = vector.multi_reduction <add>, %16, %cst_12 [0] : vector<96x128xf32> to vector<128xf32>
    %18 = vector.shape_cast %17 : vector<128xf32> to vector<1x128xf32>
    %19 = arith.addf %15, %18 : vector<1x128xf32>
    %c0_13 = arith.constant 0 : index
    %c0_14 = arith.constant 0 : index
    %20 = vector.load %arg7[%c0_13, %c0_14] : memref<1x128xf32, #tpu.memory_space<vmem>>, vector<1x128xf32>
    tpu.vector_store %arg7[%c0_13, %c0_14], %19 {strides = array<i32>} : memref<1x128xf32, #tpu.memory_space<vmem>>, vector<1x128xf32>,
    %c0_i32_15 = arith.constant 0 : i32
    %21 = arith.cmpi eq, %arg0, %c0_i32_15 : i32
    %22 = arith.extui %21 : i1 to i32
    %c0_i32_16 = arith.constant 0 : i32
    %23 = arith.cmpi ne, %22, %c0_i32_16 : i32
    scf.if %23 {
      %c0_17 = arith.constant 0 : index
      %c0_18 = arith.constant 0 : index
      %24 = vector.load %arg6[%c0_17, %c0_18] : memref<1x128xf32, #tpu.memory_space<vmem>>, vector<1x128xf32>
      %cst_19 = arith.constant 0.010416667 : f32
      %25 = vector.broadcast %cst_19 : f32 to vector<1x128xf32>
      %26 = arith.mulf %24, %25 : vector<1x128xf32>
      %c0_20 = arith.constant 0 : index
      %c0_21 = arith.constant 0 : index
      %27 = vector.load %arg7[%c0_20, %c0_21] : memref<1x128xf32, #tpu.memory_space<vmem>>, vector<1x128xf32>
      %cst_22 = arith.constant 0.010416667 : f32
      %28 = vector.broadcast %cst_22 : f32 to vector<1x128xf32>
      %29 = arith.mulf %27, %28 : vector<1x128xf32>
      %30 = arith.mulf %26, %26 : vector<1x128xf32>
      %31 = arith.subf %29, %30 : vector<1x128xf32>
      %cst_23 = arith.constant 0.000000e+00 : f32
      %32 = vector.broadcast %cst_23 : f32 to vector<1x128xf32>
      %33 = arith.maximumf %31, %32 : vector<1x128xf32>
      %c0_24 = arith.constant 0 : index
      %c0_25 = arith.constant 0 : index
      %34 = vector.load %arg3[%c0_24, %c0_25] : memref<1x128xf32, #tpu.memory_space<vmem>>, vector<1x128xf32>
      %cst_26 = arith.constant 9.99999974E-6 : f32
      %35 = vector.broadcast %cst_26 : f32 to vector<1x128xf32>
      %36 = arith.addf %33, %35 : vector<1x128xf32>
      %37 = math.rsqrt %36 : vector<1x128xf32>
      %38 = arith.mulf %34, %37 : vector<1x128xf32>
      %c0_27 = arith.constant 0 : index
      %c0_28 = arith.constant 0 : index
      %39 = vector.load %arg4[%c0_27, %c0_28] : memref<1x128xf32, #tpu.memory_space<vmem>>, vector<1x128xf32>
      %40 = arith.mulf %26, %38 : vector<1x128xf32>
      %41 = arith.subf %39, %40 : vector<1x128xf32>
      %c0_29 = arith.constant 0 : index
      %c0_30 = arith.constant 0 : index
      %42 = vector.load %arg5[%c0_29, %c0_30] : memref<96x128xf32, #tpu.memory_space<vmem>>, vector<96x128xf32>
      %43 = vector.broadcast %38 : vector<1x128xf32> to vector<96x128xf32>
      %44 = arith.mulf %42, %43 : vector<96x128xf32>
      %45 = vector.broadcast %41 : vector<1x128xf32> to vector<96x128xf32>
      %46 = arith.addf %44, %45 : vector<96x128xf32>
      %cst_31 = arith.constant 0.000000e+00 : f32
      %47 = vector.broadcast %cst_31 : f32 to vector<96x128xf32>
      %48 = arith.maximumf %46, %47 : vector<96x128xf32>
      %c0_32 = arith.constant 0 : index
      %c0_33 = arith.constant 0 : index
      %49 = vector.load %arg5[%c0_32, %c0_33] : memref<96x128xf32, #tpu.memory_space<vmem>>, vector<96x128xf32>
      tpu.vector_store %arg5[%c0_32, %c0_33], %48 {strides = array<i32>} : memref<96x128xf32, #tpu.memory_space<vmem>>, vector<96x128xf32>,
    } else {
    }
    return
  }
  func.func @transform_0(%arg0: i32) -> (i32, i32) {
    %c0_i32 = arith.constant 0 : i32
    %c0_i32_0 = arith.constant 0 : i32
    return %arg0, %c0_i32 : i32, i32
  }
  func.func @transform_1(%arg0: i32) -> (i32, i32) {
    %c0_i32 = arith.constant 0 : i32
    %c0_i32_0 = arith.constant 0 : i32
    %c0_i32_1 = arith.constant 0 : i32
    return %c0_i32, %c0_i32_0 : i32, i32
  }
  func.func @transform_2(%arg0: i32) -> (i32, i32) {
    %c0_i32 = arith.constant 0 : i32
    %c0_i32_0 = arith.constant 0 : i32
    %c0_i32_1 = arith.constant 0 : i32
    return %c0_i32, %c0_i32_0 : i32, i32
  }
  func.func @transform_3(%arg0: i32) -> (i32, i32) {
    %c0_i32 = arith.constant 0 : i32
    %c0_i32_0 = arith.constant 0 : i32
    %c0_i32_1 = arith.constant 0 : i32
    return %c0_i32, %c0_i32_0 : i32, i32
  }
  func.func @transform_4(%arg0: i32) -> (i32, i32) {
    %c0_i32 = arith.constant 0 : i32
    %c0_i32_0 = arith.constant 0 : i32
    %c0_i32_1 = arith.constant 0 : i32
    return %c0_i32, %c0_i32_0 : i32, i32
  }
}

module attributes {stable_mosaic.version = 11 : i64} {
  func.func @_conv_bn_relu_kernel(%arg0: i32, %arg1: memref<48x576xbf16, #tpu.memory_space<vmem>>, %arg2: memref<576x128xbf16, #tpu.memory_space<vmem>>, %arg3: memref<1x128xf32, #tpu.memory_space<vmem>>, %arg4: memref<1x128xf32, #tpu.memory_space<vmem>>, %arg5: memref<48x128xf32, #tpu.memory_space<vmem>>, %arg6: memref<1x128xf32, #tpu.memory_space<vmem>>, %arg7: memref<1x128xf32, #tpu.memory_space<vmem>>) attributes {dimension_semantics = [#tpu.dimension_semantics<arbitrary>], iteration_bounds = array<i64: 1>, scalar_prefetch = 0 : i64, scratch_operands = 2 : i64, tpu.core_type = #tpu.core_type<tc>, window_params = [{transform_indices = @transform_0, window_bounds = array<i64: 48, 576>}, {pipeline_mode = #tpu.pipeline_mode<synchronous>, transform_indices = @transform_1, window_bounds = array<i64: 576, 128>}, {pipeline_mode = #tpu.pipeline_mode<synchronous>, transform_indices = @transform_2, window_bounds = array<i64: 1, 128>}, {pipeline_mode = #tpu.pipeline_mode<synchronous>, transform_indices = @transform_3, window_bounds = array<i64: 1, 128>}, {pipeline_mode = #tpu.pipeline_mode<synchronous>, transform_indices = @transform_4, window_bounds = array<i64: 48, 128>}]} {
    %c0_i32 = arith.constant 0 : i32
    %0 = arith.cmpi eq, %arg0, %c0_i32 : i32
    %1 = arith.extui %0 : i1 to i32
    %c0_i32_0 = arith.constant 0 : i32
    %2 = arith.cmpi ne, %1, %c0_i32_0 : i32
    scf.if %2 {
      %cst_17 = arith.constant 0.000000e+00 : f32
      %24 = vector.broadcast %cst_17 : f32 to vector<1x128xf32>
      %c0_18 = arith.constant 0 : index
      %c0_19 = arith.constant 0 : index
      %25 = vector.load %arg6[%c0_18, %c0_19] : memref<1x128xf32, #tpu.memory_space<vmem>>, vector<1x128xf32>
      tpu.vector_store %arg6[%c0_18, %c0_19], %24 {strides = array<i32>} : memref<1x128xf32, #tpu.memory_space<vmem>>, vector<1x128xf32>,
      %cst_20 = arith.constant 0.000000e+00 : f32
      %26 = vector.broadcast %cst_20 : f32 to vector<1x128xf32>
      %c0_21 = arith.constant 0 : index
      %c0_22 = arith.constant 0 : index
      %27 = vector.load %arg7[%c0_21, %c0_22] : memref<1x128xf32, #tpu.memory_space<vmem>>, vector<1x128xf32>
      tpu.vector_store %arg7[%c0_21, %c0_22], %26 {strides = array<i32>} : memref<1x128xf32, #tpu.memory_space<vmem>>, vector<1x128xf32>,
    } else {
    }
    %c0 = arith.constant 0 : index
    %c0_1 = arith.constant 0 : index
    %3 = vector.load %arg1[%c0, %c0_1] : memref<48x576xbf16, #tpu.memory_space<vmem>>, vector<48x576xbf16>
    %c0_2 = arith.constant 0 : index
    %c0_3 = arith.constant 0 : index
    %4 = vector.load %arg2[%c0_2, %c0_3] : memref<576x128xbf16, #tpu.memory_space<vmem>>, vector<576x128xbf16>
    %cst = arith.constant dense<0.000000e+00> : vector<48x128xf32>
    %5 = tpu.matmul %3, %4, %cst {dimension_numbers = #tpu.dot_dimension_numbers<[1], [0], [0], [1], [0, 0, 1, 1], [], []>} : vector<48x576xbf16>, vector<576x128xbf16>, vector<48x128xf32> -> vector<48x128xf32>
    %c48_i32 = arith.constant 48 : i32
    %6 = arith.muli %arg0, %c48_i32 : i32
    %7 = tpu.assume_multiple %6, 8 : i32
    %8 = arith.index_cast %7 : i32 to index
    %c0_4 = arith.constant 0 : index
    %9 = vector.load %arg5[%8, %c0_4] : memref<48x128xf32, #tpu.memory_space<vmem>>, vector<48x128xf32>
    tpu.vector_store %arg5[%8, %c0_4], %5 {strides = array<i32>} : memref<48x128xf32, #tpu.memory_space<vmem>>, vector<48x128xf32>,
    %c0_5 = arith.constant 0 : index
    %c0_6 = arith.constant 0 : index
    %10 = vector.load %arg6[%c0_5, %c0_6] : memref<1x128xf32, #tpu.memory_space<vmem>>, vector<1x128xf32>
    %cst_7 = arith.constant dense<0.000000e+00> : vector<128xf32>
    %11 = vector.multi_reduction <add>, %5, %cst_7 [0] : vector<48x128xf32> to vector<128xf32>
    %12 = vector.shape_cast %11 : vector<128xf32> to vector<1x128xf32>
    %13 = arith.addf %10, %12 : vector<1x128xf32>
    %c0_8 = arith.constant 0 : index
    %c0_9 = arith.constant 0 : index
    %14 = vector.load %arg6[%c0_8, %c0_9] : memref<1x128xf32, #tpu.memory_space<vmem>>, vector<1x128xf32>
    tpu.vector_store %arg6[%c0_8, %c0_9], %13 {strides = array<i32>} : memref<1x128xf32, #tpu.memory_space<vmem>>, vector<1x128xf32>,
    %c0_10 = arith.constant 0 : index
    %c0_11 = arith.constant 0 : index
    %15 = vector.load %arg7[%c0_10, %c0_11] : memref<1x128xf32, #tpu.memory_space<vmem>>, vector<1x128xf32>
    %16 = arith.mulf %5, %5 : vector<48x128xf32>
    %cst_12 = arith.constant dense<0.000000e+00> : vector<128xf32>
    %17 = vector.multi_reduction <add>, %16, %cst_12 [0] : vector<48x128xf32> to vector<128xf32>
    %18 = vector.shape_cast %17 : vector<128xf32> to vector<1x128xf32>
    %19 = arith.addf %15, %18 : vector<1x128xf32>
    %c0_13 = arith.constant 0 : index
    %c0_14 = arith.constant 0 : index
    %20 = vector.load %arg7[%c0_13, %c0_14] : memref<1x128xf32, #tpu.memory_space<vmem>>, vector<1x128xf32>
    tpu.vector_store %arg7[%c0_13, %c0_14], %19 {strides = array<i32>} : memref<1x128xf32, #tpu.memory_space<vmem>>, vector<1x128xf32>,
    %c0_i32_15 = arith.constant 0 : i32
    %21 = arith.cmpi eq, %arg0, %c0_i32_15 : i32
    %22 = arith.extui %21 : i1 to i32
    %c0_i32_16 = arith.constant 0 : i32
    %23 = arith.cmpi ne, %22, %c0_i32_16 : i32
    scf.if %23 {
      %c0_17 = arith.constant 0 : index
      %c0_18 = arith.constant 0 : index
      %24 = vector.load %arg6[%c0_17, %c0_18] : memref<1x128xf32, #tpu.memory_space<vmem>>, vector<1x128xf32>
      %cst_19 = arith.constant 0.020833334 : f32
      %25 = vector.broadcast %cst_19 : f32 to vector<1x128xf32>
      %26 = arith.mulf %24, %25 : vector<1x128xf32>
      %c0_20 = arith.constant 0 : index
      %c0_21 = arith.constant 0 : index
      %27 = vector.load %arg7[%c0_20, %c0_21] : memref<1x128xf32, #tpu.memory_space<vmem>>, vector<1x128xf32>
      %cst_22 = arith.constant 0.020833334 : f32
      %28 = vector.broadcast %cst_22 : f32 to vector<1x128xf32>
      %29 = arith.mulf %27, %28 : vector<1x128xf32>
      %30 = arith.mulf %26, %26 : vector<1x128xf32>
      %31 = arith.subf %29, %30 : vector<1x128xf32>
      %cst_23 = arith.constant 0.000000e+00 : f32
      %32 = vector.broadcast %cst_23 : f32 to vector<1x128xf32>
      %33 = arith.maximumf %31, %32 : vector<1x128xf32>
      %c0_24 = arith.constant 0 : index
      %c0_25 = arith.constant 0 : index
      %34 = vector.load %arg3[%c0_24, %c0_25] : memref<1x128xf32, #tpu.memory_space<vmem>>, vector<1x128xf32>
      %cst_26 = arith.constant 9.99999974E-6 : f32
      %35 = vector.broadcast %cst_26 : f32 to vector<1x128xf32>
      %36 = arith.addf %33, %35 : vector<1x128xf32>
      %37 = math.rsqrt %36 : vector<1x128xf32>
      %38 = arith.mulf %34, %37 : vector<1x128xf32>
      %c0_27 = arith.constant 0 : index
      %c0_28 = arith.constant 0 : index
      %39 = vector.load %arg4[%c0_27, %c0_28] : memref<1x128xf32, #tpu.memory_space<vmem>>, vector<1x128xf32>
      %40 = arith.mulf %26, %38 : vector<1x128xf32>
      %41 = arith.subf %39, %40 : vector<1x128xf32>
      %c0_29 = arith.constant 0 : index
      %c0_30 = arith.constant 0 : index
      %42 = vector.load %arg5[%c0_29, %c0_30] : memref<48x128xf32, #tpu.memory_space<vmem>>, vector<48x128xf32>
      %43 = vector.broadcast %38 : vector<1x128xf32> to vector<48x128xf32>
      %44 = arith.mulf %42, %43 : vector<48x128xf32>
      %45 = vector.broadcast %41 : vector<1x128xf32> to vector<48x128xf32>
      %46 = arith.addf %44, %45 : vector<48x128xf32>
      %cst_31 = arith.constant 0.000000e+00 : f32
      %47 = vector.broadcast %cst_31 : f32 to vector<48x128xf32>
      %48 = arith.maximumf %46, %47 : vector<48x128xf32>
      %c0_32 = arith.constant 0 : index
      %c0_33 = arith.constant 0 : index
      %49 = vector.load %arg5[%c0_32, %c0_33] : memref<48x128xf32, #tpu.memory_space<vmem>>, vector<48x128xf32>
      tpu.vector_store %arg5[%c0_32, %c0_33], %48 {strides = array<i32>} : memref<48x128xf32, #tpu.memory_space<vmem>>, vector<48x128xf32>,
    } else {
    }
    return
  }
  func.func @transform_0(%arg0: i32) -> (i32, i32) {
    %c0_i32 = arith.constant 0 : i32
    %c0_i32_0 = arith.constant 0 : i32
    return %arg0, %c0_i32 : i32, i32
  }
  func.func @transform_1(%arg0: i32) -> (i32, i32) {
    %c0_i32 = arith.constant 0 : i32
    %c0_i32_0 = arith.constant 0 : i32
    %c0_i32_1 = arith.constant 0 : i32
    return %c0_i32, %c0_i32_0 : i32, i32
  }
  func.func @transform_2(%arg0: i32) -> (i32, i32) {
    %c0_i32 = arith.constant 0 : i32
    %c0_i32_0 = arith.constant 0 : i32
    %c0_i32_1 = arith.constant 0 : i32
    return %c0_i32, %c0_i32_0 : i32, i32
  }
  func.func @transform_3(%arg0: i32) -> (i32, i32) {
    %c0_i32 = arith.constant 0 : i32
    %c0_i32_0 = arith.constant 0 : i32
    %c0_i32_1 = arith.constant 0 : i32
    return %c0_i32, %c0_i32_0 : i32, i32
  }
  func.func @transform_4(%arg0: i32) -> (i32, i32) {
    %c0_i32 = arith.constant 0 : i32
    %c0_i32_0 = arith.constant 0 : i32
    %c0_i32_1 = arith.constant 0 : i32
    return %c0_i32, %c0_i32_0 : i32, i32
  }
}

module attributes {stable_mosaic.version = 11 : i64} {
  func.func @_heads_kernel(%arg0: i32, %arg1: memref<2x3072xbf16, #tpu.memory_space<vmem>>, %arg2: memref<3072x256xbf16, #tpu.memory_space<vmem>>, %arg3: memref<1x256xf32, #tpu.memory_space<vmem>>, %arg4: memref<256x128xbf16, #tpu.memory_space<vmem>>, %arg5: memref<1x128xf32, #tpu.memory_space<vmem>>, %arg6: memref<2x6xf32, #tpu.memory_space<vmem>>) attributes {dimension_semantics = [#tpu.dimension_semantics<arbitrary>], iteration_bounds = array<i64: 1>, scalar_prefetch = 0 : i64, scratch_operands = 0 : i64, tpu.core_type = #tpu.core_type<tc>, window_params = [{pipeline_mode = #tpu.pipeline_mode<synchronous>, transform_indices = @transform_0, window_bounds = array<i64: 2, 3072>}, {pipeline_mode = #tpu.pipeline_mode<synchronous>, transform_indices = @transform_1, window_bounds = array<i64: 3072, 256>}, {pipeline_mode = #tpu.pipeline_mode<synchronous>, transform_indices = @transform_2, window_bounds = array<i64: 1, 256>}, {pipeline_mode = #tpu.pipeline_mode<synchronous>, transform_indices = @transform_3, window_bounds = array<i64: 256, 128>}, {pipeline_mode = #tpu.pipeline_mode<synchronous>, transform_indices = @transform_4, window_bounds = array<i64: 1, 128>}, {pipeline_mode = #tpu.pipeline_mode<synchronous>, transform_indices = @transform_5, window_bounds = array<i64: 2, 6>}]} {
    %c0 = arith.constant 0 : index
    %c0_0 = arith.constant 0 : index
    %0 = vector.load %arg1[%c0, %c0_0] : memref<2x3072xbf16, #tpu.memory_space<vmem>>, vector<2x3072xbf16>
    %c0_1 = arith.constant 0 : index
    %c0_2 = arith.constant 0 : index
    %1 = vector.load %arg2[%c0_1, %c0_2] : memref<3072x256xbf16, #tpu.memory_space<vmem>>, vector<3072x256xbf16>
    %cst = arith.constant dense<0.000000e+00> : vector<2x256xf32>
    %2 = tpu.matmul %0, %1, %cst {dimension_numbers = #tpu.dot_dimension_numbers<[1], [0], [0], [1], [0, 0, 1, 1], [], []>} : vector<2x3072xbf16>, vector<3072x256xbf16>, vector<2x256xf32> -> vector<2x256xf32>
    %c0_3 = arith.constant 0 : index
    %c0_4 = arith.constant 0 : index
    %3 = vector.load %arg3[%c0_3, %c0_4] : memref<1x256xf32, #tpu.memory_space<vmem>>, vector<1x256xf32>
    %4 = vector.broadcast %3 : vector<1x256xf32> to vector<2x256xf32>
    %5 = arith.addf %2, %4 : vector<2x256xf32>
    %cst_5 = arith.constant 0.000000e+00 : f32
    %6 = vector.broadcast %cst_5 : f32 to vector<2x256xf32>
    %7 = arith.cmpf oge, %5, %6 : vector<2x256xf32>
    %cst_6 = arith.constant 0.00999999977 : f32
    %8 = vector.broadcast %cst_6 : f32 to vector<2x256xf32>
    %9 = arith.mulf %8, %5 : vector<2x256xf32>
    %10 = arith.select %7, %5, %9 : vector<2x256xi1>, vector<2x256xf32>
    %11 = arith.truncf %10 : vector<2x256xf32> to vector<2x256xbf16>
    %c0_7 = arith.constant 0 : index
    %c0_8 = arith.constant 0 : index
    %12 = vector.load %arg4[%c0_7, %c0_8] : memref<256x128xbf16, #tpu.memory_space<vmem>>, vector<256x128xbf16>
    %cst_9 = arith.constant dense<0.000000e+00> : vector<2x128xf32>
    %13 = tpu.matmul %11, %12, %cst_9 {dimension_numbers = #tpu.dot_dimension_numbers<[1], [0], [0], [1], [0, 0, 1, 1], [], []>} : vector<2x256xbf16>, vector<256x128xbf16>, vector<2x128xf32> -> vector<2x128xf32>
    %c0_10 = arith.constant 0 : index
    %c0_11 = arith.constant 0 : index
    %14 = vector.load %arg5[%c0_10, %c0_11] : memref<1x128xf32, #tpu.memory_space<vmem>>, vector<1x128xf32>
    %15 = vector.broadcast %14 : vector<1x128xf32> to vector<2x128xf32>
    %16 = arith.addf %13, %15 : vector<2x128xf32>
    %17 = vector.extract_strided_slice %16 {offsets = [0, 0], sizes = [2, 6], strides = [1, 1]} : vector<2x128xf32> to vector<2x6xf32>
    %18 = vector.extract_strided_slice %16 {offsets = [0, 6], sizes = [2, 1], strides = [1, 1]} : vector<2x128xf32> to vector<2x1xf32>
    %19 = vector.shape_cast %17 : vector<2x6xf32> to vector<1x2x6xf32>
    %cst_12 = arith.constant dense<0.000000e+00> : vector<1xf32>
    %20 = vector.multi_reduction <add>, %19, %cst_12 [1, 2] : vector<1x2x6xf32> to vector<1xf32>
    %21 = vector.shape_cast %20 : vector<1xf32> to vector<1x1x1xf32>
    %22 = vector.extract %21[0, 0, 0] : f32 from vector<1x1x1xf32>
    %cst_13 = arith.constant 1.200000e+01 : f32
    %23 = arith.divf %22, %cst_13 : f32
    %24 = vector.broadcast %23 : f32 to vector<2x6xf32>
    %25 = arith.subf %17, %24 : vector<2x6xf32>
    %26 = vector.broadcast %18 : vector<2x1xf32> to vector<2x6xf32>
    %27 = arith.addf %26, %25 : vector<2x6xf32>
    %c0_14 = arith.constant 0 : index
    %c0_15 = arith.constant 0 : index
    %28 = vector.load %arg6[%c0_14, %c0_15] : memref<2x6xf32, #tpu.memory_space<vmem>>, vector<2x6xf32>
    tpu.vector_store %arg6[%c0_14, %c0_15], %27 {strides = array<i32>} : memref<2x6xf32, #tpu.memory_space<vmem>>, vector<2x6xf32>,
    return
  }
  func.func @transform_0(%arg0: i32) -> (i32, i32) {
    %c0_i32 = arith.constant 0 : i32
    %c0_i32_0 = arith.constant 0 : i32
    %c0_i32_1 = arith.constant 0 : i32
    return %c0_i32, %c0_i32_0 : i32, i32
  }
  func.func @transform_1(%arg0: i32) -> (i32, i32) {
    %c0_i32 = arith.constant 0 : i32
    %c0_i32_0 = arith.constant 0 : i32
    %c0_i32_1 = arith.constant 0 : i32
    return %c0_i32, %c0_i32_0 : i32, i32
  }
  func.func @transform_2(%arg0: i32) -> (i32, i32) {
    %c0_i32 = arith.constant 0 : i32
    %c0_i32_0 = arith.constant 0 : i32
    %c0_i32_1 = arith.constant 0 : i32
    return %c0_i32, %c0_i32_0 : i32, i32
  }
  func.func @transform_3(%arg0: i32) -> (i32, i32) {
    %c0_i32 = arith.constant 0 : i32
    %c0_i32_0 = arith.constant 0 : i32
    %c0_i32_1 = arith.constant 0 : i32
    return %c0_i32, %c0_i32_0 : i32, i32
  }
  func.func @transform_4(%arg0: i32) -> (i32, i32) {
    %c0_i32 = arith.constant 0 : i32
    %c0_i32_0 = arith.constant 0 : i32
    %c0_i32_1 = arith.constant 0 : i32
    return %c0_i32, %c0_i32_0 : i32, i32
  }
  func.func @transform_5(%arg0: i32) -> (i32, i32) {
    %c0_i32 = arith.constant 0 : i32
    %c0_i32_0 = arith.constant 0 : i32
    %c0_i32_1 = arith.constant 0 : i32
    return %c0_i32, %c0_i32_0 : i32, i32
  }
}

</mosaic_0001>

<llo_original>
// kernel: dueling_dqn_forward.4
$region0: #{dueling_dqn_forward.4}
  #allocation0 [shape = 'u32[]', space=smem, size = 0x4, offset = 0x4, fixed_abs, tag = 'smem constant byte address 0x4 - core index']
  #allocation1 [shape = 'u32[144,128]{1,0:T(1,128)}', space=vmem, size = 0x12000, scoped, tag = 'internal scratch']
  #allocation2 [shape = 'f32[1,128]{1,0:T(1,128)}', space=vmem, size = 0x200, scoped, tag = 'scratch operand']
  #allocation3 [shape = 'f32[1,128]{1,0:T(1,128)}', space=vmem, size = 0x200, scoped, tag = 'scratch operand']
  %s0 = inlined_call_operand.vmem [shape: bf16[504,256], index: 0, kind: input, shape index: {}]
  %s1 = inlined_call_operand.vmem [shape: bf16[256,128], index: 1, kind: input, shape index: {}]
  %s2 = inlined_call_operand.vmem [shape: f32[1,128], index: 2, kind: input, shape index: {}]
  %s3 = inlined_call_operand.vmem [shape: f32[1,128], index: 3, kind: input, shape index: {}]
  %s4 = inlined_call_operand.vmem [shape: f32[504,128], index: 4, kind: output, shape index: {}]
  %s5 = sld [smem:[#allocation0]]
  $region34: #{dueling_dqn_forward.4} parent=0
    _
  %s7 = ssub.s32 1, %s5
  %s8 = scalar_select 0, %s7, %s5
  // Predicated region
  $region2: #{dueling_dqn_forward.4} parent=0 // pred_check
    _
  $region3: #{dueling_dqn_forward.4} parent=0 // pred_check_branch
    %10 = sbr.rel (0) target = $region5
  $region4: #{dueling_dqn_forward.4} parent=0 // pred_region
    _
  $region5: #{dueling_dqn_forward.4} parent=0 // pred_fallthru
    _
  // Predicated region
  $region6: #{dueling_dqn_forward.4} parent=0 // pred_check
    _
  $region7: #{dueling_dqn_forward.4} parent=0 // pred_check_branch
    %12 = sbr.rel (0) target = $region9
  $region8: #{dueling_dqn_forward.4} parent=0 // pred_region
    _
  $region9: #{dueling_dqn_forward.4} parent=0 // pred_fallthru
    _
  // Predicated region
  $region10: #{dueling_dqn_forward.4} parent=0 // pred_check
    _
  $region11: #{dueling_dqn_forward.4} parent=0 // pred_check_branch
    %14 = sbr.rel (0) target = $region13
  $region12: #{dueling_dqn_forward.4} parent=0 // pred_region
    _
  $region13: #{dueling_dqn_forward.4} parent=0 // pred_fallthru
    _
  // Predicated region
  $region14: #{dueling_dqn_forward.4} parent=0 // pred_check
    _
  $region15: #{dueling_dqn_forward.4} parent=0 // pred_check_branch
    %16 = sbr.rel (0) target = $region17
  $region16: #{dueling_dqn_forward.4} parent=0 // pred_region
    _
  $region17: #{dueling_dqn_forward.4} parent=0 // pred_fallthru
    _
  %p18 = scmp.eq.s32.totalorder 0, 0
  // Predicated region
  $region18: #{dueling_dqn_forward.4} parent=0 // pred_check
    %p19 = pneg %p18
  $region19: #{dueling_dqn_forward.4} parent=0 // pred_check_branch
    %21 = sbr.rel (%p19) target = $region21
  $region20: #{dueling_dqn_forward.4} parent=0 // pred_region
    %22 = vst [vmem:[#allocation2] sm:$0x1] 0.0
    %23 = vst [vmem:[#allocation3] sm:$0x1] 0.0
  $region21: #{dueling_dqn_forward.4} parent=0 // pred_fallthru
    _
  %v24 = vld [vmem:[%s0] sm:$0xff]
  %v25 = vld [vmem:[%s0 + $0x8] sm:$0xff]
  %v26 = vld [vmem:[%s0 + $0x10] sm:$0xff]
  %v27 = vld [vmem:[%s0 + $0x18] sm:$0xff]
  %v28 = vld [vmem:[%s0 + $0x20] sm:$0xff]
  %v29 = vld [vmem:[%s0 + $0x28] sm:$0xff]
  %v30 = vld [vmem:[%s0 + $0x30] sm:$0xff]
  %v31 = vld [vmem:[%s0 + $0x38] sm:$0xff]
  %v32 = vld [vmem:[%s0 + $0x40] sm:$0xff]
  %v33 = vld [vmem:[%s0 + $0x48] sm:$0xff]
  %v34 = vld [vmem:[%s0 + $0x50] sm:$0xff]
  %v35 = vld [vmem:[%s0 + $0x58] sm:$0xff]
  %v36 = vld [vmem:[%s0 + $0x60] sm:$0xff]
  %v37 = vld [vmem:[%s0 + $0x68] sm:$0xff]
  %v38 = vld [vmem:[%s0 + $0x70] sm:$0xff]
  %v39 = vld [vmem:[%s0 + $0x78] sm:$0xff]
  %v40 = vld [vmem:[%s0 + $0x80] sm:$0xff]
  %v41 = vld [vmem:[%s0 + $0x88] sm:$0xff]
  %v42 = vld [vmem:[%s0 + $0x90] sm:$0xff]
  %v43 = vld [vmem:[%s0 + $0x98] sm:$0xff]
  %v44 = vld [vmem:[%s0 + $0xa0] sm:$0xff]
  %v45 = vld [vmem:[%s0 + $0xa8] sm:$0xff]
  %v46 = vld [vmem:[%s0 + $0xb0] sm:$0xff]
  %v47 = vld [vmem:[%s0 + $0xb8] sm:$0xff]
  %v48 = vld [vmem:[%s0 + $0xc0] sm:$0xff]
  %v49 = vld [vmem:[%s0 + $0xc8] sm:$0xff]
  %v50 = vld [vmem:[%s0 + $0xd0] sm:$0xff]
  %v51 = vld [vmem:[%s0 + $0xd8] sm:$0xff]
  %v52 = vld [vmem:[%s0 + $0xe0] sm:$0xff]
  %v53 = vld [vmem:[%s0 + $0xe8] sm:$0xff]
  %v54 = vld [vmem:[%s0 + $0xf0] sm:$0xff]
  %v55 = vld [vmem:[%s0 + $0xf8] sm:$0xff]
  %v56 = vld [vmem:[%s0 + $0x100] sm:$0xff]
  %v57 = vld [vmem:[%s0 + $0x108] sm:$0xff]
  %v58 = vld [vmem:[%s0 + $0x110] sm:$0xff]
  %v59 = vld [vmem:[%s0 + $0x118] sm:$0xff]
  %v60 = vld [vmem:[%s0 + $0x120] sm:$0xff]
  %v61 = vld [vmem:[%s0 + $0x128] sm:$0xff]
  %v62 = vld [vmem:[%s0 + $0x130] sm:$0xff]
  %v63 = vld [vmem:[%s0 + $0x138] sm:$0xff]
  %v64 = vld [vmem:[%s0 + $0x140] sm:$0xff]
  %v65 = vld [vmem:[%s0 + $0x148] sm:$0xff]
  %v66 = vld [vmem:[%s0 + $0x150] sm:$0xff]
  %v67 = vld [vmem:[%s0 + $0x158] sm:$0xff]
  %v68 = vld [vmem:[%s0 + $0x160] sm:$0xff]
  %v69 = vld [vmem:[%s0 + $0x168] sm:$0xff]
  %v70 = vld [vmem:[%s0 + $0x170] sm:$0xff]
  %v71 = vld [vmem:[%s0 + $0x178] sm:$0xff]
  %v72 = vld [vmem:[%s0 + $0x180] sm:$0xff]
  %v73 = vld [vmem:[%s0 + $0x188] sm:$0xff]
  %v74 = vld [vmem:[%s0 + $0x190] sm:$0xff]
  %v75 = vld [vmem:[%s0 + $0x198] sm:$0xff]
  %v76 = vld [vmem:[%s0 + $0x1a0] sm:$0xff]
  %v77 = vld [vmem:[%s0 + $0x1a8] sm:$0xff]
  %v78 = vld [vmem:[%s0 + $0x1b0] sm:$0xff]
  %v79 = vld [vmem:[%s0 + $0x1b8] sm:$0xff]
  %v80 = vld [vmem:[%s0 + $0x1c0] sm:$0xff]
  %v81 = vld [vmem:[%s0 + $0x1c8] sm:$0xff]
  %v82 = vld [vmem:[%s0 + $0x1d0] sm:$0xff]
  %v83 = vld [vmem:[%s0 + $0x1d8] sm:$0xff]
  %v84 = vld [vmem:[%s0 + $0x1e0] sm:$0xff]
  %v85 = vld [vmem:[%s0 + $0x1e8] sm:$0xff]
  %v86 = vld [vmem:[%s0 + $0x1f0] sm:$0xff]
  %v87 = vld [vmem:[%s1] sm:$0xf]
  %v88 = vld [vmem:[%s1 + $0x4] sm:$0xf]
  %v89 = vld [vmem:[%s1 + $0x8] sm:$0xf]
  %v90 = vld [vmem:[%s1 + $0xc] sm:$0xf]
  %v91 = vld [vmem:[%s1 + $0x10] sm:$0xf]
  %v92 = vld [vmem:[%s1 + $0x14] sm:$0xf]
  %v93 = vld [vmem:[%s1 + $0x18] sm:$0xf]
  %v94 = vld [vmem:[%s1 + $0x1c] sm:$0xf]
  %v95 = vld [vmem:[%s1 + $0x20] sm:$0xf]
  %v96 = vld [vmem:[%s1 + $0x24] sm:$0xf]
  %v97 = vld [vmem:[%s1 + $0x28] sm:$0xf]
  %v98 = vld [vmem:[%s1 + $0x2c] sm:$0xf]
  %v99 = vld [vmem:[%s1 + $0x30] sm:$0xf]
  %v100 = vld [vmem:[%s1 + $0x34] sm:$0xf]
  %v101 = vld [vmem:[%s1 + $0x38] sm:$0xf]
  %v102 = vld [vmem:[%s1 + $0x3c] sm:$0xf]
  %v103 = vld [vmem:[%s1 + $0x40] sm:$0xf]
  %v104 = vld [vmem:[%s1 + $0x44] sm:$0xf]
  %v105 = vld [vmem:[%s1 + $0x48] sm:$0xf]
  %v106 = vld [vmem:[%s1 + $0x4c] sm:$0xf]
  %v107 = vld [vmem:[%s1 + $0x50] sm:$0xf]
  %v108 = vld [vmem:[%s1 + $0x54] sm:$0xf]
  %v109 = vld [vmem:[%s1 + $0x58] sm:$0xf]
  %v110 = vld [vmem:[%s1 + $0x5c] sm:$0xf]
  %v111 = vld [vmem:[%s1 + $0x60] sm:$0xf]
  %v112 = vld [vmem:[%s1 + $0x64] sm:$0xf]
  %v113 = vld [vmem:[%s1 + $0x68] sm:$0xf]
  %v114 = vld [vmem:[%s1 + $0x6c] sm:$0xf]
  %v115 = vld [vmem:[%s1 + $0x70] sm:$0xf]
  %v116 = vld [vmem:[%s1 + $0x74] sm:$0xf]
  %v117 = vld [vmem:[%s1 + $0x78] sm:$0xf]
  %v118 = vld [vmem:[%s1 + $0x7c] sm:$0xf]
  %v182 = vunpack.c.l.b16 %v24
  %v183 = vunpack.c.h.b16 %v24
  %v184 = vunpack.c.l.b16 %v25
  %v185 = vunpack.c.h.b16 %v25
  %v186 = vunpack.c.l.b16 %v26
  %v187 = vunpack.c.h.b16 %v26
  %v188 = vunpack.c.l.b16 %v27
  %v189 = vunpack.c.h.b16 %v27
  %v190 = vunpack.c.l.b16 %v28
  %v191 = vunpack.c.h.b16 %v28
  %v192 = vunpack.c.l.b16 %v29
  %v193 = vunpack.c.h.b16 %v29
  %v194 = vunpack.c.l.b16 %v30
  %v195 = vunpack.c.h.b16 %v30
  %v196 = vunpack.c.l.b16 %v31
  %v197 = vunpack.c.h.b16 %v31
  %v198 = vunpack.c.l.b16 %v32
  %v199 = vunpack.c.h.b16 %v32
  %v200 = vunpack.c.l.b16 %v33
  %v201 = vunpack.c.h.b16 %v33
  %v202 = vunpack.c.l.b16 %v34
  %v203 = vunpack.c.h.b16 %v34
  %v204 = vunpack.c.l.b16 %v35
  %v205 = vunpack.c.h.b16 %v35
  %v206 = vunpack.c.l.b16 %v36
  %v207 = vunpack.c.h.b16 %v36
  %v208 = vunpack.c.l.b16 %v37
  %v209 = vunpack.c.h.b16 %v37
  %v210 = vunpack.c.l.b16 %v38
  %v211 = vunpack.c.h.b16 %v38
  %v212 = vunpack.c.l.b16 %v39
  %v213 = vunpack.c.h.b16 %v39
  %v214 = vunpack.c.l.b16 %v40
  %v215 = vunpack.c.h.b16 %v40
  %v216 = vunpack.c.l.b16 %v41
  %v217 = vunpack.c.h.b16 %v41
  %v218 = vunpack.c.l.b16 %v42
  %v219 = vunpack.c.h.b16 %v42
  %v220 = vunpack.c.l.b16 %v43
  %v221 = vunpack.c.h.b16 %v43
  %v222 = vunpack.c.l.b16 %v44
  %v223 = vunpack.c.h.b16 %v44
  %v224 = vunpack.c.l.b16 %v45
  %v225 = vunpack.c.h.b16 %v45
  %v226 = vunpack.c.l.b16 %v46
  %v227 = vunpack.c.h.b16 %v46
  %v228 = vunpack.c.l.b16 %v47
  %v229 = vunpack.c.h.b16 %v47
  %v230 = vunpack.c.l.b16 %v48
  %v231 = vunpack.c.h.b16 %v48
  %v232 = vunpack.c.l.b16 %v49
  %v233 = vunpack.c.h.b16 %v49
  %v234 = vunpack.c.l.b16 %v50
  %v235 = vunpack.c.h.b16 %v50
  %v236 = vunpack.c.l.b16 %v51
  %v237 = vunpack.c.h.b16 %v51
  %v238 = vunpack.c.l.b16 %v52
  %v239 = vunpack.c.h.b16 %v52
  %v240 = vunpack.c.l.b16 %v53
  %v241 = vunpack.c.h.b16 %v53
  %v242 = vunpack.c.l.b16 %v54
  %v243 = vunpack.c.h.b16 %v54
  %v244 = vunpack.c.l.b16 %v55
  %v245 = vunpack.c.h.b16 %v55
  %v246 = vunpack.c.l.b16 %v56
  %v247 = vunpack.c.h.b16 %v56
  %v248 = vunpack.c.l.b16 %v57
  %v249 = vunpack.c.h.b16 %v57
  %v250 = vunpack.c.l.b16 %v58
  %v251 = vunpack.c.h.b16 %v58
  %v252 = vunpack.c.l.b16 %v59
  %v253 = vunpack.c.h.b16 %v59
  %v254 = vunpack.c.l.b16 %v60
  %v255 = vunpack.c.h.b16 %v60
  %v256 = vunpack.c.l.b16 %v61
  %v257 = vunpack.c.h.b16 %v61
  %v258 = vunpack.c.l.b16 %v62
  %v259 = vunpack.c.h.b16 %v62
  %v260 = vunpack.c.l.b16 %v63
  %v261 = vunpack.c.h.b16 %v63
  %v262 = vunpack.c.l.b16 %v64
  %v263 = vunpack.c.h.b16 %v64
  %v264 = vunpack.c.l.b16 %v65
  %v265 = vunpack.c.h.b16 %v65
  %v266 = vunpack.c.l.b16 %v66
  %v267 = vunpack.c.h.b16 %v66
  %v268 = vunpack.c.l.b16 %v67
  %v269 = vunpack.c.h.b16 %v67
  %v270 = vunpack.c.l.b16 %v68
  %v271 = vunpack.c.h.b16 %v68
  %v272 = vunpack.c.l.b16 %v69
  %v273 = vunpack.c.h.b16 %v69
  %v274 = vunpack.c.l.b16 %v70
  %v275 = vunpack.c.h.b16 %v70
  %v276 = vunpack.c.l.b16 %v71
  %v277 = vunpack.c.h.b16 %v71
  %v278 = vunpack.c.l.b16 %v72
  %v279 = vunpack.c.h.b16 %v72
  %v280 = vunpack.c.l.b16 %v73
  %v281 = vunpack.c.h.b16 %v73
  %v282 = vunpack.c.l.b16 %v74
  %v283 = vunpack.c.h.b16 %v74
  %v284 = vunpack.c.l.b16 %v75
  %v285 = vunpack.c.h.b16 %v75
  %v286 = vunpack.c.l.b16 %v76
  %v287 = vunpack.c.h.b16 %v76
  %v288 = vunpack.c.l.b16 %v77
  %v289 = vunpack.c.h.b16 %v77
  %v290 = vunpack.c.l.b16 %v78
  %v291 = vunpack.c.h.b16 %v78
  %v292 = vunpack.c.l.b16 %v79
  %v293 = vunpack.c.h.b16 %v79
  %v294 = vunpack.c.l.b16 %v80
  %v295 = vunpack.c.h.b16 %v80
  %v296 = vunpack.c.l.b16 %v81
  %v297 = vunpack.c.h.b16 %v81
  %v298 = vunpack.c.l.b16 %v82
  %v299 = vunpack.c.h.b16 %v82
  %v300 = vunpack.c.l.b16 %v83
  %v301 = vunpack.c.h.b16 %v83
  %v302 = vunpack.c.l.b16 %v84
  %v303 = vunpack.c.h.b16 %v84
  %v304 = vunpack.c.l.b16 %v85
  %v305 = vunpack.c.h.b16 %v85
  %v306 = vunpack.c.l.b16 %v86
  %v307 = vunpack.c.h.b16 %v86
  %v308 = vpack.c.b16 %v184, %v182
  %v309 = vpack.c.b16 %v185, %v183
  %v310 = vpack.c.b16 %v188, %v186
  %v311 = vpack.c.b16 %v189, %v187
  %v312 = vpack.c.b16 %v192, %v190
  %v313 = vpack.c.b16 %v193, %v191
  %v314 = vpack.c.b16 %v196, %v194
  %v315 = vpack.c.b16 %v197, %v195
  %v316 = vpack.c.b16 %v200, %v198
  %v317 = vpack.c.b16 %v201, %v199
  %v318 = vpack.c.b16 %v204, %v202
  %v319 = vpack.c.b16 %v205, %v203
  %v320 = vpack.c.b16 %v208, %v206
  %v321 = vpack.c.b16 %v209, %v207
  %v322 = vpack.c.b16 %v212, %v210
  %v323 = vpack.c.b16 %v213, %v211
  %v324 = vpack.c.b16 %v216, %v214
  %v325 = vpack.c.b16 %v217, %v215
  %v326 = vpack.c.b16 %v220, %v218
  %v327 = vpack.c.b16 %v221, %v219
  %v328 = vpack.c.b16 %v224, %v222
  %v329 = vpack.c.b16 %v225, %v223
  %v330 = vpack.c.b16 %v228, %v226
  %v331 = vpack.c.b16 %v229, %v227
  %v332 = vpack.c.b16 %v232, %v230
  %v333 = vpack.c.b16 %v233, %v231
  %v334 = vpack.c.b16 %v236, %v234
  %v335 = vpack.c.b16 %v237, %v235
  %v336 = vpack.c.b16 %v240, %v238
  %v337 = vpack.c.b16 %v241, %v239
  %v338 = vpack.c.b16 %v244, %v242
  %v339 = vpack.c.b16 %v245, %v243
  %v340 = vpack.c.b16 %v248, %v246
  %v341 = vpack.c.b16 %v249, %v247
  %v342 = vpack.c.b16 %v252, %v250
  %v343 = vpack.c.b16 %v253, %v251
  %v344 = vpack.c.b16 %v256, %v254
  %v345 = vpack.c.b16 %v257, %v255
  %v346 = vpack.c.b16 %v260, %v258
  %v347 = vpack.c.b16 %v261, %v259
  %v348 = vpack.c.b16 %v264, %v262
  %v349 = vpack.c.b16 %v265, %v263
  %v350 = vpack.c.b16 %v268, %v266
  %v351 = vpack.c.b16 %v269, %v267
  %v352 = vpack.c.b16 %v272, %v270
  %v353 = vpack.c.b16 %v273, %v271
  %v354 = vpack.c.b16 %v276, %v274
  %v355 = vpack.c.b16 %v277, %v275
  %v356 = vpack.c.b16 %v280, %v278
  %v357 = vpack.c.b16 %v281, %v279
  %v358 = vpack.c.b16 %v284, %v282
  %v359 = vpack.c.b16 %v285, %v283
  %v360 = vpack.c.b16 %v288, %v286
  %v361 = vpack.c.b16 %v289, %v287
  %v362 = vpack.c.b16 %v292, %v290
  %v363 = vpack.c.b16 %v293, %v291
  %v364 = vpack.c.b16 %v296, %v294
  %v365 = vpack.c.b16 %v297, %v295
  %v366 = vpack.c.b16 %v300, %v298
  %v367 = vpack.c.b16 %v301, %v299
  %v368 = vpack.c.b16 %v304, %v302
  %v369 = vpack.c.b16 %v305, %v303
  %v370 = vpack.c.b16 %v306, %v306
  %v371 = vpack.c.b16 %v307, %v307
  %v468 = vunpack.c.l.b16 %v87
  %v469 = vunpack.c.l.b16 %v88
  %v470 = vunpack.c.l.b16 %v89
  %v471 = vunpack.c.l.b16 %v90
  %v472 = vunpack.c.l.b16 %v91
  %v473 = vunpack.c.l.b16 %v92
  %v474 = vunpack.c.l.b16 %v93
  %v475 = vunpack.c.l.b16 %v94
  %v476 = vunpack.c.l.b16 %v95
  %v477 = vunpack.c.l.b16 %v96
  %v478 = vunpack.c.l.b16 %v97
  %v479 = vunpack.c.l.b16 %v98
  %v480 = vunpack.c.l.b16 %v99
  %v481 = vunpack.c.l.b16 %v100
  %v482 = vunpack.c.l.b16 %v101
  %v483 = vunpack.c.l.b16 %v102
  %v484 = vunpack.c.l.b16 %v103
  %v485 = vunpack.c.l.b16 %v104
  %v486 = vunpack.c.l.b16 %v105
  %v487 = vunpack.c.l.b16 %v106
  %v488 = vunpack.c.l.b16 %v107
  %v489 = vunpack.c.l.b16 %v108
  %v490 = vunpack.c.l.b16 %v109
  %v491 = vunpack.c.l.b16 %v110
  %v492 = vunpack.c.l.b16 %v111
  %v493 = vunpack.c.l.b16 %v112
  %v494 = vunpack.c.l.b16 %v113
  %v495 = vunpack.c.l.b16 %v114
  %v496 = vunpack.c.l.b16 %v115
  %v497 = vunpack.c.l.b16 %v116
  %v498 = vunpack.c.l.b16 %v117
  %v499 = vunpack.c.l.b16 %v118
  %v500 = vpack.c.b16 %v469, %v468
  %v501 = vpack.c.b16 %v471, %v470
  %v502 = vpack.c.b16 %v473, %v472
  %v503 = vpack.c.b16 %v475, %v474
  %v504 = vpack.c.b16 %v477, %v476
  %v505 = vpack.c.b16 %v479, %v478
  %v506 = vpack.c.b16 %v481, %v480
  %v507 = vpack.c.b16 %v483, %v482
  %v508 = vpack.c.b16 %v485, %v484
  %v509 = vpack.c.b16 %v487, %v486
  %v510 = vpack.c.b16 %v489, %v488
  %v511 = vpack.c.b16 %v491, %v490
  %v512 = vpack.c.b16 %v493, %v492
  %v513 = vpack.c.b16 %v495, %v494
  %v514 = vpack.c.b16 %v497, %v496
  %v515 = vpack.c.b16 %v499, %v498
  %532 = vmatprep.subr.bf16.mxu0 0
  %533 = vmatpush1.bf16.msra.mxu0 %v500
  %534 = vmatprep.subr.bf16.mxu0 0
  %535 = vmatpush1.bf16.msra.mxu0 %v501
  %536 = vmatprep.subr.bf16.mxu0 0
  %537 = vmatpush1.bf16.msra.mxu0 %v502
  %538 = vmatprep.subr.bf16.mxu0 0
  %539 = vmatpush1.bf16.msra.mxu0 %v503
  %540 = vmatprep.subr.bf16.mxu0 0
  %541 = vmatpush1.bf16.msra.mxu0 %v504
  %542 = vmatprep.subr.bf16.mxu0 0
  %543 = vmatpush1.bf16.msra.mxu0 %v505
  %544 = vmatprep.subr.bf16.mxu0 0
  %545 = vmatpush1.bf16.msra.mxu0 %v506
  %546 = vmatprep.subr.bf16.mxu0 0
  %547 = vmatpush1.bf16.msra.mxu0 %v507
  %548 = vmatprep.subr.bf16.mxu0 0
  %549 = vmatpush1.bf16.msra.mxu0 %v508
  %550 = vmatprep.subr.bf16.mxu0 0
  %551 = vmatpush1.bf16.msra.mxu0 %v509
  %552 = vmatprep.subr.bf16.mxu0 0
  %553 = vmatpush1.bf16.msra.mxu0 %v510
  %554 = vmatprep.subr.bf16.mxu0 0
  %555 = vmatpush1.bf16.msra.mxu0 %v511
  %556 = vmatprep.subr.bf16.mxu0 0
  %557 = vmatpush1.bf16.msra.mxu0 %v512
  %558 = vmatprep.subr.bf16.mxu0 0
  %559 = vmatpush1.bf16.msra.mxu0 %v513
  %560 = vmatprep.subr.bf16.mxu0 0
  %561 = vmatpush1.bf16.msra.mxu0 %v514
  %562 = vmatprep.subr.bf16.mxu0 0
  %563 = vmatpush1.bf16.msra.mxu0 %v515
  %564 = vmatprep.mubr.bf16.mxu0 %v309
  %565 = vmatmul.mubr.bf16.gmra.mrb[0].mxu0 %v308
  %v566 = vpop.f32.mrb[0].mxu0
  %v567 = vadd.f32 0.0, %v566
  %v568 = vpop.f32.mrb[0].mxu0
  %v569 = vpop.f32.mrb[0].mxu0
  %v570 = vadd.f32 0.0, %v569
  %v571 = vpop.f32.mrb[0].mxu0
  %572 = vmatprep.mubr.bf16.mxu0 %v311
  %573 = vmatmul.mubr.bf16.gmra.mrb[0].mxu0 %v310
  %v574 = vpop.f32.mrb[0].mxu0
  %v575 = vadd.f32 0.0, %v574
  %v576 = vpop.f32.mrb[0].mxu0
  %v577 = vpop.f32.mrb[0].mxu0
  %v578 = vadd.f32 0.0, %v577
  %v579 = vpop.f32.mrb[0].mxu0
  %580 = vmatprep.mubr.bf16.mxu0 %v313
  %581 = vmatmul.mubr.bf16.gmra.mrb[0].mxu0 %v312
  %v582 = vpop.f32.mrb[0].mxu0
  %v583 = vadd.f32 0.0, %v582
  %v584 = vpop.f32.mrb[0].mxu0
  %v585 = vpop.f32.mrb[0].mxu0
  %v586 = vadd.f32 0.0, %v585
  %v587 = vpop.f32.mrb[0].mxu0
  %588 = vmatprep.mubr.bf16.mxu0 %v315
  %589 = vmatmul.mubr.bf16.gmra.mrb[0].mxu0 %v314
  %v590 = vpop.f32.mrb[0].mxu0
  %v591 = vadd.f32 0.0, %v590
  %v592 = vpop.f32.mrb[0].mxu0
  %v593 = vpop.f32.mrb[0].mxu0
  %v594 = vadd.f32 0.0, %v593
  %v595 = vpop.f32.mrb[0].mxu0
  %596 = vmatprep.mubr.bf16.mxu0 %v317
  %597 = vmatmul.mubr.bf16.gmra.mrb[0].mxu0 %v316
  %v598 = vpop.f32.mrb[0].mxu0
  %v599 = vadd.f32 0.0, %v598
  %v600 = vpop.f32.mrb[0].mxu0
  %v601 = vpop.f32.mrb[0].mxu0
  %v602 = vadd.f32 0.0, %v601
  %v603 = vpop.f32.mrb[0].mxu0
  %604 = vmatprep.mubr.bf16.mxu0 %v319
  %605 = vmatmul.mubr.bf16.gmra.mrb[0].mxu0 %v318
  %v606 = vpop.f32.mrb[0].mxu0
  %v607 = vadd.f32 0.0, %v606
  %v608 = vpop.f32.mrb[0].mxu0
  %v609 = vpop.f32.mrb[0].mxu0
  %v610 = vadd.f32 0.0, %v609
  %v611 = vpop.f32.mrb[0].mxu0
  %612 = vmatprep.mubr.bf16.mxu0 %v321
  %613 = vmatmul.mubr.bf16.gmra.mrb[0].mxu0 %v320
  %v614 = vpop.f32.mrb[0].mxu0
  %v615 = vadd.f32 0.0, %v614
  %v616 = vpop.f32.mrb[0].mxu0
  %v617 = vpop.f32.mrb[0].mxu0
  %v618 = vadd.f32 0.0, %v617
  %v619 = vpop.f32.mrb[0].mxu0
  %620 = vmatprep.mubr.bf16.mxu0 %v323
  %621 = vmatmul.mubr.bf16.gmra.mrb[0].mxu0 %v322
  %v622 = vpop.f32.mrb[0].mxu0
  %v623 = vadd.f32 0.0, %v622
  %v624 = vpop.f32.mrb[0].mxu0
  %v625 = vpop.f32.mrb[0].mxu0
  %v626 = vadd.f32 0.0, %v625
  %v627 = vpop.f32.mrb[0].mxu0
  %628 = vmatprep.mubr.bf16.mxu0 %v325
  %629 = vmatmul.mubr.bf16.gmra.mrb[0].mxu0 %v324
  %v630 = vpop.f32.mrb[0].mxu0
  %v631 = vadd.f32 0.0, %v630
  %v632 = vpop.f32.mrb[0].mxu0
  %v633 = vpop.f32.mrb[0].mxu0
  %v634 = vadd.f32 0.0, %v633
  %v635 = vpop.f32.mrb[0].mxu0
  %636 = vmatprep.mubr.bf16.mxu0 %v327
  %637 = vmatmul.mubr.bf16.gmra.mrb[0].mxu0 %v326
  %v638 = vpop.f32.mrb[0].mxu0
  %v639 = vadd.f32 0.0, %v638
  %v640 = vpop.f32.mrb[0].mxu0
  %v641 = vpop.f32.mrb[0].mxu0
  %v642 = vadd.f32 0.0, %v641
  %v643 = vpop.f32.mrb[0].mxu0
  %644 = vmatprep.mubr.bf16.mxu0 %v329
  %645 = vmatmul.mubr.bf16.gmra.mrb[0].mxu0 %v328
  %v646 = vpop.f32.mrb[0].mxu0
  %v647 = vadd.f32 0.0, %v646
  %v648 = vpop.f32.mrb[0].mxu0
  %v649 = vpop.f32.mrb[0].mxu0
  %v650 = vadd.f32 0.0, %v649
  %v651 = vpop.f32.mrb[0].mxu0
  %652 = vmatprep.mubr.bf16.mxu0 %v331
  %653 = vmatmul.mubr.bf16.gmra.mrb[0].mxu0 %v330
  %v654 = vpop.f32.mrb[0].mxu0
  %v655 = vadd.f32 0.0, %v654
  %v656 = vpop.f32.mrb[0].mxu0
  %v657 = vpop.f32.mrb[0].mxu0
  %v658 = vadd.f32 0.0, %v657
  %v659 = vpop.f32.mrb[0].mxu0
  %660 = vmatprep.mubr.bf16.mxu0 %v333
  %661 = vmatmul.mubr.bf16.gmra.mrb[0].mxu0 %v332
  %v662 = vpop.f32.mrb[0].mxu0
  %v663 = vadd.f32 0.0, %v662
  %v664 = vpop.f32.mrb[0].mxu0
  %v665 = vpop.f32.mrb[0].mxu0
  %v666 = vadd.f32 0.0, %v665
  %v667 = vpop.f32.mrb[0].mxu0
  %668 = vmatprep.mubr.bf16.mxu0 %v335
  %669 = vmatmul.mubr.bf16.gmra.mrb[0].mxu0 %v334
  %v670 = vpop.f32.mrb[0].mxu0
  %v671 = vadd.f32 0.0, %v670
  %v672 = vpop.f32.mrb[0].mxu0
  %v673 = vpop.f32.mrb[0].mxu0
  %v674 = vadd.f32 0.0, %v673
  %v675 = vpop.f32.mrb[0].mxu0
  %676 = vmatprep.mubr.bf16.mxu0 %v337
  %677 = vmatmul.mubr.bf16.gmra.mrb[0].mxu0 %v336
  %v678 = vpop.f32.mrb[0].mxu0
  %v679 = vadd.f32 0.0, %v678
  %v680 = vpop.f32.mrb[0].mxu0
  %v681 = vpop.f32.mrb[0].mxu0
  %v682 = vadd.f32 0.0, %v681
  %v683 = vpop.f32.mrb[0].mxu0
  %684 = vmatprep.mubr.bf16.mxu0 %v339
  %685 = vmatmul.mubr.bf16.gmra.mrb[0].mxu0 %v338
  %v686 = vpop.f32.mrb[0].mxu0
  %v687 = vadd.f32 0.0, %v686
  %v688 = vpop.f32.mrb[0].mxu0
  %v689 = vpop.f32.mrb[0].mxu0
  %v690 = vadd.f32 0.0, %v689
  %v691 = vpop.f32.mrb[0].mxu0
  %692 = vmatprep.mubr.bf16.mxu0 %v341
  %693 = vmatmul.mubr.bf16.gmra.mrb[0].mxu0 %v340
  %v694 = vpop.f32.mrb[0].mxu0
  %v695 = vadd.f32 0.0, %v694
  %v696 = vpop.f32.mrb[0].mxu0
  %v697 = vpop.f32.mrb[0].mxu0
  %v698 = vadd.f32 0.0, %v697
  %v699 = vpop.f32.mrb[0].mxu0
  %700 = vmatprep.mubr.bf16.mxu0 %v343
  %701 = vmatmul.mubr.bf16.gmra.mrb[0].mxu0 %v342
  %v702 = vpop.f32.mrb[0].mxu0
  %v703 = vadd.f32 0.0, %v702
  %v704 = vpop.f32.mrb[0].mxu0
  %v705 = vpop.f32.mrb[0].mxu0
  %v706 = vadd.f32 0.0, %v705
  %v707 = vpop.f32.mrb[0].mxu0
  %708 = vmatprep.mubr.bf16.mxu0 %v345
  %709 = vmatmul.mubr.bf16.gmra.mrb[0].mxu0 %v344
  %v710 = vpop.f32.mrb[0].mxu0
  %v711 = vadd.f32 0.0, %v710
  %v712 = vpop.f32.mrb[0].mxu0
  %v713 = vpop.f32.mrb[0].mxu0
  %v714 = vadd.f32 0.0, %v713
  %v715 = vpop.f32.mrb[0].mxu0
  %716 = vmatprep.mubr.bf16.mxu0 %v347
  %717 = vmatmul.mubr.bf16.gmra.mrb[0].mxu0 %v346
  %v718 = vpop.f32.mrb[0].mxu0
  %v719 = vadd.f32 0.0, %v718
  %v720 = vpop.f32.mrb[0].mxu0
  %v721 = vpop.f32.mrb[0].mxu0
  %v722 = vadd.f32 0.0, %v721
  %v723 = vpop.f32.mrb[0].mxu0
  %724 = vmatprep.mubr.bf16.mxu0 %v349
  %725 = vmatmul.mubr.bf16.gmra.mrb[0].mxu0 %v348
  %v726 = vpop.f32.mrb[0].mxu0
  %v727 = vadd.f32 0.0, %v726
  %v728 = vpop.f32.mrb[0].mxu0
  %v729 = vpop.f32.mrb[0].mxu0
  %v730 = vadd.f32 0.0, %v729
  %v731 = vpop.f32.mrb[0].mxu0
  %732 = vmatprep.mubr.bf16.mxu0 %v351
  %733 = vmatmul.mubr.bf16.gmra.mrb[0].mxu0 %v350
  %v734 = vpop.f32.mrb[0].mxu0
  %v735 = vadd.f32 0.0, %v734
  %v736 = vpop.f32.mrb[0].mxu0
  %v737 = vpop.f32.mrb[0].mxu0
  %v738 = vadd.f32 0.0, %v737
  %v739 = vpop.f32.mrb[0].mxu0
  %740 = vmatprep.mubr.bf16.mxu0 %v353
  %741 = vmatmul.mubr.bf16.gmra.mrb[0].mxu0 %v352
  %v742 = vpop.f32.mrb[0].mxu0
  %v743 = vadd.f32 0.0, %v742
  %v744 = vpop.f32.mrb[0].mxu0
  %v745 = vpop.f32.mrb[0].mxu0
  %v746 = vadd.f32 0.0, %v745
  %v747 = vpop.f32.mrb[0].mxu0
  %748 = vmatprep.mubr.bf16.mxu0 %v355
  %749 = vmatmul.mubr.bf16.gmra.mrb[0].mxu0 %v354
  %v750 = vpop.f32.mrb[0].mxu0
  %v751 = vadd.f32 0.0, %v750
  %v752 = vpop.f32.mrb[0].mxu0
  %v753 = vpop.f32.mrb[0].mxu0
  %v754 = vadd.f32 0.0, %v753
  %v755 = vpop.f32.mrb[0].mxu0
  %756 = vmatprep.mubr.bf16.mxu0 %v357
  %757 = vmatmul.mubr.bf16.gmra.mrb[0].mxu0 %v356
  %v758 = vpop.f32.mrb[0].mxu0
  %v759 = vadd.f32 0.0, %v758
  %v760 = vpop.f32.mrb[0].mxu0
  %v761 = vpop.f32.mrb[0].mxu0
  %v762 = vadd.f32 0.0, %v761
  %v763 = vpop.f32.mrb[0].mxu0
  %764 = vmatprep.mubr.bf16.mxu0 %v359
  %765 = vmatmul.mubr.bf16.gmra.mrb[0].mxu0 %v358
  %v766 = vpop.f32.mrb[0].mxu0
  %v767 = vadd.f32 0.0, %v766
  %v768 = vpop.f32.mrb[0].mxu0
  %v769 = vpop.f32.mrb[0].mxu0
  %v770 = vadd.f32 0.0, %v769
  %v771 = vpop.f32.mrb[0].mxu0
  %772 = vmatprep.mubr.bf16.mxu0 %v361
  %773 = vmatmul.mubr.bf16.gmra.mrb[0].mxu0 %v360
  %v774 = vpop.f32.mrb[0].mxu0
  %v775 = vadd.f32 0.0, %v774
  %v776 = vpop.f32.mrb[0].mxu0
  %v777 = vpop.f32.mrb[0].mxu0
  %v778 = vadd.f32 0.0, %v777
  %v779 = vpop.f32.mrb[0].mxu0
  %780 = vmatprep.mubr.bf16.mxu0 %v363
  %781 = vmatmul.mubr.bf16.gmra.mrb[0].mxu0 %v362
  %v782 = vpop.f32.mrb[0].mxu0
  %v783 = vadd.f32 0.0, %v782
  %v784 = vpop.f32.mrb[0].mxu0
  %v785 = vpop.f32.mrb[0].mxu0
  %v786 = vadd.f32 0.0, %v785
  %v787 = vpop.f32.mrb[0].mxu0
  %788 = vmatprep.mubr.bf16.mxu0 %v365
  %789 = vmatmul.mubr.bf16.gmra.mrb[0].mxu0 %v364
  %v790 = vpop.f32.mrb[0].mxu0
  %v791 = vadd.f32 0.0, %v790
  %v792 = vpop.f32.mrb[0].mxu0
  %v793 = vpop.f32.mrb[0].mxu0
  %v794 = vadd.f32 0.0, %v793
  %v795 = vpop.f32.mrb[0].mxu0
  %796 = vmatprep.mubr.bf16.mxu0 %v367
  %797 = vmatmul.mubr.bf16.gmra.mrb[0].mxu0 %v366
  %v798 = vpop.f32.mrb[0].mxu0
  %v799 = vadd.f32 0.0, %v798
  %v800 = vpop.f32.mrb[0].mxu0
  %v801 = vpop.f32.mrb[0].mxu0
  %v802 = vadd.f32 0.0, %v801
  %v803 = vpop.f32.mrb[0].mxu0
  %804 = vmatprep.mubr.bf16.mxu0 %v369
  %805 = vmatmul.mubr.bf16.gmra.mrb[0].mxu0 %v368
  %v806 = vpop.f32.mrb[0].mxu0
  %v807 = vadd.f32 0.0, %v806
  %v808 = vpop.f32.mrb[0].mxu0
  %v809 = vpop.f32.mrb[0].mxu0
  %v810 = vadd.f32 0.0, %v809
  %v811 = vpop.f32.mrb[0].mxu0
  %812 = vmatprep.mubr.bf16.mxu0 %v371
  %813 = vmatmul.mubr.bf16.gmra.mrb[0].mxu0 %v370
  %v814 = vpop.f32.mrb[0].mxu0
  %v815 = vadd.f32 0.0, %v814
  %v816 = vpop.f32.mrb[0].mxu0
  %v817 = vpop.f32.mrb[0].mxu0
  %v818 = vpop.f32.mrb[0].mxu0
  %819 = vdwg.mxu0
  %s820 = smul.u32 0, 504
  %s821 = scalar_lea.vmem %s4, %s820
  %822 = vst [vmem:[%s821] sm:$0xff] %v567
  %823 = vst [vmem:[%s821 + $0x8] sm:$0xff] %v570
  %824 = vst [vmem:[%s821 + $0x10] sm:$0xff] %v575
  %825 = vst [vmem:[%s821 + $0x18] sm:$0xff] %v578
  %826 = vst [vmem:[%s821 + $0x20] sm:$0xff] %v583
  %827 = vst [vmem:[%s821 + $0x28] sm:$0xff] %v586
  %828 = vst [vmem:[%s821 + $0x30] sm:$0xff] %v591
  %829 = vst [vmem:[%s821 + $0x38] sm:$0xff] %v594
  %830 = vst [vmem:[%s821 + $0x40] sm:$0xff] %v599
  %831 = vst [vmem:[%s821 + $0x48] sm:$0xff] %v602
  %832 = vst [vmem:[%s821 + $0x50] sm:$0xff] %v607
  %833 = vst [vmem:[%s821 + $0x58] sm:$0xff] %v610
  %834 = vst [vmem:[%s821 + $0x60] sm:$0xff] %v615
  %835 = vst [vmem:[%s821 + $0x68] sm:$0xff] %v618
  %836 = vst [vmem:[%s821 + $0x70] sm:$0xff] %v623
  %837 = vst [vmem:[%s821 + $0x78] sm:$0xff] %v626
  %838 = vst [vmem:[%s821 + $0x80] sm:$0xff] %v631
  %839 = vst [vmem:[%s821 + $0x88] sm:$0xff] %v634
  %840 = vst [vmem:[%s821 + $0x90] sm:$0xff] %v639
  %841 = vst [vmem:[%s821 + $0x98] sm:$0xff] %v642
  %842 = vst [vmem:[%s821 + $0xa0] sm:$0xff] %v647
  %843 = vst [vmem:[%s821 + $0xa8] sm:$0xff] %v650
  %844 = vst [vmem:[%s821 + $0xb0] sm:$0xff] %v655
  %845 = vst [vmem:[%s821 + $0xb8] sm:$0xff] %v658
  %846 = vst [vmem:[%s821 + $0xc0] sm:$0xff] %v663
  %847 = vst [vmem:[%s821 + $0xc8] sm:$0xff] %v666
  %848 = vst [vmem:[%s821 + $0xd0] sm:$0xff] %v671
  %849 = vst [vmem:[%s821 + $0xd8] sm:$0xff] %v674
  %850 = vst [vmem:[%s821 + $0xe0] sm:$0xff] %v679
  %851 = vst [vmem:[%s821 + $0xe8] sm:$0xff] %v682
  %852 = vst [vmem:[%s821 + $0xf0] sm:$0xff] %v687
  %853 = vst [vmem:[%s821 + $0xf8] sm:$0xff] %v690
  %854 = vst [vmem:[%s821 + $0x100] sm:$0xff] %v695
  %855 = vst [vmem:[%s821 + $0x108] sm:$0xff] %v698
  %856 = vst [vmem:[%s821 + $0x110] sm:$0xff] %v703
  %857 = vst [vmem:[%s821 + $0x118] sm:$0xff] %v706
  %858 = vst [vmem:[%s821 + $0x120] sm:$0xff] %v711
  %859 = vst [vmem:[%s821 + $0x128] sm:$0xff] %v714
  %860 = vst [vmem:[%s821 + $0x130] sm:$0xff] %v719
  %861 = vst [vmem:[%s821 + $0x138] sm:$0xff] %v722
  %862 = vst [vmem:[%s821 + $0x140] sm:$0xff] %v727
  %863 = vst [vmem:[%s821 + $0x148] sm:$0xff] %v730
  %864 = vst [vmem:[%s821 + $0x150] sm:$0xff] %v735
  %865 = vst [vmem:[%s821 + $0x158] sm:$0xff] %v738
  %866 = vst [vmem:[%s821 + $0x160] sm:$0xff] %v743
  %867 = vst [vmem:[%s821 + $0x168] sm:$0xff] %v746
  %868 = vst [vmem:[%s821 + $0x170] sm:$0xff] %v751
  %869 = vst [vmem:[%s821 + $0x178] sm:$0xff] %v754
  %870 = vst [vmem:[%s821 + $0x180] sm:$0xff] %v759
  %871 = vst [vmem:[%s821 + $0x188] sm:$0xff] %v762
  %872 = vst [vmem:[%s821 + $0x190] sm:$0xff] %v767
  %873 = vst [vmem:[%s821 + $0x198] sm:$0xff] %v770
  %874 = vst [vmem:[%s821 + $0x1a0] sm:$0xff] %v775
  %875 = vst [vmem:[%s821 + $0x1a8] sm:$0xff] %v778
  %876 = vst [vmem:[%s821 + $0x1b0] sm:$0xff] %v783
  %877 = vst [vmem:[%s821 + $0x1b8] sm:$0xff] %v786
  %878 = vst [vmem:[%s821 + $0x1c0] sm:$0xff] %v791
  %879 = vst [vmem:[%s821 + $0x1c8] sm:$0xff] %v794
  %880 = vst [vmem:[%s821 + $0x1d0] sm:$0xff] %v799
  %881 = vst [vmem:[%s821 + $0x1d8] sm:$0xff] %v802
  %882 = vst [vmem:[%s821 + $0x1e0] sm:$0xff] %v807
  %883 = vst [vmem:[%s821 + $0x1e8] sm:$0xff] %v810
  %884 = vst [vmem:[%s821 + $0x1f0] sm:$0xff] %v815
  %v885 = vld [vmem:[#allocation2] sm:$0x1]
  %v886 = vadd.f32 %v567, %v570
  %v887 = vadd.f32 %v886, %v575
  %v888 = vadd.f32 %v887, %v578
  %v889 = vadd.f32 %v888, %v583
  %v890 = vadd.f32 %v889, %v586
  %v891 = vadd.f32 %v890, %v591
  %v892 = vadd.f32 %v891, %v594
  %v893 = vadd.f32 %v892, %v599
  %v894 = vadd.f32 %v893, %v602
  %v895 = vadd.f32 %v894, %v607
  %v896 = vadd.f32 %v895, %v610
  %v897 = vadd.f32 %v896, %v615
  %v898 = vadd.f32 %v897, %v618
  %v899 = vadd.f32 %v898, %v623
  %v900 = vadd.f32 %v899, %v626
  %v901 = vadd.f32 %v900, %v631
  %v902 = vadd.f32 %v901, %v634
  %v903 = vadd.f32 %v902, %v639
  %v904 = vadd.f32 %v903, %v642
  %v905 = vadd.f32 %v904, %v647
  %v906 = vadd.f32 %v905, %v650
  %v907 = vadd.f32 %v906, %v655
  %v908 = vadd.f32 %v907, %v658
  %v909 = vadd.f32 %v908, %v663
  %v910 = vadd.f32 %v909, %v666
  %v911 = vadd.f32 %v910, %v671
  %v912 = vadd.f32 %v911, %v674
  %v913 = vadd.f32 %v912, %v679
  %v914 = vadd.f32 %v913, %v682
  %v915 = vadd.f32 %v914, %v687
  %v916 = vadd.f32 %v915, %v690
  %v917 = vadd.f32 %v916, %v695
  %v918 = vadd.f32 %v917, %v698
  %v919 = vadd.f32 %v918, %v703
  %v920 = vadd.f32 %v919, %v706
  %v921 = vadd.f32 %v920, %v711
  %v922 = vadd.f32 %v921, %v714
  %v923 = vadd.f32 %v922, %v719
  %v924 = vadd.f32 %v923, %v722
  %v925 = vadd.f32 %v924, %v727
  %v926 = vadd.f32 %v925, %v730
  %v927 = vadd.f32 %v926, %v735
  %v928 = vadd.f32 %v927, %v738
  %v929 = vadd.f32 %v928, %v743
  %v930 = vadd.f32 %v929, %v746
  %v931 = vadd.f32 %v930, %v751
  %v932 = vadd.f32 %v931, %v754
  %v933 = vadd.f32 %v932, %v759
  %v934 = vadd.f32 %v933, %v762
  %v935 = vadd.f32 %v934, %v767
  %v936 = vadd.f32 %v935, %v770
  %v937 = vadd.f32 %v936, %v775
  %v938 = vadd.f32 %v937, %v778
  %v939 = vadd.f32 %v938, %v783
  %v940 = vadd.f32 %v939, %v786
  %v941 = vadd.f32 %v940, %v791
  %v942 = vadd.f32 %v941, %v794
  %v943 = vadd.f32 %v942, %v799
  %v944 = vadd.f32 %v943, %v802
  %v945 = vadd.f32 %v944, %v807
  %v946 = vadd.f32 %v945, %v810
  %v947 = vadd.f32 %v946, %v815
  %v948 = vrot.slane %v947, 4
  %v949 = vadd.f32 %v947, %v948
  %v950 = vrot.slane %v949, 2
  %v951 = vadd.f32 %v949, %v950
  %v952 = vrot.slane %v951, 1
  %v953 = vadd.f32 %v951, %v952
  %v954 = vadd.f32 %v885, %v953
  %955 = vst [vmem:[#allocation2] sm:$0x1] %v954
  %v956 = vld [vmem:[#allocation3] sm:$0x1]
  %v957 = vmul.f32 %v567, %v567
  %v958 = vmul.f32 %v570, %v570
  %v959 = vmul.f32 %v575, %v575
  %v960 = vmul.f32 %v578, %v578
  %v961 = vmul.f32 %v583, %v583
  %v962 = vmul.f32 %v586, %v586
  %v963 = vmul.f32 %v591, %v591
  %v964 = vmul.f32 %v594, %v594
  %v965 = vmul.f32 %v599, %v599
  %v966 = vmul.f32 %v602, %v602
  %v967 = vmul.f32 %v607, %v607
  %v968 = vmul.f32 %v610, %v610
  %v969 = vmul.f32 %v615, %v615
  %v970 = vmul.f32 %v618, %v618
  %v971 = vmul.f32 %v623, %v623
  %v972 = vmul.f32 %v626, %v626
  %v973 = vmul.f32 %v631, %v631
  %v974 = vmul.f32 %v634, %v634
  %v975 = vmul.f32 %v639, %v639
  %v976 = vmul.f32 %v642, %v642
  %v977 = vmul.f32 %v647, %v647
  %v978 = vmul.f32 %v650, %v650
  %v979 = vmul.f32 %v655, %v655
  %v980 = vmul.f32 %v658, %v658
  %v981 = vmul.f32 %v663, %v663
  %v982 = vmul.f32 %v666, %v666
  %v983 = vmul.f32 %v671, %v671
  %v984 = vmul.f32 %v674, %v674
  %v985 = vmul.f32 %v679, %v679
  %v986 = vmul.f32 %v682, %v682
  %v987 = vmul.f32 %v687, %v687
  %v988 = vmul.f32 %v690, %v690
  %v989 = vmul.f32 %v695, %v695
  %v990 = vmul.f32 %v698, %v698
  %v991 = vmul.f32 %v703, %v703
  %v992 = vmul.f32 %v706, %v706
  %v993 = vmul.f32 %v711, %v711
  %v994 = vmul.f32 %v714, %v714
  %v995 = vmul.f32 %v719, %v719
  %v996 = vmul.f32 %v722, %v722
  %v997 = vmul.f32 %v727, %v727
  %v998 = vmul.f32 %v730, %v730
  %v999 = vmul.f32 %v735, %v735
  %v1000 = vmul.f32 %v738, %v738
  %v1001 = vmul.f32 %v743, %v743
  %v1002 = vmul.f32 %v746, %v746
  %v1003 = vmul.f32 %v751, %v751
  %v1004 = vmul.f32 %v754, %v754
  %v1005 = vmul.f32 %v759, %v759
  %v1006 = vmul.f32 %v762, %v762
  %v1007 = vmul.f32 %v767, %v767
  %v1008 = vmul.f32 %v770, %v770
  %v1009 = vmul.f32 %v775, %v775
  %v1010 = vmul.f32 %v778, %v778
  %v1011 = vmul.f32 %v783, %v783
  %v1012 = vmul.f32 %v786, %v786
  %v1013 = vmul.f32 %v791, %v791
  %v1014 = vmul.f32 %v794, %v794
  %v1015 = vmul.f32 %v799, %v799
  %v1016 = vmul.f32 %v802, %v802
  %v1017 = vmul.f32 %v807, %v807
  %v1018 = vmul.f32 %v810, %v810
  %v1019 = vmul.f32 %v815, %v815
  %v1020 = vadd.f32 %v957, %v958
  %v1021 = vadd.f32 %v1020, %v959
  %v1022 = vadd.f32 %v1021, %v960
  %v1023 = vadd.f32 %v1022, %v961
  %v1024 = vadd.f32 %v1023, %v962
  %v1025 = vadd.f32 %v1024, %v963
  %v1026 = vadd.f32 %v1025, %v964
  %v1027 = vadd.f32 %v1026, %v965
  %v1028 = vadd.f32 %v1027, %v966
  %v1029 = vadd.f32 %v1028, %v967
  %v1030 = vadd.f32 %v1029, %v968
  %v1031 = vadd.f32 %v1030, %v969
  %v1032 = vadd.f32 %v1031, %v970
  %v1033 = vadd.f32 %v1032, %v971
  %v1034 = vadd.f32 %v1033, %v972
  %v1035 = vadd.f32 %v1034, %v973
  %v1036 = vadd.f32 %v1035, %v974
  %v1037 = vadd.f32 %v1036, %v975
  %v1038 = vadd.f32 %v1037, %v976
  %v1039 = vadd.f32 %v1038, %v977
  %v1040 = vadd.f32 %v1039, %v978
  %v1041 = vadd.f32 %v1040, %v979
  %v1042 = vadd.f32 %v1041, %v980
  %v1043 = vadd.f32 %v1042, %v981
  %v1044 = vadd.f32 %v1043, %v982
  %v1045 = vadd.f32 %v1044, %v983
  %v1046 = vadd.f32 %v1045, %v984
  %v1047 = vadd.f32 %v1046, %v985
  %v1048 = vadd.f32 %v1047, %v986
  %v1049 = vadd.f32 %v1048, %v987
  %v1050 = vadd.f32 %v1049, %v988
  %v1051 = vadd.f32 %v1050, %v989
  %v1052 = vadd.f32 %v1051, %v990
  %v1053 = vadd.f32 %v1052, %v991
  %v1054 = vadd.f32 %v1053, %v992
  %v1055 = vadd.f32 %v1054, %v993
  %v1056 = vadd.f32 %v1055, %v994
  %v1057 = vadd.f32 %v1056, %v995
  %v1058 = vadd.f32 %v1057, %v996
  %v1059 = vadd.f32 %v1058, %v997
  %v1060 = vadd.f32 %v1059, %v998
  %v1061 = vadd.f32 %v1060, %v999
  %v1062 = vadd.f32 %v1061, %v1000
  %v1063 = vadd.f32 %v1062, %v1001
  %v1064 = vadd.f32 %v1063, %v1002
  %v1065 = vadd.f32 %v1064, %v1003
  %v1066 = vadd.f32 %v1065, %v1004
  %v1067 = vadd.f32 %v1066, %v1005
  %v1068 = vadd.f32 %v1067, %v1006
  %v1069 = vadd.f32 %v1068, %v1007
  %v1070 = vadd.f32 %v1069, %v1008
  %v1071 = vadd.f32 %v1070, %v1009
  %v1072 = vadd.f32 %v1071, %v1010
  %v1073 = vadd.f32 %v1072, %v1011
  %v1074 = vadd.f32 %v1073, %v1012
  %v1075 = vadd.f32 %v1074, %v1013
  %v1076 = vadd.f32 %v1075, %v1014
  %v1077 = vadd.f32 %v1076, %v1015
  %v1078 = vadd.f32 %v1077, %v1016
  %v1079 = vadd.f32 %v1078, %v1017
  %v1080 = vadd.f32 %v1079, %v1018
  %v1081 = vadd.f32 %v1080, %v1019
  %v1082 = vrot.slane %v1081, 4
  %v1083 = vadd.f32 %v1081, %v1082
  %v1084 = vrot.slane %v1083, 2
  %v1085 = vadd.f32 %v1083, %v1084
  %v1086 = vrot.slane %v1085, 1
  %v1087 = vadd.f32 %v1085, %v1086
  %v1088 = vadd.f32 %v956, %v1087
  %1089 = vst [vmem:[#allocation3] sm:$0x1] %v1088
  // Predicated region
  $region22: #{dueling_dqn_forward.4} parent=0 // pred_check
    %p1090 = pneg %p18
  $region23: #{dueling_dqn_forward.4} parent=0 // pred_check_branch
    %1092 = sbr.rel (%p1090) target = $region25
  $region24: #{dueling_dqn_forward.4} parent=0 // pred_region
    %v1093 = vld [vmem:[#allocation2] sm:$0x1]
    %v1094 = vmul.f32 %v1093, 0.001984127
    %v1095 = vld [vmem:[#allocation3] sm:$0x1]
    %v1096 = vmul.f32 %v1095, 0.001984127
    %v1097 = vmul.f32 %v1094, %v1094
    %v1098 = vsub.f32 %v1096, %v1097
    %v1099 = vmax.f32 %v1098, 0.0
    %v1100 = vld [vmem:[%s2] sm:$0x1]
    %v1101 = vadd.f32 %v1099, 1e-05
    %v1102 = vrsqrt.pop %v1101
    %v1103 = vmul.f32 %v1100, %v1102
    %v1104 = vld [vmem:[%s3] sm:$0x1]
    %v1105 = vmul.f32 %v1094, %v1103
    %v1106 = vsub.f32 %v1104, %v1105
    %v1107 = vld [vmem:[%s4] sm:$0xff]
    %v1108 = vld [vmem:[%s4 + $0x8] sm:$0xff]
    %v1109 = vld [vmem:[%s4 + $0x10] sm:$0xff]
    %v1110 = vld [vmem:[%s4 + $0x18] sm:$0xff]
    %v1111 = vld [vmem:[%s4 + $0x20] sm:$0xff]
    %v1112 = vld [vmem:[%s4 + $0x28] sm:$0xff]
    %v1113 = vld [vmem:[%s4 + $0x30] sm:$0xff]
    %v1114 = vld [vmem:[%s4 + $0x38] sm:$0xff]
    %v1115 = vld [vmem:[%s4 + $0x40] sm:$0xff]
    %v1116 = vld [vmem:[%s4 + $0x48] sm:$0xff]
    %v1117 = vld [vmem:[%s4 + $0x50] sm:$0xff]
    %v1118 = vld [vmem:[%s4 + $0x58] sm:$0xff]
    %v1119 = vld [vmem:[%s4 + $0x60] sm:$0xff]
    %v1120 = vld [vmem:[%s4 + $0x68] sm:$0xff]
    %v1121 = vld [vmem:[%s4 + $0x70] sm:$0xff]
    %v1122 = vld [vmem:[%s4 + $0x78] sm:$0xff]
    %v1123 = vld [vmem:[%s4 + $0x80] sm:$0xff]
    %v1124 = vld [vmem:[%s4 + $0x88] sm:$0xff]
    %v1125 = vld [vmem:[%s4 + $0x90] sm:$0xff]
    %v1126 = vld [vmem:[%s4 + $0x98] sm:$0xff]
    %v1127 = vld [vmem:[%s4 + $0xa0] sm:$0xff]
    %v1128 = vld [vmem:[%s4 + $0xa8] sm:$0xff]
    %v1129 = vld [vmem:[%s4 + $0xb0] sm:$0xff]
    %v1130 = vld [vmem:[%s4 + $0xb8] sm:$0xff]
    %v1131 = vld [vmem:[%s4 + $0xc0] sm:$0xff]
    %v1132 = vld [vmem:[%s4 + $0xc8] sm:$0xff]
    %v1133 = vld [vmem:[%s4 + $0xd0] sm:$0xff]
    %v1134 = vld [vmem:[%s4 + $0xd8] sm:$0xff]
    %v1135 = vld [vmem:[%s4 + $0xe0] sm:$0xff]
    %v1136 = vld [vmem:[%s4 + $0xe8] sm:$0xff]
    %v1137 = vld [vmem:[%s4 + $0xf0] sm:$0xff]
    %v1138 = vld [vmem:[%s4 + $0xf8] sm:$0xff]
    %v1139 = vld [vmem:[%s4 + $0x100] sm:$0xff]
    %v1140 = vld [vmem:[%s4 + $0x108] sm:$0xff]
    %v1141 = vld [vmem:[%s4 + $0x110] sm:$0xff]
    %v1142 = vld [vmem:[%s4 + $0x118] sm:$0xff]
    %v1143 = vld [vmem:[%s4 + $0x120] sm:$0xff]
    %v1144 = vld [vmem:[%s4 + $0x128] sm:$0xff]
    %v1145 = vld [vmem:[%s4 + $0x130] sm:$0xff]
    %v1146 = vld [vmem:[%s4 + $0x138] sm:$0xff]
    %v1147 = vld [vmem:[%s4 + $0x140] sm:$0xff]
    %v1148 = vld [vmem:[%s4 + $0x148] sm:$0xff]
    %v1149 = vld [vmem:[%s4 + $0x150] sm:$0xff]
    %v1150 = vld [vmem:[%s4 + $0x158] sm:$0xff]
    %v1151 = vld [vmem:[%s4 + $0x160] sm:$0xff]
    %v1152 = vld [vmem:[%s4 + $0x168] sm:$0xff]
    %v1153 = vld [vmem:[%s4 + $0x170] sm:$0xff]
    %v1154 = vld [vmem:[%s4 + $0x178] sm:$0xff]
    %v1155 = vld [vmem:[%s4 + $0x180] sm:$0xff]
    %v1156 = vld [vmem:[%s4 + $0x188] sm:$0xff]
    %v1157 = vld [vmem:[%s4 + $0x190] sm:$0xff]
    %v1158 = vld [vmem:[%s4 + $0x198] sm:$0xff]
    %v1159 = vld [vmem:[%s4 + $0x1a0] sm:$0xff]
    %v1160 = vld [vmem:[%s4 + $0x1a8] sm:$0xff]
    %v1161 = vld [vmem:[%s4 + $0x1b0] sm:$0xff]
    %v1162 = vld [vmem:[%s4 + $0x1b8] sm:$0xff]
    %v1163 = vld [vmem:[%s4 + $0x1c0] sm:$0xff]
    %v1164 = vld [vmem:[%s4 + $0x1c8] sm:$0xff]
    %v1165 = vld [vmem:[%s4 + $0x1d0] sm:$0xff]
    %v1166 = vld [vmem:[%s4 + $0x1d8] sm:$0xff]
    %v1167 = vld [vmem:[%s4 + $0x1e0] sm:$0xff]
    %v1168 = vld [vmem:[%s4 + $0x1e8] sm:$0xff]
    %v1169 = vld [vmem:[%s4 + $0x1f0] sm:$0xff]
    %v1171 = vlaneseq
    %v1172 = vshrl.u32 %v1171, 7
    %v1173 = vsub.s32 0, %v1172
    %v1174 = vrot.slane %v1103, %v1173
    %v1176 = vmul.f32 %v1107, %v1174
    %v1177 = vmul.f32 %v1108, %v1174
    %v1178 = vmul.f32 %v1109, %v1174
    %v1179 = vmul.f32 %v1110, %v1174
    %v1180 = vmul.f32 %v1111, %v1174
    %v1181 = vmul.f32 %v1112, %v1174
    %v1182 = vmul.f32 %v1113, %v1174
    %v1183 = vmul.f32 %v1114, %v1174
    %v1184 = vmul.f32 %v1115, %v1174
    %v1185 = vmul.f32 %v1116, %v1174
    %v1186 = vmul.f32 %v1117, %v1174
    %v1187 = vmul.f32 %v1118, %v1174
    %v1188 = vmul.f32 %v1119, %v1174
    %v1189 = vmul.f32 %v1120, %v1174
    %v1190 = vmul.f32 %v1121, %v1174
    %v1191 = vmul.f32 %v1122, %v1174
    %v1192 = vmul.f32 %v1123, %v1174
    %v1193 = vmul.f32 %v1124, %v1174
    %v1194 = vmul.f32 %v1125, %v1174
    %v1195 = vmul.f32 %v1126, %v1174
    %v1196 = vmul.f32 %v1127, %v1174
    %v1197 = vmul.f32 %v1128, %v1174
    %v1198 = vmul.f32 %v1129, %v1174
    %v1199 = vmul.f32 %v1130, %v1174
    %v1200 = vmul.f32 %v1131, %v1174
    %v1201 = vmul.f32 %v1132, %v1174
    %v1202 = vmul.f32 %v1133, %v1174
    %v1203 = vmul.f32 %v1134, %v1174
    %v1204 = vmul.f32 %v1135, %v1174
    %v1205 = vmul.f32 %v1136, %v1174
    %v1206 = vmul.f32 %v1137, %v1174
    %v1207 = vmul.f32 %v1138, %v1174
    %v1208 = vmul.f32 %v1139, %v1174
    %v1209 = vmul.f32 %v1140, %v1174
    %v1210 = vmul.f32 %v1141, %v1174
    %v1211 = vmul.f32 %v1142, %v1174
    %v1212 = vmul.f32 %v1143, %v1174
    %v1213 = vmul.f32 %v1144, %v1174
    %v1214 = vmul.f32 %v1145, %v1174
    %v1215 = vmul.f32 %v1146, %v1174
    %v1216 = vmul.f32 %v1147, %v1174
    %v1217 = vmul.f32 %v1148, %v1174
    %v1218 = vmul.f32 %v1149, %v1174
    %v1219 = vmul.f32 %v1150, %v1174
    %v1220 = vmul.f32 %v1151, %v1174
    %v1221 = vmul.f32 %v1152, %v1174
    %v1222 = vmul.f32 %v1153, %v1174
    %v1223 = vmul.f32 %v1154, %v1174
    %v1224 = vmul.f32 %v1155, %v1174
    %v1225 = vmul.f32 %v1156, %v1174
    %v1226 = vmul.f32 %v1157, %v1174
    %v1227 = vmul.f32 %v1158, %v1174
    %v1228 = vmul.f32 %v1159, %v1174
    %v1229 = vmul.f32 %v1160, %v1174
    %v1230 = vmul.f32 %v1161, %v1174
    %v1231 = vmul.f32 %v1162, %v1174
    %v1232 = vmul.f32 %v1163, %v1174
    %v1233 = vmul.f32 %v1164, %v1174
    %v1234 = vmul.f32 %v1165, %v1174
    %v1235 = vmul.f32 %v1166, %v1174
    %v1236 = vmul.f32 %v1167, %v1174
    %v1237 = vmul.f32 %v1168, %v1174
    %v1238 = vmul.f32 %v1169, %v1174
    %v1240 = vlaneseq
    %v1241 = vshrl.u32 %v1240, 7
    %v1242 = vsub.s32 0, %v1241
    %v1243 = vrot.slane %v1106, %v1242
    %v1245 = vadd.f32 %v1176, %v1243
    %v1246 = vadd.f32 %v1177, %v1243
    %v1247 = vadd.f32 %v1178, %v1243
    %v1248 = vadd.f32 %v1179, %v1243
    %v1249 = vadd.f32 %v1180, %v1243
    %v1250 = vadd.f32 %v1181, %v1243
    %v1251 = vadd.f32 %v1182, %v1243
    %v1252 = vadd.f32 %v1183, %v1243
    %v1253 = vadd.f32 %v1184, %v1243
    %v1254 = vadd.f32 %v1185, %v1243
    %v1255 = vadd.f32 %v1186, %v1243
    %v1256 = vadd.f32 %v1187, %v1243
    %v1257 = vadd.f32 %v1188, %v1243
    %v1258 = vadd.f32 %v1189, %v1243
    %v1259 = vadd.f32 %v1190, %v1243
    %v1260 = vadd.f32 %v1191, %v1243
    %v1261 = vadd.f32 %v1192, %v1243
    %v1262 = vadd.f32 %v1193, %v1243
    %v1263 = vadd.f32 %v1194, %v1243
    %v1264 = vadd.f32 %v1195, %v1243
    %v1265 = vadd.f32 %v1196, %v1243
    %v1266 = vadd.f32 %v1197, %v1243
    %v1267 = vadd.f32 %v1198, %v1243
    %v1268 = vadd.f32 %v1199, %v1243
    %v1269 = vadd.f32 %v1200, %v1243
    %v1270 = vadd.f32 %v1201, %v1243
    %v1271 = vadd.f32 %v1202, %v1243
    %v1272 = vadd.f32 %v1203, %v1243
    %v1273 = vadd.f32 %v1204, %v1243
    %v1274 = vadd.f32 %v1205, %v1243
    %v1275 = vadd.f32 %v1206, %v1243
    %v1276 = vadd.f32 %v1207, %v1243
    %v1277 = vadd.f32 %v1208, %v1243
    %v1278 = vadd.f32 %v1209, %v1243
    %v1279 = vadd.f32 %v1210, %v1243
    %v1280 = vadd.f32 %v1211, %v1243
    %v1281 = vadd.f32 %v1212, %v1243
    %v1282 = vadd.f32 %v1213, %v1243
    %v1283 = vadd.f32 %v1214, %v1243
    %v1284 = vadd.f32 %v1215, %v1243
    %v1285 = vadd.f32 %v1216, %v1243
    %v1286 = vadd.f32 %v1217, %v1243
    %v1287 = vadd.f32 %v1218, %v1243
    %v1288 = vadd.f32 %v1219, %v1243
    %v1289 = vadd.f32 %v1220, %v1243
    %v1290 = vadd.f32 %v1221, %v1243
    %v1291 = vadd.f32 %v1222, %v1243
    %v1292 = vadd.f32 %v1223, %v1243
    %v1293 = vadd.f32 %v1224, %v1243
    %v1294 = vadd.f32 %v1225, %v1243
    %v1295 = vadd.f32 %v1226, %v1243
    %v1296 = vadd.f32 %v1227, %v1243
    %v1297 = vadd.f32 %v1228, %v1243
    %v1298 = vadd.f32 %v1229, %v1243
    %v1299 = vadd.f32 %v1230, %v1243
    %v1300 = vadd.f32 %v1231, %v1243
    %v1301 = vadd.f32 %v1232, %v1243
    %v1302 = vadd.f32 %v1233, %v1243
    %v1303 = vadd.f32 %v1234, %v1243
    %v1304 = vadd.f32 %v1235, %v1243
    %v1305 = vadd.f32 %v1236, %v1243
    %v1306 = vadd.f32 %v1237, %v1243
    %v1307 = vadd.f32 %v1238, %v1243
    %v1308 = vmax.f32 %v1245, 0.0
    %v1309 = vmax.f32 %v1246, 0.0
    %v1310 = vmax.f32 %v1247, 0.0
    %v1311 = vmax.f32 %v1248, 0.0
    %v1312 = vmax.f32 %v1249, 0.0
    %v1313 = vmax.f32 %v1250, 0.0
    %v1314 = vmax.f32 %v1251, 0.0
    %v1315 = vmax.f32 %v1252, 0.0
    %v1316 = vmax.f32 %v1253, 0.0
    %v1317 = vmax.f32 %v1254, 0.0
    %v1318 = vmax.f32 %v1255, 0.0
    %v1319 = vmax.f32 %v1256, 0.0
    %v1320 = vmax.f32 %v1257, 0.0
    %v1321 = vmax.f32 %v1258, 0.0
    %v1322 = vmax.f32 %v1259, 0.0
    %v1323 = vmax.f32 %v1260, 0.0
    %v1324 = vmax.f32 %v1261, 0.0
    %v1325 = vmax.f32 %v1262, 0.0
    %v1326 = vmax.f32 %v1263, 0.0
    %v1327 = vmax.f32 %v1264, 0.0
    %v1328 = vmax.f32 %v1265, 0.0
    %v1329 = vmax.f32 %v1266, 0.0
    %v1330 = vmax.f32 %v1267, 0.0
    %v1331 = vmax.f32 %v1268, 0.0
    %v1332 = vmax.f32 %v1269, 0.0
    %v1333 = vmax.f32 %v1270, 0.0
    %v1334 = vmax.f32 %v1271, 0.0
    %v1335 = vmax.f32 %v1272, 0.0
    %v1336 = vmax.f32 %v1273, 0.0
    %v1337 = vmax.f32 %v1274, 0.0
    %v1338 = vmax.f32 %v1275, 0.0
    %v1339 = vmax.f32 %v1276, 0.0
    %v1340 = vmax.f32 %v1277, 0.0
    %v1341 = vmax.f32 %v1278, 0.0
    %v1342 = vmax.f32 %v1279, 0.0
    %v1343 = vmax.f32 %v1280, 0.0
    %v1344 = vmax.f32 %v1281, 0.0
    %v1345 = vmax.f32 %v1282, 0.0
    %v1346 = vmax.f32 %v1283, 0.0
    %v1347 = vmax.f32 %v1284, 0.0
    %v1348 = vmax.f32 %v1285, 0.0
    %v1349 = vmax.f32 %v1286, 0.0
    %v1350 = vmax.f32 %v1287, 0.0
    %v1351 = vmax.f32 %v1288, 0.0
    %v1352 = vmax.f32 %v1289, 0.0
    %v1353 = vmax.f32 %v1290, 0.0
    %v1354 = vmax.f32 %v1291, 0.0
    %v1355 = vmax.f32 %v1292, 0.0
    %v1356 = vmax.f32 %v1293, 0.0
    %v1357 = vmax.f32 %v1294, 0.0
    %v1358 = vmax.f32 %v1295, 0.0
    %v1359 = vmax.f32 %v1296, 0.0
    %v1360 = vmax.f32 %v1297, 0.0
    %v1361 = vmax.f32 %v1298, 0.0
    %v1362 = vmax.f32 %v1299, 0.0
    %v1363 = vmax.f32 %v1300, 0.0
    %v1364 = vmax.f32 %v1301, 0.0
    %v1365 = vmax.f32 %v1302, 0.0
    %v1366 = vmax.f32 %v1303, 0.0
    %v1367 = vmax.f32 %v1304, 0.0
    %v1368 = vmax.f32 %v1305, 0.0
    %v1369 = vmax.f32 %v1306, 0.0
    %v1370 = vmax.f32 %v1307, 0.0
    %1371 = vst [vmem:[%s4] sm:$0xff] %v1308
    %1372 = vst [vmem:[%s4 + $0x8] sm:$0xff] %v1309
    %1373 = vst [vmem:[%s4 + $0x10] sm:$0xff] %v1310
    %1374 = vst [vmem:[%s4 + $0x18] sm:$0xff] %v1311
    %1375 = vst [vmem:[%s4 + $0x20] sm:$0xff] %v1312
    %1376 = vst [vmem:[%s4 + $0x28] sm:$0xff] %v1313
    %1377 = vst [vmem:[%s4 + $0x30] sm:$0xff] %v1314
    %1378 = vst [vmem:[%s4 + $0x38] sm:$0xff] %v1315
    %1379 = vst [vmem:[%s4 + $0x40] sm:$0xff] %v1316
    %1380 = vst [vmem:[%s4 + $0x48] sm:$0xff] %v1317
    %1381 = vst [vmem:[%s4 + $0x50] sm:$0xff] %v1318
    %1382 = vst [vmem:[%s4 + $0x58] sm:$0xff] %v1319
    %1383 = vst [vmem:[%s4 + $0x60] sm:$0xff] %v1320
    %1384 = vst [vmem:[%s4 + $0x68] sm:$0xff] %v1321
    %1385 = vst [vmem:[%s4 + $0x70] sm:$0xff] %v1322
    %1386 = vst [vmem:[%s4 + $0x78] sm:$0xff] %v1323
    %1387 = vst [vmem:[%s4 + $0x80] sm:$0xff] %v1324
    %1388 = vst [vmem:[%s4 + $0x88] sm:$0xff] %v1325
    %1389 = vst [vmem:[%s4 + $0x90] sm:$0xff] %v1326
    %1390 = vst [vmem:[%s4 + $0x98] sm:$0xff] %v1327
    %1391 = vst [vmem:[%s4 + $0xa0] sm:$0xff] %v1328
    %1392 = vst [vmem:[%s4 + $0xa8] sm:$0xff] %v1329
    %1393 = vst [vmem:[%s4 + $0xb0] sm:$0xff] %v1330
    %1394 = vst [vmem:[%s4 + $0xb8] sm:$0xff] %v1331
    %1395 = vst [vmem:[%s4 + $0xc0] sm:$0xff] %v1332
    %1396 = vst [vmem:[%s4 + $0xc8] sm:$0xff] %v1333
    %1397 = vst [vmem:[%s4 + $0xd0] sm:$0xff] %v1334
    %1398 = vst [vmem:[%s4 + $0xd8] sm:$0xff] %v1335
    %1399 = vst [vmem:[%s4 + $0xe0] sm:$0xff] %v1336
    %1400 = vst [vmem:[%s4 + $0xe8] sm:$0xff] %v1337
    %1401 = vst [vmem:[%s4 + $0xf0] sm:$0xff] %v1338
    %1402 = vst [vmem:[%s4 + $0xf8] sm:$0xff] %v1339
    %1403 = vst [vmem:[%s4 + $0x100] sm:$0xff] %v1340
    %1404 = vst [vmem:[%s4 + $0x108] sm:$0xff] %v1341
    %1405 = vst [vmem:[%s4 + $0x110] sm:$0xff] %v1342
    %1406 = vst [vmem:[%s4 + $0x118] sm:$0xff] %v1343
    %1407 = vst [vmem:[%s4 + $0x120] sm:$0xff] %v1344
    %1408 = vst [vmem:[%s4 + $0x128] sm:$0xff] %v1345
    %1409 = vst [vmem:[%s4 + $0x130] sm:$0xff] %v1346
    %1410 = vst [vmem:[%s4 + $0x138] sm:$0xff] %v1347
    %1411 = vst [vmem:[%s4 + $0x140] sm:$0xff] %v1348
    %1412 = vst [vmem:[%s4 + $0x148] sm:$0xff] %v1349
    %1413 = vst [vmem:[%s4 + $0x150] sm:$0xff] %v1350
    %1414 = vst [vmem:[%s4 + $0x158] sm:$0xff] %v1351
    %1415 = vst [vmem:[%s4 + $0x160] sm:$0xff] %v1352
    %1416 = vst [vmem:[%s4 + $0x168] sm:$0xff] %v1353
    %1417 = vst [vmem:[%s4 + $0x170] sm:$0xff] %v1354
    %1418 = vst [vmem:[%s4 + $0x178] sm:$0xff] %v1355
    %1419 = vst [vmem:[%s4 + $0x180] sm:$0xff] %v1356
    %1420 = vst [vmem:[%s4 + $0x188] sm:$0xff] %v1357
    %1421 = vst [vmem:[%s4 + $0x190] sm:$0xff] %v1358
    %1422 = vst [vmem:[%s4 + $0x198] sm:$0xff] %v1359
    %1423 = vst [vmem:[%s4 + $0x1a0] sm:$0xff] %v1360
    %1424 = vst [vmem:[%s4 + $0x1a8] sm:$0xff] %v1361
    %1425 = vst [vmem:[%s4 + $0x1b0] sm:$0xff] %v1362
    %1426 = vst [vmem:[%s4 + $0x1b8] sm:$0xff] %v1363
    %1427 = vst [vmem:[%s4 + $0x1c0] sm:$0xff] %v1364
    %1428 = vst [vmem:[%s4 + $0x1c8] sm:$0xff] %v1365
    %1429 = vst [vmem:[%s4 + $0x1d0] sm:$0xff] %v1366
    %1430 = vst [vmem:[%s4 + $0x1d8] sm:$0xff] %v1367
    %1431 = vst [vmem:[%s4 + $0x1e0] sm:$0xff] %v1368
    %1432 = vst [vmem:[%s4 + $0x1e8] sm:$0xff] %v1369
    %1433 = vst [vmem:[%s4 + $0x1f0] sm:$0xff] %v1370
  $region25: #{dueling_dqn_forward.4} parent=0 // pred_fallthru
    _
  // Predicated region
  $region26: #{dueling_dqn_forward.4} parent=0 // pred_check
    _
  $region27: #{dueling_dqn_forward.4} parent=0 // pred_check_branch
    %1435 = sbr.rel (0) target = $region29
  $region28: #{dueling_dqn_forward.4} parent=0 // pred_region
    _
  $region29: #{dueling_dqn_forward.4} parent=0 // pred_fallthru
    _
  // Predicated region
  $region30: #{dueling_dqn_forward.4} parent=0 // pred_check
    _
  $region31: #{dueling_dqn_forward.4} parent=0 // pred_check_branch
    %1437 = sbr.rel (0) target = $region33
  $region32: #{dueling_dqn_forward.4} parent=0 // pred_region
    _
  $region33: #{dueling_dqn_forward.4} parent=0 // pred_fallthru
    _

// kernel: dueling_dqn_forward.5
$region0: #{dueling_dqn_forward.5}
  #allocation0 [shape = 'u32[]', space=smem, size = 0x4, offset = 0x4, fixed_abs, tag = 'smem constant byte address 0x4 - core index']
  #allocation1 [shape = 'u32[144,128]{1,0:T(1,128)}', space=vmem, size = 0x12000, scoped, tag = 'internal scratch']
  #allocation2 [shape = 'f32[1,128]{1,0:T(1,128)}', space=vmem, size = 0x200, scoped, tag = 'scratch operand']
  #allocation3 [shape = 'f32[1,128]{1,0:T(1,128)}', space=vmem, size = 0x200, scoped, tag = 'scratch operand']
  %s0 = inlined_call_operand.vmem [shape: bf16[96,512], index: 0, kind: input, shape index: {}]
  %s1 = inlined_call_operand.vmem [shape: bf16[512,128], index: 1, kind: input, shape index: {}]
  %s2 = inlined_call_operand.vmem [shape: f32[1,128], index: 2, kind: input, shape index: {}]
  %s3 = inlined_call_operand.vmem [shape: f32[1,128], index: 3, kind: input, shape index: {}]
  %s4 = inlined_call_operand.vmem [shape: f32[96,128], index: 4, kind: output, shape index: {}]
  %s5 = sld [smem:[#allocation0]]
  $region34: #{dueling_dqn_forward.5} parent=0
    _
  %s7 = ssub.s32 1, %s5
  %s8 = scalar_select 0, %s7, %s5
  // Predicated region
  $region2: #{dueling_dqn_forward.5} parent=0 // pred_check
    _
  $region3: #{dueling_dqn_forward.5} parent=0 // pred_check_branch
    %10 = sbr.rel (0) target = $region5
  $region4: #{dueling_dqn_forward.5} parent=0 // pred_region
    _
  $region5: #{dueling_dqn_forward.5} parent=0 // pred_fallthru
    _
  // Predicated region
  $region6: #{dueling_dqn_forward.5} parent=0 // pred_check
    _
  $region7: #{dueling_dqn_forward.5} parent=0 // pred_check_branch
    %12 = sbr.rel (0) target = $region9
  $region8: #{dueling_dqn_forward.5} parent=0 // pred_region
    _
  $region9: #{dueling_dqn_forward.5} parent=0 // pred_fallthru
    _
  // Predicated region
  $region10: #{dueling_dqn_forward.5} parent=0 // pred_check
    _
  $region11: #{dueling_dqn_forward.5} parent=0 // pred_check_branch
    %14 = sbr.rel (0) target = $region13
  $region12: #{dueling_dqn_forward.5} parent=0 // pred_region
    _
  $region13: #{dueling_dqn_forward.5} parent=0 // pred_fallthru
    _
  // Predicated region
  $region14: #{dueling_dqn_forward.5} parent=0 // pred_check
    _
  $region15: #{dueling_dqn_forward.5} parent=0 // pred_check_branch
    %16 = sbr.rel (0) target = $region17
  $region16: #{dueling_dqn_forward.5} parent=0 // pred_region
    _
  $region17: #{dueling_dqn_forward.5} parent=0 // pred_fallthru
    _
  %p18 = scmp.eq.s32.totalorder 0, 0
  // Predicated region
  $region18: #{dueling_dqn_forward.5} parent=0 // pred_check
    %p19 = pneg %p18
  $region19: #{dueling_dqn_forward.5} parent=0 // pred_check_branch
    %21 = sbr.rel (%p19) target = $region21
  $region20: #{dueling_dqn_forward.5} parent=0 // pred_region
    %22 = vst [vmem:[#allocation2] sm:$0x1] 0.0
    %23 = vst [vmem:[#allocation3] sm:$0x1] 0.0
  $region21: #{dueling_dqn_forward.5} parent=0 // pred_fallthru
    _
  %v24 = vld [vmem:[%s0] sm:$0xff]
  %v25 = vld [vmem:[%s0 + $0x8] sm:$0xff]
  %v26 = vld [vmem:[%s0 + $0x10] sm:$0xff]
  %v27 = vld [vmem:[%s0 + $0x18] sm:$0xff]
  %v28 = vld [vmem:[%s0 + $0x20] sm:$0xff]
  %v29 = vld [vmem:[%s0 + $0x28] sm:$0xff]
  %v30 = vld [vmem:[%s0 + $0x30] sm:$0xff]
  %v31 = vld [vmem:[%s0 + $0x38] sm:$0xff]
  %v32 = vld [vmem:[%s0 + $0x40] sm:$0xff]
  %v33 = vld [vmem:[%s0 + $0x48] sm:$0xff]
  %v34 = vld [vmem:[%s0 + $0x50] sm:$0xff]
  %v35 = vld [vmem:[%s0 + $0x58] sm:$0xff]
  %v36 = vld [vmem:[%s0 + $0x60] sm:$0xff]
  %v37 = vld [vmem:[%s0 + $0x68] sm:$0xff]
  %v38 = vld [vmem:[%s0 + $0x70] sm:$0xff]
  %v39 = vld [vmem:[%s0 + $0x78] sm:$0xff]
  %v40 = vld [vmem:[%s0 + $0x80] sm:$0xff]
  %v41 = vld [vmem:[%s0 + $0x88] sm:$0xff]
  %v42 = vld [vmem:[%s0 + $0x90] sm:$0xff]
  %v43 = vld [vmem:[%s0 + $0x98] sm:$0xff]
  %v44 = vld [vmem:[%s0 + $0xa0] sm:$0xff]
  %v45 = vld [vmem:[%s0 + $0xa8] sm:$0xff]
  %v46 = vld [vmem:[%s0 + $0xb0] sm:$0xff]
  %v47 = vld [vmem:[%s0 + $0xb8] sm:$0xff]
  %v48 = vld [vmem:[%s1] sm:$0xf]
  %v49 = vld [vmem:[%s1 + $0x4] sm:$0xf]
  %v50 = vld [vmem:[%s1 + $0x8] sm:$0xf]
  %v51 = vld [vmem:[%s1 + $0xc] sm:$0xf]
  %v52 = vld [vmem:[%s1 + $0x10] sm:$0xf]
  %v53 = vld [vmem:[%s1 + $0x14] sm:$0xf]
  %v54 = vld [vmem:[%s1 + $0x18] sm:$0xf]
  %v55 = vld [vmem:[%s1 + $0x1c] sm:$0xf]
  %v56 = vld [vmem:[%s1 + $0x20] sm:$0xf]
  %v57 = vld [vmem:[%s1 + $0x24] sm:$0xf]
  %v58 = vld [vmem:[%s1 + $0x28] sm:$0xf]
  %v59 = vld [vmem:[%s1 + $0x2c] sm:$0xf]
  %v60 = vld [vmem:[%s1 + $0x30] sm:$0xf]
  %v61 = vld [vmem:[%s1 + $0x34] sm:$0xf]
  %v62 = vld [vmem:[%s1 + $0x38] sm:$0xf]
  %v63 = vld [vmem:[%s1 + $0x3c] sm:$0xf]
  %v64 = vld [vmem:[%s1 + $0x40] sm:$0xf]
  %v65 = vld [vmem:[%s1 + $0x44] sm:$0xf]
  %v66 = vld [vmem:[%s1 + $0x48] sm:$0xf]
  %v67 = vld [vmem:[%s1 + $0x4c] sm:$0xf]
  %v68 = vld [vmem:[%s1 + $0x50] sm:$0xf]
  %v69 = vld [vmem:[%s1 + $0x54] sm:$0xf]
  %v70 = vld [vmem:[%s1 + $0x58] sm:$0xf]
  %v71 = vld [vmem:[%s1 + $0x5c] sm:$0xf]
  %v72 = vld [vmem:[%s1 + $0x60] sm:$0xf]
  %v73 = vld [vmem:[%s1 + $0x64] sm:$0xf]
  %v74 = vld [vmem:[%s1 + $0x68] sm:$0xf]
  %v75 = vld [vmem:[%s1 + $0x6c] sm:$0xf]
  %v76 = vld [vmem:[%s1 + $0x70] sm:$0xf]
  %v77 = vld [vmem:[%s1 + $0x74] sm:$0xf]
  %v78 = vld [vmem:[%s1 + $0x78] sm:$0xf]
  %v79 = vld [vmem:[%s1 + $0x7c] sm:$0xf]
  %v80 = vld [vmem:[%s1 + $0x80] sm:$0xf]
  %v81 = vld [vmem:[%s1 + $0x84] sm:$0xf]
  %v82 = vld [vmem:[%s1 + $0x88] sm:$0xf]
  %v83 = vld [vmem:[%s1 + $0x8c] sm:$0xf]
  %v84 = vld [vmem:[%s1 + $0x90] sm:$0xf]
  %v85 = vld [vmem:[%s1 + $0x94] sm:$0xf]
  %v86 = vld [vmem:[%s1 + $0x98] sm:$0xf]
  %v87 = vld [vmem:[%s1 + $0x9c] sm:$0xf]
  %v88 = vld [vmem:[%s1 + $0xa0] sm:$0xf]
  %v89 = vld [vmem:[%s1 + $0xa4] sm:$0xf]
  %v90 = vld [vmem:[%s1 + $0xa8] sm:$0xf]
  %v91 = vld [vmem:[%s1 + $0xac] sm:$0xf]
  %v92 = vld [vmem:[%s1 + $0xb0] sm:$0xf]
  %v93 = vld [vmem:[%s1 + $0xb4] sm:$0xf]
  %v94 = vld [vmem:[%s1 + $0xb8] sm:$0xf]
  %v95 = vld [vmem:[%s1 + $0xbc] sm:$0xf]
  %v96 = vld [vmem:[%s1 + $0xc0] sm:$0xf]
  %v97 = vld [vmem:[%s1 + $0xc4] sm:$0xf]
  %v98 = vld [vmem:[%s1 + $0xc8] sm:$0xf]
  %v99 = vld [vmem:[%s1 + $0xcc] sm:$0xf]
  %v100 = vld [vmem:[%s1 + $0xd0] sm:$0xf]
  %v101 = vld [vmem:[%s1 + $0xd4] sm:$0xf]
  %v102 = vld [vmem:[%s1 + $0xd8] sm:$0xf]
  %v103 = vld [vmem:[%s1 + $0xdc] sm:$0xf]
  %v104 = vld [vmem:[%s1 + $0xe0] sm:$0xf]
  %v105 = vld [vmem:[%s1 + $0xe4] sm:$0xf]
  %v106 = vld [vmem:[%s1 + $0xe8] sm:$0xf]
  %v107 = vld [vmem:[%s1 + $0xec] sm:$0xf]
  %v108 = vld [vmem:[%s1 + $0xf0] sm:$0xf]
  %v109 = vld [vmem:[%s1 + $0xf4] sm:$0xf]
  %v110 = vld [vmem:[%s1 + $0xf8] sm:$0xf]
  %v111 = vld [vmem:[%s1 + $0xfc] sm:$0xf]
  %v136 = vunpack.c.l.b16 %v24
  %v137 = vunpack.c.h.b16 %v24
  %v138 = vunpack.c.l.b16 %v25
  %v139 = vunpack.c.h.b16 %v25
  %v140 = vunpack.c.l.b16 %v26
  %v141 = vunpack.c.h.b16 %v26
  %v142 = vunpack.c.l.b16 %v27
  %v143 = vunpack.c.h.b16 %v27
  %v144 = vunpack.c.l.b16 %v28
  %v145 = vunpack.c.h.b16 %v28
  %v146 = vunpack.c.l.b16 %v29
  %v147 = vunpack.c.h.b16 %v29
  %v148 = vunpack.c.l.b16 %v30
  %v149 = vunpack.c.h.b16 %v30
  %v150 = vunpack.c.l.b16 %v31
  %v151 = vunpack.c.h.b16 %v31
  %v152 = vunpack.c.l.b16 %v32
  %v153 = vunpack.c.h.b16 %v32
  %v154 = vunpack.c.l.b16 %v33
  %v155 = vunpack.c.h.b16 %v33
  %v156 = vunpack.c.l.b16 %v34
  %v157 = vunpack.c.h.b16 %v34
  %v158 = vunpack.c.l.b16 %v35
  %v159 = vunpack.c.h.b16 %v35
  %v160 = vunpack.c.l.b16 %v36
  %v161 = vunpack.c.h.b16 %v36
  %v162 = vunpack.c.l.b16 %v37
  %v163 = vunpack.c.h.b16 %v37
  %v164 = vunpack.c.l.b16 %v38
  %v165 = vunpack.c.h.b16 %v38
  %v166 = vunpack.c.l.b16 %v39
  %v167 = vunpack.c.h.b16 %v39
  %v168 = vunpack.c.l.b16 %v40
  %v169 = vunpack.c.h.b16 %v40
  %v170 = vunpack.c.l.b16 %v41
  %v171 = vunpack.c.h.b16 %v41
  %v172 = vunpack.c.l.b16 %v42
  %v173 = vunpack.c.h.b16 %v42
  %v174 = vunpack.c.l.b16 %v43
  %v175 = vunpack.c.h.b16 %v43
  %v176 = vunpack.c.l.b16 %v44
  %v177 = vunpack.c.h.b16 %v44
  %v178 = vunpack.c.l.b16 %v45
  %v179 = vunpack.c.h.b16 %v45
  %v180 = vunpack.c.l.b16 %v46
  %v181 = vunpack.c.h.b16 %v46
  %v182 = vunpack.c.l.b16 %v47
  %v183 = vunpack.c.h.b16 %v47
  %v184 = vpack.c.b16 %v140, %v136
  %v185 = vpack.c.b16 %v141, %v137
  %v186 = vpack.c.b16 %v142, %v138
  %v187 = vpack.c.b16 %v143, %v139
  %v188 = vpack.c.b16 %v148, %v144
  %v189 = vpack.c.b16 %v149, %v145
  %v190 = vpack.c.b16 %v150, %v146
  %v191 = vpack.c.b16 %v151, %v147
  %v192 = vpack.c.b16 %v156, %v152
  %v193 = vpack.c.b16 %v157, %v153
  %v194 = vpack.c.b16 %v158, %v154
  %v195 = vpack.c.b16 %v159, %v155
  %v196 = vpack.c.b16 %v164, %v160
  %v197 = vpack.c.b16 %v165, %v161
  %v198 = vpack.c.b16 %v166, %v162
  %v199 = vpack.c.b16 %v167, %v163
  %v200 = vpack.c.b16 %v172, %v168
  %v201 = vpack.c.b16 %v173, %v169
  %v202 = vpack.c.b16 %v174, %v170
  %v203 = vpack.c.b16 %v175, %v171
  %v204 = vpack.c.b16 %v180, %v176
  %v205 = vpack.c.b16 %v181, %v177
  %v206 = vpack.c.b16 %v182, %v178
  %v207 = vpack.c.b16 %v183, %v179
  %v296 = vunpack.c.l.b16 %v48
  %v297 = vunpack.c.l.b16 %v49
  %v298 = vunpack.c.l.b16 %v50
  %v299 = vunpack.c.l.b16 %v51
  %v300 = vunpack.c.l.b16 %v52
  %v301 = vunpack.c.l.b16 %v53
  %v302 = vunpack.c.l.b16 %v54
  %v303 = vunpack.c.l.b16 %v55
  %v304 = vunpack.c.l.b16 %v56
  %v305 = vunpack.c.l.b16 %v57
  %v306 = vunpack.c.l.b16 %v58
  %v307 = vunpack.c.l.b16 %v59
  %v308 = vunpack.c.l.b16 %v60
  %v309 = vunpack.c.l.b16 %v61
  %v310 = vunpack.c.l.b16 %v62
  %v311 = vunpack.c.l.b16 %v63
  %v312 = vunpack.c.l.b16 %v64
  %v313 = vunpack.c.l.b16 %v65
  %v314 = vunpack.c.l.b16 %v66
  %v315 = vunpack.c.l.b16 %v67
  %v316 = vunpack.c.l.b16 %v68
  %v317 = vunpack.c.l.b16 %v69
  %v318 = vunpack.c.l.b16 %v70
  %v319 = vunpack.c.l.b16 %v71
  %v320 = vunpack.c.l.b16 %v72
  %v321 = vunpack.c.l.b16 %v73
  %v322 = vunpack.c.l.b16 %v74
  %v323 = vunpack.c.l.b16 %v75
  %v324 = vunpack.c.l.b16 %v76
  %v325 = vunpack.c.l.b16 %v77
  %v326 = vunpack.c.l.b16 %v78
  %v327 = vunpack.c.l.b16 %v79
  %v328 = vunpack.c.l.b16 %v80
  %v329 = vunpack.c.l.b16 %v81
  %v330 = vunpack.c.l.b16 %v82
  %v331 = vunpack.c.l.b16 %v83
  %v332 = vunpack.c.l.b16 %v84
  %v333 = vunpack.c.l.b16 %v85
  %v334 = vunpack.c.l.b16 %v86
  %v335 = vunpack.c.l.b16 %v87
  %v336 = vunpack.c.l.b16 %v88
  %v337 = vunpack.c.l.b16 %v89
  %v338 = vunpack.c.l.b16 %v90
  %v339 = vunpack.c.l.b16 %v91
  %v340 = vunpack.c.l.b16 %v92
  %v341 = vunpack.c.l.b16 %v93
  %v342 = vunpack.c.l.b16 %v94
  %v343 = vunpack.c.l.b16 %v95
  %v344 = vunpack.c.l.b16 %v96
  %v345 = vunpack.c.l.b16 %v97
  %v346 = vunpack.c.l.b16 %v98
  %v347 = vunpack.c.l.b16 %v99
  %v348 = vunpack.c.l.b16 %v100
  %v349 = vunpack.c.l.b16 %v101
  %v350 = vunpack.c.l.b16 %v102
  %v351 = vunpack.c.l.b16 %v103
  %v352 = vunpack.c.l.b16 %v104
  %v353 = vunpack.c.l.b16 %v105
  %v354 = vunpack.c.l.b16 %v106
  %v355 = vunpack.c.l.b16 %v107
  %v356 = vunpack.c.l.b16 %v108
  %v357 = vunpack.c.l.b16 %v109
  %v358 = vunpack.c.l.b16 %v110
  %v359 = vunpack.c.l.b16 %v111
  %v360 = vpack.c.b16 %v297, %v296
  %v361 = vpack.c.b16 %v299, %v298
  %v362 = vpack.c.b16 %v301, %v300
  %v363 = vpack.c.b16 %v303, %v302
  %v364 = vpack.c.b16 %v305, %v304
  %v365 = vpack.c.b16 %v307, %v306
  %v366 = vpack.c.b16 %v309, %v308
  %v367 = vpack.c.b16 %v311, %v310
  %v368 = vpack.c.b16 %v313, %v312
  %v369 = vpack.c.b16 %v315, %v314
  %v370 = vpack.c.b16 %v317, %v316
  %v371 = vpack.c.b16 %v319, %v318
  %v372 = vpack.c.b16 %v321, %v320
  %v373 = vpack.c.b16 %v323, %v322
  %v374 = vpack.c.b16 %v325, %v324
  %v375 = vpack.c.b16 %v327, %v326
  %v376 = vpack.c.b16 %v329, %v328
  %v377 = vpack.c.b16 %v331, %v330
  %v378 = vpack.c.b16 %v333, %v332
  %v379 = vpack.c.b16 %v335, %v334
  %v380 = vpack.c.b16 %v337, %v336
  %v381 = vpack.c.b16 %v339, %v338
  %v382 = vpack.c.b16 %v341, %v340
  %v383 = vpack.c.b16 %v343, %v342
  %v384 = vpack.c.b16 %v345, %v344
  %v385 = vpack.c.b16 %v347, %v346
  %v386 = vpack.c.b16 %v349, %v348
  %v387 = vpack.c.b16 %v351, %v350
  %v388 = vpack.c.b16 %v353, %v352
  %v389 = vpack.c.b16 %v355, %v354
  %v390 = vpack.c.b16 %v357, %v356
  %v391 = vpack.c.b16 %v359, %v358
  %424 = vmatprep.subr.bf16.mxu0 0
  %425 = vmatpush1.bf16.msra.mxu0 %v360
  %426 = vmatprep.subr.bf16.mxu0 0
  %427 = vmatpush1.bf16.msra.mxu0 %v361
  %428 = vmatprep.subr.bf16.mxu0 0
  %429 = vmatpush1.bf16.msra.mxu0 %v362
  %430 = vmatprep.subr.bf16.mxu0 0
  %431 = vmatpush1.bf16.msra.mxu0 %v363
  %432 = vmatprep.subr.bf16.mxu0 0
  %433 = vmatpush1.bf16.msra.mxu0 %v364
  %434 = vmatprep.subr.bf16.mxu0 0
  %435 = vmatpush1.bf16.msra.mxu0 %v365
  %436 = vmatprep.subr.bf16.mxu0 0
  %437 = vmatpush1.bf16.msra.mxu0 %v366
  %438 = vmatprep.subr.bf16.mxu0 0
  %439 = vmatpush1.bf16.msra.mxu0 %v367
  %440 = vmatprep.subr.bf16.mxu0 0
  %441 = vmatpush1.bf16.msra.mxu0 %v368
  %442 = vmatprep.subr.bf16.mxu0 0
  %443 = vmatpush1.bf16.msra.mxu0 %v369
  %444 = vmatprep.subr.bf16.mxu0 0
  %445 = vmatpush1.bf16.msra.mxu0 %v370
  %446 = vmatprep.subr.bf16.mxu0 0
  %447 = vmatpush1.bf16.msra.mxu0 %v371
  %448 = vmatprep.subr.bf16.mxu0 0
  %449 = vmatpush1.bf16.msra.mxu0 %v372
  %450 = vmatprep.subr.bf16.mxu0 0
  %451 = vmatpush1.bf16.msra.mxu0 %v373
  %452 = vmatprep.subr.bf16.mxu0 0
  %453 = vmatpush1.bf16.msra.mxu0 %v374
  %454 = vmatprep.subr.bf16.mxu0 0
  %455 = vmatpush1.bf16.msra.mxu0 %v375
  %456 = vmatprep.mubr.bf16.mxu0 %v185
  %457 = vmatmul.mubr.bf16.gmra.mrb[0].mxu0 %v184
  %v458 = vpop.f32.mrb[0].mxu0
  %v459 = vadd.f32 0.0, %v458
  %v460 = vpop.f32.mrb[0].mxu0
  %v461 = vpop.f32.mrb[0].mxu0
  %v462 = vadd.f32 0.0, %v461
  %v463 = vpop.f32.mrb[0].mxu0
  %464 = vmatprep.mubr.bf16.mxu0 %v189
  %465 = vmatmul.mubr.bf16.gmra.mrb[0].mxu0 %v188
  %v466 = vpop.f32.mrb[0].mxu0
  %v467 = vadd.f32 0.0, %v466
  %v468 = vpop.f32.mrb[0].mxu0
  %v469 = vpop.f32.mrb[0].mxu0
  %v470 = vadd.f32 0.0, %v469
  %v471 = vpop.f32.mrb[0].mxu0
  %472 = vmatprep.mubr.bf16.mxu0 %v193
  %473 = vmatmul.mubr.bf16.gmra.mrb[0].mxu0 %v192
  %v474 = vpop.f32.mrb[0].mxu0
  %v475 = vadd.f32 0.0, %v474
  %v476 = vpop.f32.mrb[0].mxu0
  %v477 = vpop.f32.mrb[0].mxu0
  %v478 = vadd.f32 0.0, %v477
  %v479 = vpop.f32.mrb[0].mxu0
  %480 = vmatprep.mubr.bf16.mxu0 %v197
  %481 = vmatmul.mubr.bf16.gmra.mrb[0].mxu0 %v196
  %v482 = vpop.f32.mrb[0].mxu0
  %v483 = vadd.f32 0.0, %v482
  %v484 = vpop.f32.mrb[0].mxu0
  %v485 = vpop.f32.mrb[0].mxu0
  %v486 = vadd.f32 0.0, %v485
  %v487 = vpop.f32.mrb[0].mxu0
  %488 = vmatprep.mubr.bf16.mxu0 %v201
  %489 = vmatmul.mubr.bf16.gmra.mrb[0].mxu0 %v200
  %v490 = vpop.f32.mrb[0].mxu0
  %v491 = vadd.f32 0.0, %v490
  %v492 = vpop.f32.mrb[0].mxu0
  %v493 = vpop.f32.mrb[0].mxu0
  %v494 = vadd.f32 0.0, %v493
  %v495 = vpop.f32.mrb[0].mxu0
  %496 = vmatprep.mubr.bf16.mxu0 %v205
  %497 = vmatmul.mubr.bf16.gmra.mrb[0].mxu0 %v204
  %v498 = vpop.f32.mrb[0].mxu0
  %v499 = vadd.f32 0.0, %v498
  %v500 = vpop.f32.mrb[0].mxu0
  %v501 = vpop.f32.mrb[0].mxu0
  %v502 = vadd.f32 0.0, %v501
  %v503 = vpop.f32.mrb[0].mxu0
  %504 = vdwg.mxu0
  %505 = vmatprep.subr.bf16.mxu0 0
  %506 = vmatpush1.bf16.msra.mxu0 %v376
  %507 = vmatprep.subr.bf16.mxu0 0
  %508 = vmatpush1.bf16.msra.mxu0 %v377
  %509 = vmatprep.subr.bf16.mxu0 0
  %510 = vmatpush1.bf16.msra.mxu0 %v378
  %511 = vmatprep.subr.bf16.mxu0 0
  %512 = vmatpush1.bf16.msra.mxu0 %v379
  %513 = vmatprep.subr.bf16.mxu0 0
  %514 = vmatpush1.bf16.msra.mxu0 %v380
  %515 = vmatprep.subr.bf16.mxu0 0
  %516 = vmatpush1.bf16.msra.mxu0 %v381
  %517 = vmatprep.subr.bf16.mxu0 0
  %518 = vmatpush1.bf16.msra.mxu0 %v382
  %519 = vmatprep.subr.bf16.mxu0 0
  %520 = vmatpush1.bf16.msra.mxu0 %v383
  %521 = vmatprep.subr.bf16.mxu0 0
  %522 = vmatpush1.bf16.msra.mxu0 %v384
  %523 = vmatprep.subr.bf16.mxu0 0
  %524 = vmatpush1.bf16.msra.mxu0 %v385
  %525 = vmatprep.subr.bf16.mxu0 0
  %526 = vmatpush1.bf16.msra.mxu0 %v386
  %527 = vmatprep.subr.bf16.mxu0 0
  %528 = vmatpush1.bf16.msra.mxu0 %v387
  %529 = vmatprep.subr.bf16.mxu0 0
  %530 = vmatpush1.bf16.msra.mxu0 %v388
  %531 = vmatprep.subr.bf16.mxu0 0
  %532 = vmatpush1.bf16.msra.mxu0 %v389
  %533 = vmatprep.subr.bf16.mxu0 0
  %534 = vmatpush1.bf16.msra.mxu0 %v390
  %535 = vmatprep.subr.bf16.mxu0 0
  %536 = vmatpush1.bf16.msra.mxu0 %v391
  %537 = vmatprep.mubr.bf16.mxu0 %v187
  %538 = vmatmul.mubr.bf16.gmra.mrb[0].mxu0 %v186
  %v539 = vpop.f32.mrb[0].mxu0
  %v540 = vadd.f32 %v459, %v539
  %v541 = vpop.f32.mrb[0].mxu0
  %v542 = vpop.f32.mrb[0].mxu0
  %v543 = vadd.f32 %v462, %v542
  %v544 = vpop.f32.mrb[0].mxu0
  %545 = vmatprep.mubr.bf16.mxu0 %v191
  %546 = vmatmul.mubr.bf16.gmra.mrb[0].mxu0 %v190
  %v547 = vpop.f32.mrb[0].mxu0
  %v548 = vadd.f32 %v467, %v547
  %v549 = vpop.f32.mrb[0].mxu0
  %v550 = vpop.f32.mrb[0].mxu0
  %v551 = vadd.f32 %v470, %v550
  %v552 = vpop.f32.mrb[0].mxu0
  %553 = vmatprep.mubr.bf16.mxu0 %v195
  %554 = vmatmul.mubr.bf16.gmra.mrb[0].mxu0 %v194
  %v555 = vpop.f32.mrb[0].mxu0
  %v556 = vadd.f32 %v475, %v555
  %v557 = vpop.f32.mrb[0].mxu0
  %v558 = vpop.f32.mrb[0].mxu0
  %v559 = vadd.f32 %v478, %v558
  %v560 = vpop.f32.mrb[0].mxu0
  %561 = vmatprep.mubr.bf16.mxu0 %v199
  %562 = vmatmul.mubr.bf16.gmra.mrb[0].mxu0 %v198
  %v563 = vpop.f32.mrb[0].mxu0
  %v564 = vadd.f32 %v483, %v563
  %v565 = vpop.f32.mrb[0].mxu0
  %v566 = vpop.f32.mrb[0].mxu0
  %v567 = vadd.f32 %v486, %v566
  %v568 = vpop.f32.mrb[0].mxu0
  %569 = vmatprep.mubr.bf16.mxu0 %v203
  %570 = vmatmul.mubr.bf16.gmra.mrb[0].mxu0 %v202
  %v571 = vpop.f32.mrb[0].mxu0
  %v572 = vadd.f32 %v491, %v571
  %v573 = vpop.f32.mrb[0].mxu0
  %v574 = vpop.f32.mrb[0].mxu0
  %v575 = vadd.f32 %v494, %v574
  %v576 = vpop.f32.mrb[0].mxu0
  %577 = vmatprep.mubr.bf16.mxu0 %v207
  %578 = vmatmul.mubr.bf16.gmra.mrb[0].mxu0 %v206
  %v579 = vpop.f32.mrb[0].mxu0
  %v580 = vadd.f32 %v499, %v579
  %v581 = vpop.f32.mrb[0].mxu0
  %v582 = vpop.f32.mrb[0].mxu0
  %v583 = vadd.f32 %v502, %v582
  %v584 = vpop.f32.mrb[0].mxu0
  %585 = vdwg.mxu0
  %s586 = smul.u32 0, 96
  %s587 = scalar_lea.vmem %s4, %s586
  %588 = vst [vmem:[%s587] sm:$0xff] %v540
  %589 = vst [vmem:[%s587 + $0x8] sm:$0xff] %v543
  %590 = vst [vmem:[%s587 + $0x10] sm:$0xff] %v548
  %591 = vst [vmem:[%s587 + $0x18] sm:$0xff] %v551
  %592 = vst [vmem:[%s587 + $0x20] sm:$0xff] %v556
  %593 = vst [vmem:[%s587 + $0x28] sm:$0xff] %v559
  %594 = vst [vmem:[%s587 + $0x30] sm:$0xff] %v564
  %595 = vst [vmem:[%s587 + $0x38] sm:$0xff] %v567
  %596 = vst [vmem:[%s587 + $0x40] sm:$0xff] %v572
  %597 = vst [vmem:[%s587 + $0x48] sm:$0xff] %v575
  %598 = vst [vmem:[%s587 + $0x50] sm:$0xff] %v580
  %599 = vst [vmem:[%s587 + $0x58] sm:$0xff] %v583
  %v600 = vld [vmem:[#allocation2] sm:$0x1]
  %v601 = vadd.f32 %v540, %v543
  %v602 = vadd.f32 %v601, %v548
  %v603 = vadd.f32 %v602, %v551
  %v604 = vadd.f32 %v603, %v556
  %v605 = vadd.f32 %v604, %v559
  %v606 = vadd.f32 %v605, %v564
  %v607 = vadd.f32 %v606, %v567
  %v608 = vadd.f32 %v607, %v572
  %v609 = vadd.f32 %v608, %v575
  %v610 = vadd.f32 %v609, %v580
  %v611 = vadd.f32 %v610, %v583
  %v612 = vrot.slane %v611, 4
  %v613 = vadd.f32 %v611, %v612
  %v614 = vrot.slane %v613, 2
  %v615 = vadd.f32 %v613, %v614
  %v616 = vrot.slane %v615, 1
  %v617 = vadd.f32 %v615, %v616
  %v618 = vadd.f32 %v600, %v617
  %619 = vst [vmem:[#allocation2] sm:$0x1] %v618
  %v620 = vld [vmem:[#allocation3] sm:$0x1]
  %v621 = vmul.f32 %v540, %v540
  %v622 = vmul.f32 %v543, %v543
  %v623 = vmul.f32 %v548, %v548
  %v624 = vmul.f32 %v551, %v551
  %v625 = vmul.f32 %v556, %v556
  %v626 = vmul.f32 %v559, %v559
  %v627 = vmul.f32 %v564, %v564
  %v628 = vmul.f32 %v567, %v567
  %v629 = vmul.f32 %v572, %v572
  %v630 = vmul.f32 %v575, %v575
  %v631 = vmul.f32 %v580, %v580
  %v632 = vmul.f32 %v583, %v583
  %v633 = vadd.f32 %v621, %v622
  %v634 = vadd.f32 %v633, %v623
  %v635 = vadd.f32 %v634, %v624
  %v636 = vadd.f32 %v635, %v625
  %v637 = vadd.f32 %v636, %v626
  %v638 = vadd.f32 %v637, %v627
  %v639 = vadd.f32 %v638, %v628
  %v640 = vadd.f32 %v639, %v629
  %v641 = vadd.f32 %v640, %v630
  %v642 = vadd.f32 %v641, %v631
  %v643 = vadd.f32 %v642, %v632
  %v644 = vrot.slane %v643, 4
  %v645 = vadd.f32 %v643, %v644
  %v646 = vrot.slane %v645, 2
  %v647 = vadd.f32 %v645, %v646
  %v648 = vrot.slane %v647, 1
  %v649 = vadd.f32 %v647, %v648
  %v650 = vadd.f32 %v620, %v649
  %651 = vst [vmem:[#allocation3] sm:$0x1] %v650
  // Predicated region
  $region22: #{dueling_dqn_forward.5} parent=0 // pred_check
    %p652 = pneg %p18
  $region23: #{dueling_dqn_forward.5} parent=0 // pred_check_branch
    %654 = sbr.rel (%p652) target = $region25
  $region24: #{dueling_dqn_forward.5} parent=0 // pred_region
    %v655 = vld [vmem:[#allocation2] sm:$0x1]
    %v656 = vmul.f32 %v655, 0.010416667
    %v657 = vld [vmem:[#allocation3] sm:$0x1]
    %v658 = vmul.f32 %v657, 0.010416667
    %v659 = vmul.f32 %v656, %v656
    %v660 = vsub.f32 %v658, %v659
    %v661 = vmax.f32 %v660, 0.0
    %v662 = vld [vmem:[%s2] sm:$0x1]
    %v663 = vadd.f32 %v661, 1e-05
    %v664 = vrsqrt.pop %v663
    %v665 = vmul.f32 %v662, %v664
    %v666 = vld [vmem:[%s3] sm:$0x1]
    %v667 = vmul.f32 %v656, %v665
    %v668 = vsub.f32 %v666, %v667
    %v669 = vld [vmem:[%s4] sm:$0xff]
    %v670 = vld [vmem:[%s4 + $0x8] sm:$0xff]
    %v671 = vld [vmem:[%s4 + $0x10] sm:$0xff]
    %v672 = vld [vmem:[%s4 + $0x18] sm:$0xff]
    %v673 = vld [vmem:[%s4 + $0x20] sm:$0xff]
    %v674 = vld [vmem:[%s4 + $0x28] sm:$0xff]
    %v675 = vld [vmem:[%s4 + $0x30] sm:$0xff]
    %v676 = vld [vmem:[%s4 + $0x38] sm:$0xff]
    %v677 = vld [vmem:[%s4 + $0x40] sm:$0xff]
    %v678 = vld [vmem:[%s4 + $0x48] sm:$0xff]
    %v679 = vld [vmem:[%s4 + $0x50] sm:$0xff]
    %v680 = vld [vmem:[%s4 + $0x58] sm:$0xff]
    %v682 = vlaneseq
    %v683 = vshrl.u32 %v682, 7
    %v684 = vsub.s32 0, %v683
    %v685 = vrot.slane %v665, %v684
    %v687 = vmul.f32 %v669, %v685
    %v688 = vmul.f32 %v670, %v685
    %v689 = vmul.f32 %v671, %v685
    %v690 = vmul.f32 %v672, %v685
    %v691 = vmul.f32 %v673, %v685
    %v692 = vmul.f32 %v674, %v685
    %v693 = vmul.f32 %v675, %v685
    %v694 = vmul.f32 %v676, %v685
    %v695 = vmul.f32 %v677, %v685
    %v696 = vmul.f32 %v678, %v685
    %v697 = vmul.f32 %v679, %v685
    %v698 = vmul.f32 %v680, %v685
    %v700 = vlaneseq
    %v701 = vshrl.u32 %v700, 7
    %v702 = vsub.s32 0, %v701
    %v703 = vrot.slane %v668, %v702
    %v705 = vadd.f32 %v687, %v703
    %v706 = vadd.f32 %v688, %v703
    %v707 = vadd.f32 %v689, %v703
    %v708 = vadd.f32 %v690, %v703
    %v709 = vadd.f32 %v691, %v703
    %v710 = vadd.f32 %v692, %v703
    %v711 = vadd.f32 %v693, %v703
    %v712 = vadd.f32 %v694, %v703
    %v713 = vadd.f32 %v695, %v703
    %v714 = vadd.f32 %v696, %v703
    %v715 = vadd.f32 %v697, %v703
    %v716 = vadd.f32 %v698, %v703
    %v717 = vmax.f32 %v705, 0.0
    %v718 = vmax.f32 %v706, 0.0
    %v719 = vmax.f32 %v707, 0.0
    %v720 = vmax.f32 %v708, 0.0
    %v721 = vmax.f32 %v709, 0.0
    %v722 = vmax.f32 %v710, 0.0
    %v723 = vmax.f32 %v711, 0.0
    %v724 = vmax.f32 %v712, 0.0
    %v725 = vmax.f32 %v713, 0.0
    %v726 = vmax.f32 %v714, 0.0
    %v727 = vmax.f32 %v715, 0.0
    %v728 = vmax.f32 %v716, 0.0
    %729 = vst [vmem:[%s4] sm:$0xff] %v717
    %730 = vst [vmem:[%s4 + $0x8] sm:$0xff] %v718
    %731 = vst [vmem:[%s4 + $0x10] sm:$0xff] %v719
    %732 = vst [vmem:[%s4 + $0x18] sm:$0xff] %v720
    %733 = vst [vmem:[%s4 + $0x20] sm:$0xff] %v721
    %734 = vst [vmem:[%s4 + $0x28] sm:$0xff] %v722
    %735 = vst [vmem:[%s4 + $0x30] sm:$0xff] %v723
    %736 = vst [vmem:[%s4 + $0x38] sm:$0xff] %v724
    %737 = vst [vmem:[%s4 + $0x40] sm:$0xff] %v725
    %738 = vst [vmem:[%s4 + $0x48] sm:$0xff] %v726
    %739 = vst [vmem:[%s4 + $0x50] sm:$0xff] %v727
    %740 = vst [vmem:[%s4 + $0x58] sm:$0xff] %v728
  $region25: #{dueling_dqn_forward.5} parent=0 // pred_fallthru
    _
  // Predicated region
  $region26: #{dueling_dqn_forward.5} parent=0 // pred_check
    _
  $region27: #{dueling_dqn_forward.5} parent=0 // pred_check_branch
    %742 = sbr.rel (0) target = $region29
  $region28: #{dueling_dqn_forward.5} parent=0 // pred_region
    _
  $region29: #{dueling_dqn_forward.5} parent=0 // pred_fallthru
    _
  // Predicated region
  $region30: #{dueling_dqn_forward.5} parent=0 // pred_check
    _
  $region31: #{dueling_dqn_forward.5} parent=0 // pred_check_branch
    %744 = sbr.rel (0) target = $region33
  $region32: #{dueling_dqn_forward.5} parent=0 // pred_region
    _
  $region33: #{dueling_dqn_forward.5} parent=0 // pred_fallthru
    _

// kernel: dueling_dqn_forward.6
$region0: #{dueling_dqn_forward.6}
  #allocation0 [shape = 'u32[]', space=smem, size = 0x4, offset = 0x4, fixed_abs, tag = 'smem constant byte address 0x4 - core index']
  #allocation1 [shape = 'u32[144,128]{1,0:T(1,128)}', space=vmem, size = 0x12000, scoped, tag = 'internal scratch']
  #allocation2 [shape = 'f32[1,128]{1,0:T(1,128)}', space=vmem, size = 0x200, scoped, tag = 'scratch operand']
  #allocation3 [shape = 'f32[1,128]{1,0:T(1,128)}', space=vmem, size = 0x200, scoped, tag = 'scratch operand']
  %s0 = inlined_call_operand.vmem [shape: bf16[48,576], index: 0, kind: input, shape index: {}]
  %s1 = inlined_call_operand.vmem [shape: bf16[576,128], index: 1, kind: input, shape index: {}]
  %s2 = inlined_call_operand.vmem [shape: f32[1,128], index: 2, kind: input, shape index: {}]
  %s3 = inlined_call_operand.vmem [shape: f32[1,128], index: 3, kind: input, shape index: {}]
  %s4 = inlined_call_operand.vmem [shape: f32[48,128], index: 4, kind: output, shape index: {}]
  %s5 = sld [smem:[#allocation0]]
  $region34: #{dueling_dqn_forward.6} parent=0
    _
  %s7 = ssub.s32 1, %s5
  %s8 = scalar_select 0, %s7, %s5
  // Predicated region
  $region2: #{dueling_dqn_forward.6} parent=0 // pred_check
    _
  $region3: #{dueling_dqn_forward.6} parent=0 // pred_check_branch
    %10 = sbr.rel (0) target = $region5
  $region4: #{dueling_dqn_forward.6} parent=0 // pred_region
    _
  $region5: #{dueling_dqn_forward.6} parent=0 // pred_fallthru
    _
  // Predicated region
  $region6: #{dueling_dqn_forward.6} parent=0 // pred_check
    _
  $region7: #{dueling_dqn_forward.6} parent=0 // pred_check_branch
    %12 = sbr.rel (0) target = $region9
  $region8: #{dueling_dqn_forward.6} parent=0 // pred_region
    _
  $region9: #{dueling_dqn_forward.6} parent=0 // pred_fallthru
    _
  // Predicated region
  $region10: #{dueling_dqn_forward.6} parent=0 // pred_check
    _
  $region11: #{dueling_dqn_forward.6} parent=0 // pred_check_branch
    %14 = sbr.rel (0) target = $region13
  $region12: #{dueling_dqn_forward.6} parent=0 // pred_region
    _
  $region13: #{dueling_dqn_forward.6} parent=0 // pred_fallthru
    _
  // Predicated region
  $region14: #{dueling_dqn_forward.6} parent=0 // pred_check
    _
  $region15: #{dueling_dqn_forward.6} parent=0 // pred_check_branch
    %16 = sbr.rel (0) target = $region17
  $region16: #{dueling_dqn_forward.6} parent=0 // pred_region
    _
  $region17: #{dueling_dqn_forward.6} parent=0 // pred_fallthru
    _
  %p18 = scmp.eq.s32.totalorder 0, 0
  // Predicated region
  $region18: #{dueling_dqn_forward.6} parent=0 // pred_check
    %p19 = pneg %p18
  $region19: #{dueling_dqn_forward.6} parent=0 // pred_check_branch
    %21 = sbr.rel (%p19) target = $region21
  $region20: #{dueling_dqn_forward.6} parent=0 // pred_region
    %22 = vst [vmem:[#allocation2] sm:$0x1] 0.0
    %23 = vst [vmem:[#allocation3] sm:$0x1] 0.0
  $region21: #{dueling_dqn_forward.6} parent=0 // pred_fallthru
    _
  %v24 = vld [vmem:[%s0] sm:$0xff]
  %v25 = vld [vmem:[%s0 + $0x8] sm:$0xff]
  %v26 = vld [vmem:[%s0 + $0x10] sm:$0xf]
  %v27 = vld [vmem:[%s0 + $0x14] sm:$0xff]
  %v28 = vld [vmem:[%s0 + $0x1c] sm:$0xff]
  %v29 = vld [vmem:[%s0 + $0x24] sm:$0xf]
  %v30 = vld [vmem:[%s0 + $0x28] sm:$0xff]
  %v31 = vld [vmem:[%s0 + $0x30] sm:$0xff]
  %v32 = vld [vmem:[%s0 + $0x38] sm:$0xf]
  %v33 = vld [vmem:[%s0 + $0x3c] sm:$0xff]
  %v34 = vld [vmem:[%s0 + $0x44] sm:$0xff]
  %v35 = vld [vmem:[%s0 + $0x4c] sm:$0xf]
  %v36 = vld [vmem:[%s0 + $0x50] sm:$0xff]
  %v37 = vld [vmem:[%s0 + $0x58] sm:$0xff]
  %v38 = vld [vmem:[%s0 + $0x60] sm:$0xf]
  %v39 = vld [vmem:[%s0 + $0x64] sm:$0xff]
  %v40 = vld [vmem:[%s0 + $0x6c] sm:$0xff]
  %v41 = vld [vmem:[%s0 + $0x74] sm:$0xf]
  %v42 = vld [vmem:[%s1] sm:$0xf]
  %v43 = vld [vmem:[%s1 + $0x4] sm:$0xf]
  %v44 = vld [vmem:[%s1 + $0x8] sm:$0xf]
  %v45 = vld [vmem:[%s1 + $0xc] sm:$0xf]
  %v46 = vld [vmem:[%s1 + $0x10] sm:$0xf]
  %v47 = vld [vmem:[%s1 + $0x14] sm:$0xf]
  %v48 = vld [vmem:[%s1 + $0x18] sm:$0xf]
  %v49 = vld [vmem:[%s1 + $0x1c] sm:$0xf]
  %v50 = vld [vmem:[%s1 + $0x20] sm:$0xf]
  %v51 = vld [vmem:[%s1 + $0x24] sm:$0xf]
  %v52 = vld [vmem:[%s1 + $0x28] sm:$0xf]
  %v53 = vld [vmem:[%s1 + $0x2c] sm:$0xf]
  %v54 = vld [vmem:[%s1 + $0x30] sm:$0xf]
  %v55 = vld [vmem:[%s1 + $0x34] sm:$0xf]
  %v56 = vld [vmem:[%s1 + $0x38] sm:$0xf]
  %v57 = vld [vmem:[%s1 + $0x3c] sm:$0xf]
  %v58 = vld [vmem:[%s1 + $0x40] sm:$0xf]
  %v59 = vld [vmem:[%s1 + $0x44] sm:$0xf]
  %v60 = vld [vmem:[%s1 + $0x48] sm:$0xf]
  %v61 = vld [vmem:[%s1 + $0x4c] sm:$0xf]
  %v62 = vld [vmem:[%s1 + $0x50] sm:$0xf]
  %v63 = vld [vmem:[%s1 + $0x54] sm:$0xf]
  %v64 = vld [vmem:[%s1 + $0x58] sm:$0xf]
  %v65 = vld [vmem:[%s1 + $0x5c] sm:$0xf]
  %v66 = vld [vmem:[%s1 + $0x60] sm:$0xf]
  %v67 = vld [vmem:[%s1 + $0x64] sm:$0xf]
  %v68 = vld [vmem:[%s1 + $0x68] sm:$0xf]
  %v69 = vld [vmem:[%s1 + $0x6c] sm:$0xf]
  %v70 = vld [vmem:[%s1 + $0x70] sm:$0xf]
  %v71 = vld [vmem:[%s1 + $0x74] sm:$0xf]
  %v72 = vld [vmem:[%s1 + $0x78] sm:$0xf]
  %v73 = vld [vmem:[%s1 + $0x7c] sm:$0xf]
  %v74 = vld [vmem:[%s1 + $0x80] sm:$0xf]
  %v75 = vld [vmem:[%s1 + $0x84] sm:$0xf]
  %v76 = vld [vmem:[%s1 + $0x88] sm:$0xf]
  %v77 = vld [vmem:[%s1 + $0x8c] sm:$0xf]
  %v78 = vld [vmem:[%s1 + $0x90] sm:$0xf]
  %v79 = vld [vmem:[%s1 + $0x94] sm:$0xf]
  %v80 = vld [vmem:[%s1 + $0x98] sm:$0xf]
  %v81 = vld [vmem:[%s1 + $0x9c] sm:$0xf]
  %v82 = vld [vmem:[%s1 + $0xa0] sm:$0xf]
  %v83 = vld [vmem:[%s1 + $0xa4] sm:$0xf]
  %v84 = vld [vmem:[%s1 + $0xa8] sm:$0xf]
  %v85 = vld [vmem:[%s1 + $0xac] sm:$0xf]
  %v86 = vld [vmem:[%s1 + $0xb0] sm:$0xf]
  %v87 = vld [vmem:[%s1 + $0xb4] sm:$0xf]
  %v88 = vld [vmem:[%s1 + $0xb8] sm:$0xf]
  %v89 = vld [vmem:[%s1 + $0xbc] sm:$0xf]
  %v90 = vld [vmem:[%s1 + $0xc0] sm:$0xf]
  %v91 = vld [vmem:[%s1 + $0xc4] sm:$0xf]
  %v92 = vld [vmem:[%s1 + $0xc8] sm:$0xf]
  %v93 = vld [vmem:[%s1 + $0xcc] sm:$0xf]
  %v94 = vld [vmem:[%s1 + $0xd0] sm:$0xf]
  %v95 = vld [vmem:[%s1 + $0xd4] sm:$0xf]
  %v96 = vld [vmem:[%s1 + $0xd8] sm:$0xf]
  %v97 = vld [vmem:[%s1 + $0xdc] sm:$0xf]
  %v98 = vld [vmem:[%s1 + $0xe0] sm:$0xf]
  %v99 = vld [vmem:[%s1 + $0xe4] sm:$0xf]
  %v100 = vld [vmem:[%s1 + $0xe8] sm:$0xf]
  %v101 = vld [vmem:[%s1 + $0xec] sm:$0xf]
  %v102 = vld [vmem:[%s1 + $0xf0] sm:$0xf]
  %v103 = vld [vmem:[%s1 + $0xf4] sm:$0xf]
  %v104 = vld [vmem:[%s1 + $0xf8] sm:$0xf]
  %v105 = vld [vmem:[%s1 + $0xfc] sm:$0xf]
  %v106 = vld [vmem:[%s1 + $0x100] sm:$0xf]
  %v107 = vld [vmem:[%s1 + $0x104] sm:$0xf]
  %v108 = vld [vmem:[%s1 + $0x108] sm:$0xf]
  %v109 = vld [vmem:[%s1 + $0x10c] sm:$0xf]
  %v110 = vld [vmem:[%s1 + $0x110] sm:$0xf]
  %v111 = vld [vmem:[%s1 + $0x114] sm:$0xf]
  %v112 = vld [vmem:[%s1 + $0x118] sm:$0xf]
  %v113 = vld [vmem:[%s1 + $0x11c] sm:$0xf]
  %v132 = vunpack.c.l.b16 %v24
  %v133 = vunpack.c.h.b16 %v24
  %v134 = vunpack.c.l.b16 %v25
  %v135 = vunpack.c.h.b16 %v25
  %v136 = vunpack.c.l.b16 %v26
  %v137 = vunpack.c.l.b16 %v27
  %v138 = vunpack.c.h.b16 %v27
  %v139 = vunpack.c.l.b16 %v28
  %v140 = vunpack.c.h.b16 %v28
  %v141 = vunpack.c.l.b16 %v29
  %v142 = vunpack.c.l.b16 %v30
  %v143 = vunpack.c.h.b16 %v30
  %v144 = vunpack.c.l.b16 %v31
  %v145 = vunpack.c.h.b16 %v31
  %v146 = vunpack.c.l.b16 %v32
  %v147 = vunpack.c.l.b16 %v33
  %v148 = vunpack.c.h.b16 %v33
  %v149 = vunpack.c.l.b16 %v34
  %v150 = vunpack.c.h.b16 %v34
  %v151 = vunpack.c.l.b16 %v35
  %v152 = vunpack.c.l.b16 %v36
  %v153 = vunpack.c.h.b16 %v36
  %v154 = vunpack.c.l.b16 %v37
  %v155 = vunpack.c.h.b16 %v37
  %v156 = vunpack.c.l.b16 %v38
  %v157 = vunpack.c.l.b16 %v39
  %v158 = vunpack.c.h.b16 %v39
  %v159 = vunpack.c.l.b16 %v40
  %v160 = vunpack.c.h.b16 %v40
  %v161 = vunpack.c.l.b16 %v41
  %v162 = vpack.c.b16 %v137, %v132
  %v163 = vpack.c.b16 %v138, %v133
  %v164 = vpack.c.b16 %v139, %v134
  %v165 = vpack.c.b16 %v140, %v135
  %v166 = vpack.c.b16 %v141, %v136
  %v167 = vpack.c.b16 %v147, %v142
  %v168 = vpack.c.b16 %v148, %v143
  %v169 = vpack.c.b16 %v149, %v144
  %v170 = vpack.c.b16 %v150, %v145
  %v171 = vpack.c.b16 %v151, %v146
  %v172 = vpack.c.b16 %v157, %v152
  %v173 = vpack.c.b16 %v158, %v153
  %v174 = vpack.c.b16 %v159, %v154
  %v175 = vpack.c.b16 %v160, %v155
  %v176 = vpack.c.b16 %v161, %v156
  %v261 = vunpack.c.l.b16 %v42
  %v262 = vunpack.c.l.b16 %v43
  %v263 = vunpack.c.l.b16 %v44
  %v264 = vunpack.c.l.b16 %v45
  %v265 = vunpack.c.l.b16 %v46
  %v266 = vunpack.c.l.b16 %v47
  %v267 = vunpack.c.l.b16 %v48
  %v268 = vunpack.c.l.b16 %v49
  %v269 = vunpack.c.l.b16 %v50
  %v270 = vunpack.c.l.b16 %v51
  %v271 = vunpack.c.l.b16 %v52
  %v272 = vunpack.c.l.b16 %v53
  %v273 = vunpack.c.l.b16 %v54
  %v274 = vunpack.c.l.b16 %v55
  %v275 = vunpack.c.l.b16 %v56
  %v276 = vunpack.c.l.b16 %v57
  %v277 = vunpack.c.l.b16 %v58
  %v278 = vunpack.c.l.b16 %v59
  %v279 = vunpack.c.l.b16 %v60
  %v280 = vunpack.c.l.b16 %v61
  %v281 = vunpack.c.l.b16 %v62
  %v282 = vunpack.c.l.b16 %v63
  %v283 = vunpack.c.l.b16 %v64
  %v284 = vunpack.c.l.b16 %v65
  %v285 = vunpack.c.l.b16 %v66
  %v286 = vunpack.c.l.b16 %v67
  %v287 = vunpack.c.l.b16 %v68
  %v288 = vunpack.c.l.b16 %v69
  %v289 = vunpack.c.l.b16 %v70
  %v290 = vunpack.c.l.b16 %v71
  %v291 = vunpack.c.l.b16 %v72
  %v292 = vunpack.c.l.b16 %v73
  %v293 = vunpack.c.l.b16 %v74
  %v294 = vunpack.c.l.b16 %v75
  %v295 = vunpack.c.l.b16 %v76
  %v296 = vunpack.c.l.b16 %v77
  %v297 = vunpack.c.l.b16 %v78
  %v298 = vunpack.c.l.b16 %v79
  %v299 = vunpack.c.l.b16 %v80
  %v300 = vunpack.c.l.b16 %v81
  %v301 = vunpack.c.l.b16 %v82
  %v302 = vunpack.c.l.b16 %v83
  %v303 = vunpack.c.l.b16 %v84
  %v304 = vunpack.c.l.b16 %v85
  %v305 = vunpack.c.l.b16 %v86
  %v306 = vunpack.c.l.b16 %v87
  %v307 = vunpack.c.l.b16 %v88
  %v308 = vunpack.c.l.b16 %v89
  %v309 = vunpack.c.l.b16 %v90
  %v310 = vunpack.c.l.b16 %v91
  %v311 = vunpack.c.l.b16 %v92
  %v312 = vunpack.c.l.b16 %v93
  %v313 = vunpack.c.l.b16 %v94
  %v314 = vunpack.c.l.b16 %v95
  %v315 = vunpack.c.l.b16 %v96
  %v316 = vunpack.c.l.b16 %v97
  %v317 = vunpack.c.l.b16 %v98
  %v318 = vunpack.c.l.b16 %v99
  %v319 = vunpack.c.l.b16 %v100
  %v320 = vunpack.c.l.b16 %v101
  %v321 = vunpack.c.l.b16 %v102
  %v322 = vunpack.c.l.b16 %v103
  %v323 = vunpack.c.l.b16 %v104
  %v324 = vunpack.c.l.b16 %v105
  %v325 = vunpack.c.l.b16 %v106
  %v326 = vunpack.c.l.b16 %v107
  %v327 = vunpack.c.l.b16 %v108
  %v328 = vunpack.c.l.b16 %v109
  %v329 = vunpack.c.l.b16 %v110
  %v330 = vunpack.c.l.b16 %v111
  %v331 = vunpack.c.l.b16 %v112
  %v332 = vunpack.c.l.b16 %v113
  %v333 = vpack.c.b16 %v262, %v261
  %v334 = vpack.c.b16 %v264, %v263
  %v335 = vpack.c.b16 %v266, %v265
  %v336 = vpack.c.b16 %v268, %v267
  %v337 = vpack.c.b16 %v270, %v269
  %v338 = vpack.c.b16 %v272, %v271
  %v339 = vpack.c.b16 %v274, %v273
  %v340 = vpack.c.b16 %v276, %v275
  %v341 = vpack.c.b16 %v278, %v277
  %v342 = vpack.c.b16 %v280, %v279
  %v343 = vpack.c.b16 %v282, %v281
  %v344 = vpack.c.b16 %v284, %v283
  %v345 = vpack.c.b16 %v286, %v285
  %v346 = vpack.c.b16 %v288, %v287
  %v347 = vpack.c.b16 %v290, %v289
  %v348 = vpack.c.b16 %v292, %v291
  %v349 = vpack.c.b16 %v294, %v293
  %v350 = vpack.c.b16 %v296, %v295
  %v351 = vpack.c.b16 %v298, %v297
  %v352 = vpack.c.b16 %v300, %v299
  %v353 = vpack.c.b16 %v302, %v301
  %v354 = vpack.c.b16 %v304, %v303
  %v355 = vpack.c.b16 %v306, %v305
  %v356 = vpack.c.b16 %v308, %v307
  %v357 = vpack.c.b16 %v310, %v309
  %v358 = vpack.c.b16 %v312, %v311
  %v359 = vpack.c.b16 %v314, %v313
  %v360 = vpack.c.b16 %v316, %v315
  %v361 = vpack.c.b16 %v318, %v317
  %v362 = vpack.c.b16 %v320, %v319
  %v363 = vpack.c.b16 %v322, %v321
  %v364 = vpack.c.b16 %v324, %v323
  %v365 = vpack.c.b16 %v326, %v325
  %v366 = vpack.c.b16 %v328, %v327
  %v367 = vpack.c.b16 %v330, %v329
  %v368 = vpack.c.b16 %v332, %v331
  %vm405 = vcmask 523264
  %v407 = vsel %vm405, %v166, 0
  %v410 = vsel %vm405, %v171, 0
  %v413 = vsel %vm405, %v176, 0
  %415 = vmatprep.subr.bf16.mxu0 0
  %416 = vmatpush1.bf16.msra.mxu0 %v333
  %417 = vmatprep.subr.bf16.mxu0 0
  %418 = vmatpush1.bf16.msra.mxu0 %v334
  %419 = vmatprep.subr.bf16.mxu0 0
  %420 = vmatpush1.bf16.msra.mxu0 %v335
  %421 = vmatprep.subr.bf16.mxu0 0
  %422 = vmatpush1.bf16.msra.mxu0 %v336
  %423 = vmatprep.subr.bf16.mxu0 0
  %424 = vmatpush1.bf16.msra.mxu0 %v337
  %425 = vmatprep.subr.bf16.mxu0 0
  %426 = vmatpush1.bf16.msra.mxu0 %v338
  %427 = vmatprep.subr.bf16.mxu0 0
  %428 = vmatpush1.bf16.msra.mxu0 %v339
  %429 = vmatprep.subr.bf16.mxu0 0
  %430 = vmatpush1.bf16.msra.mxu0 %v340
  %431 = vmatprep.subr.bf16.mxu0 0
  %432 = vmatpush1.bf16.msra.mxu0 %v341
  %433 = vmatprep.subr.bf16.mxu0 0
  %434 = vmatpush1.bf16.msra.mxu0 %v342
  %435 = vmatprep.subr.bf16.mxu0 0
  %436 = vmatpush1.bf16.msra.mxu0 %v343
  %437 = vmatprep.subr.bf16.mxu0 0
  %438 = vmatpush1.bf16.msra.mxu0 %v344
  %439 = vmatprep.subr.bf16.mxu0 0
  %440 = vmatpush1.bf16.msra.mxu0 %v345
  %441 = vmatprep.subr.bf16.mxu0 0
  %442 = vmatpush1.bf16.msra.mxu0 %v346
  %443 = vmatprep.subr.bf16.mxu0 0
  %444 = vmatpush1.bf16.msra.mxu0 %v347
  %445 = vmatprep.subr.bf16.mxu0 0
  %446 = vmatpush1.bf16.msra.mxu0 %v348
  %447 = vmatprep.mubr.bf16.mxu0 %v163
  %448 = vmatmul.mubr.bf16.gmra.mrb[0].mxu0 %v162
  %v449 = vpop.f32.mrb[0].mxu0
  %v450 = vadd.f32 0.0, %v449
  %v451 = vpop.f32.mrb[0].mxu0
  %v452 = vpop.f32.mrb[0].mxu0
  %v453 = vadd.f32 0.0, %v452
  %v454 = vpop.f32.mrb[0].mxu0
  %455 = vmatprep.mubr.bf16.mxu0 %v168
  %456 = vmatmul.mubr.bf16.gmra.mrb[0].mxu0 %v167
  %v457 = vpop.f32.mrb[0].mxu0
  %v458 = vadd.f32 0.0, %v457
  %v459 = vpop.f32.mrb[0].mxu0
  %v460 = vpop.f32.mrb[0].mxu0
  %v461 = vadd.f32 0.0, %v460
  %v462 = vpop.f32.mrb[0].mxu0
  %463 = vmatprep.mubr.bf16.mxu0 %v173
  %464 = vmatmul.mubr.bf16.gmra.mrb[0].mxu0 %v172
  %v465 = vpop.f32.mrb[0].mxu0
  %v466 = vadd.f32 0.0, %v465
  %v467 = vpop.f32.mrb[0].mxu0
  %v468 = vpop.f32.mrb[0].mxu0
  %v469 = vadd.f32 0.0, %v468
  %v470 = vpop.f32.mrb[0].mxu0
  %471 = vdwg.mxu0
  %472 = vmatprep.subr.bf16.mxu0 0
  %473 = vmatpush1.bf16.msra.mxu0 %v349
  %474 = vmatprep.subr.bf16.mxu0 0
  %475 = vmatpush1.bf16.msra.mxu0 %v350
  %476 = vmatprep.subr.bf16.mxu0 0
  %477 = vmatpush1.bf16.msra.mxu0 %v351
  %478 = vmatprep.subr.bf16.mxu0 0
  %479 = vmatpush1.bf16.msra.mxu0 %v352
  %480 = vmatprep.subr.bf16.mxu0 0
  %481 = vmatpush1.bf16.msra.mxu0 %v353
  %482 = vmatprep.subr.bf16.mxu0 0
  %483 = vmatpush1.bf16.msra.mxu0 %v354
  %484 = vmatprep.subr.bf16.mxu0 0
  %485 = vmatpush1.bf16.msra.mxu0 %v355
  %486 = vmatprep.subr.bf16.mxu0 0
  %487 = vmatpush1.bf16.msra.mxu0 %v356
  %488 = vmatprep.subr.bf16.mxu0 0
  %489 = vmatpush1.bf16.msra.mxu0 %v357
  %490 = vmatprep.subr.bf16.mxu0 0
  %491 = vmatpush1.bf16.msra.mxu0 %v358
  %492 = vmatprep.subr.bf16.mxu0 0
  %493 = vmatpush1.bf16.msra.mxu0 %v359
  %494 = vmatprep.subr.bf16.mxu0 0
  %495 = vmatpush1.bf16.msra.mxu0 %v360
  %496 = vmatprep.subr.bf16.mxu0 0
  %497 = vmatpush1.bf16.msra.mxu0 %v361
  %498 = vmatprep.subr.bf16.mxu0 0
  %499 = vmatpush1.bf16.msra.mxu0 %v362
  %500 = vmatprep.subr.bf16.mxu0 0
  %501 = vmatpush1.bf16.msra.mxu0 %v363
  %502 = vmatprep.subr.bf16.mxu0 0
  %503 = vmatpush1.bf16.msra.mxu0 %v364
  %504 = vmatprep.mubr.bf16.mxu0 %v165
  %505 = vmatmul.mubr.bf16.gmra.mrb[0].mxu0 %v164
  %v506 = vpop.f32.mrb[0].mxu0
  %v507 = vadd.f32 %v450, %v506
  %v508 = vpop.f32.mrb[0].mxu0
  %v509 = vpop.f32.mrb[0].mxu0
  %v510 = vadd.f32 %v453, %v509
  %v511 = vpop.f32.mrb[0].mxu0
  %512 = vmatprep.mubr.bf16.mxu0 %v170
  %513 = vmatmul.mubr.bf16.gmra.mrb[0].mxu0 %v169
  %v514 = vpop.f32.mrb[0].mxu0
  %v515 = vadd.f32 %v458, %v514
  %v516 = vpop.f32.mrb[0].mxu0
  %v517 = vpop.f32.mrb[0].mxu0
  %v518 = vadd.f32 %v461, %v517
  %v519 = vpop.f32.mrb[0].mxu0
  %520 = vmatprep.mubr.bf16.mxu0 %v175
  %521 = vmatmul.mubr.bf16.gmra.mrb[0].mxu0 %v174
  %v522 = vpop.f32.mrb[0].mxu0
  %v523 = vadd.f32 %v466, %v522
  %v524 = vpop.f32.mrb[0].mxu0
  %v525 = vpop.f32.mrb[0].mxu0
  %v526 = vadd.f32 %v469, %v525
  %v527 = vpop.f32.mrb[0].mxu0
  %528 = vdwg.mxu0
  %529 = vmatprep.subr.bf16.mxu0 0
  %530 = vmatpush1.bf16.msra.mxu0 %v365
  %531 = vmatprep.subr.bf16.mxu0 0
  %532 = vmatpush1.bf16.msra.mxu0 %v366
  %533 = vmatprep.subr.bf16.mxu0 0
  %534 = vmatpush1.bf16.msra.mxu0 %v367
  %535 = vmatprep.subr.bf16.mxu0 0
  %536 = vmatpush1.bf16.msra.mxu0 %v368
  %537 = vmatprep.subr.bf16.mxu0 0
  %538 = vmatpush1.bf16.msra.mxu0 0
  %539 = vmatprep.subr.bf16.mxu0 0
  %540 = vmatpush1.bf16.msra.mxu0 0
  %541 = vmatprep.subr.bf16.mxu0 0
  %542 = vmatpush1.bf16.msra.mxu0 0
  %543 = vmatprep.subr.bf16.mxu0 0
  %544 = vmatpush1.bf16.msra.mxu0 0
  %545 = vmatprep.subr.bf16.mxu0 0
  %546 = vmatpush1.bf16.msra.mxu0 0
  %547 = vmatprep.subr.bf16.mxu0 0
  %548 = vmatpush1.bf16.msra.mxu0 0
  %549 = vmatprep.subr.bf16.mxu0 0
  %550 = vmatpush1.bf16.msra.mxu0 0
  %551 = vmatprep.subr.bf16.mxu0 0
  %552 = vmatpush1.bf16.msra.mxu0 0
  %553 = vmatprep.subr.bf16.mxu0 0
  %554 = vmatpush1.bf16.msra.mxu0 0
  %555 = vmatprep.subr.bf16.mxu0 0
  %556 = vmatpush1.bf16.msra.mxu0 0
  %557 = vmatprep.subr.bf16.mxu0 0
  %558 = vmatpush1.bf16.msra.mxu0 0
  %559 = vmatprep.subr.bf16.mxu0 0
  %560 = vmatpush1.bf16.msra.mxu0 0
  %561 = vmatprep.mubr.bf16.mxu0 0
  %562 = vmatmul.mubr.bf16.gmra.mrb[0].mxu0 %v407
  %v563 = vpop.f32.mrb[0].mxu0
  %v564 = vadd.f32 %v507, %v563
  %v565 = vpop.f32.mrb[0].mxu0
  %v566 = vpop.f32.mrb[0].mxu0
  %v567 = vadd.f32 %v510, %v566
  %v568 = vpop.f32.mrb[0].mxu0
  %569 = vmatprep.mubr.bf16.mxu0 0
  %570 = vmatmul.mubr.bf16.gmra.mrb[0].mxu0 %v410
  %v571 = vpop.f32.mrb[0].mxu0
  %v572 = vadd.f32 %v515, %v571
  %v573 = vpop.f32.mrb[0].mxu0
  %v574 = vpop.f32.mrb[0].mxu0
  %v575 = vadd.f32 %v518, %v574
  %v576 = vpop.f32.mrb[0].mxu0
  %577 = vmatprep.mubr.bf16.mxu0 0
  %578 = vmatmul.mubr.bf16.gmra.mrb[0].mxu0 %v413
  %v579 = vpop.f32.mrb[0].mxu0
  %v580 = vadd.f32 %v523, %v579
  %v581 = vpop.f32.mrb[0].mxu0
  %v582 = vpop.f32.mrb[0].mxu0
  %v583 = vadd.f32 %v526, %v582
  %v584 = vpop.f32.mrb[0].mxu0
  %585 = vdwg.mxu0
  %s586 = smul.u32 0, 48
  %s587 = scalar_lea.vmem %s4, %s586
  %588 = vst [vmem:[%s587] sm:$0xff] %v564
  %589 = vst [vmem:[%s587 + $0x8] sm:$0xff] %v567
  %590 = vst [vmem:[%s587 + $0x10] sm:$0xff] %v572
  %591 = vst [vmem:[%s587 + $0x18] sm:$0xff] %v575
  %592 = vst [vmem:[%s587 + $0x20] sm:$0xff] %v580
  %593 = vst [vmem:[%s587 + $0x28] sm:$0xff] %v583
  %v594 = vld [vmem:[#allocation2] sm:$0x1]
  %v595 = vadd.f32 %v564, %v567
  %v596 = vadd.f32 %v595, %v572
  %v597 = vadd.f32 %v596, %v575
  %v598 = vadd.f32 %v597, %v580
  %v599 = vadd.f32 %v598, %v583
  %v600 = vrot.slane %v599, 4
  %v601 = vadd.f32 %v599, %v600
  %v602 = vrot.slane %v601, 2
  %v603 = vadd.f32 %v601, %v602
  %v604 = vrot.slane %v603, 1
  %v605 = vadd.f32 %v603, %v604
  %v606 = vadd.f32 %v594, %v605
  %607 = vst [vmem:[#allocation2] sm:$0x1] %v606
  %v608 = vld [vmem:[#allocation3] sm:$0x1]
  %v609 = vmul.f32 %v564, %v564
  %v610 = vmul.f32 %v567, %v567
  %v611 = vmul.f32 %v572, %v572
  %v612 = vmul.f32 %v575, %v575
  %v613 = vmul.f32 %v580, %v580
  %v614 = vmul.f32 %v583, %v583
  %v615 = vadd.f32 %v609, %v610
  %v616 = vadd.f32 %v615, %v611
  %v617 = vadd.f32 %v616, %v612
  %v618 = vadd.f32 %v617, %v613
  %v619 = vadd.f32 %v618, %v614
  %v620 = vrot.slane %v619, 4
  %v621 = vadd.f32 %v619, %v620
  %v622 = vrot.slane %v621, 2
  %v623 = vadd.f32 %v621, %v622
  %v624 = vrot.slane %v623, 1
  %v625 = vadd.f32 %v623, %v624
  %v626 = vadd.f32 %v608, %v625
  %627 = vst [vmem:[#allocation3] sm:$0x1] %v626
  // Predicated region
  $region22: #{dueling_dqn_forward.6} parent=0 // pred_check
    %p628 = pneg %p18
  $region23: #{dueling_dqn_forward.6} parent=0 // pred_check_branch
    %630 = sbr.rel (%p628) target = $region25
  $region24: #{dueling_dqn_forward.6} parent=0 // pred_region
    %v631 = vld [vmem:[#allocation2] sm:$0x1]
    %v632 = vmul.f32 %v631, 0.020833334
    %v633 = vld [vmem:[#allocation3] sm:$0x1]
    %v634 = vmul.f32 %v633, 0.020833334
    %v635 = vmul.f32 %v632, %v632
    %v636 = vsub.f32 %v634, %v635
    %v637 = vmax.f32 %v636, 0.0
    %v638 = vld [vmem:[%s2] sm:$0x1]
    %v639 = vadd.f32 %v637, 1e-05
    %v640 = vrsqrt.pop %v639
    %v641 = vmul.f32 %v638, %v640
    %v642 = vld [vmem:[%s3] sm:$0x1]
    %v643 = vmul.f32 %v632, %v641
    %v644 = vsub.f32 %v642, %v643
    %v645 = vld [vmem:[%s4] sm:$0xff]
    %v646 = vld [vmem:[%s4 + $0x8] sm:$0xff]
    %v647 = vld [vmem:[%s4 + $0x10] sm:$0xff]
    %v648 = vld [vmem:[%s4 + $0x18] sm:$0xff]
    %v649 = vld [vmem:[%s4 + $0x20] sm:$0xff]
    %v650 = vld [vmem:[%s4 + $0x28] sm:$0xff]
    %v652 = vlaneseq
    %v653 = vshrl.u32 %v652, 7
    %v654 = vsub.s32 0, %v653
    %v655 = vrot.slane %v641, %v654
    %v657 = vmul.f32 %v645, %v655
    %v658 = vmul.f32 %v646, %v655
    %v659 = vmul.f32 %v647, %v655
    %v660 = vmul.f32 %v648, %v655
    %v661 = vmul.f32 %v649, %v655
    %v662 = vmul.f32 %v650, %v655
    %v664 = vlaneseq
    %v665 = vshrl.u32 %v664, 7
    %v666 = vsub.s32 0, %v665
    %v667 = vrot.slane %v644, %v666
    %v669 = vadd.f32 %v657, %v667
    %v670 = vadd.f32 %v658, %v667
    %v671 = vadd.f32 %v659, %v667
    %v672 = vadd.f32 %v660, %v667
    %v673 = vadd.f32 %v661, %v667
    %v674 = vadd.f32 %v662, %v667
    %v675 = vmax.f32 %v669, 0.0
    %v676 = vmax.f32 %v670, 0.0
    %v677 = vmax.f32 %v671, 0.0
    %v678 = vmax.f32 %v672, 0.0
    %v679 = vmax.f32 %v673, 0.0
    %v680 = vmax.f32 %v674, 0.0
    %681 = vst [vmem:[%s4] sm:$0xff] %v675
    %682 = vst [vmem:[%s4 + $0x8] sm:$0xff] %v676
    %683 = vst [vmem:[%s4 + $0x10] sm:$0xff] %v677
    %684 = vst [vmem:[%s4 + $0x18] sm:$0xff] %v678
    %685 = vst [vmem:[%s4 + $0x20] sm:$0xff] %v679
    %686 = vst [vmem:[%s4 + $0x28] sm:$0xff] %v680
  $region25: #{dueling_dqn_forward.6} parent=0 // pred_fallthru
    _
  // Predicated region
  $region26: #{dueling_dqn_forward.6} parent=0 // pred_check
    _
  $region27: #{dueling_dqn_forward.6} parent=0 // pred_check_branch
    %688 = sbr.rel (0) target = $region29
  $region28: #{dueling_dqn_forward.6} parent=0 // pred_region
    _
  $region29: #{dueling_dqn_forward.6} parent=0 // pred_fallthru
    _
  // Predicated region
  $region30: #{dueling_dqn_forward.6} parent=0 // pred_check
    _
  $region31: #{dueling_dqn_forward.6} parent=0 // pred_check_branch
    %690 = sbr.rel (0) target = $region33
  $region32: #{dueling_dqn_forward.6} parent=0 // pred_region
    _
  $region33: #{dueling_dqn_forward.6} parent=0 // pred_fallthru
    _

// kernel: dueling_dqn_forward.7
$region0: #{dueling_dqn_forward.7}
  #allocation0 [shape = 'u32[]', space=smem, size = 0x4, offset = 0x4, fixed_abs, tag = 'smem constant byte address 0x4 - core index']
  #allocation1 [shape = 'u32[144,128]{1,0:T(1,128)}', space=vmem, size = 0x12000, scoped, tag = 'internal scratch']
  %s0 = inlined_call_operand.vmem [shape: bf16[2,3072], index: 0, kind: input, shape index: {}]
  %s1 = inlined_call_operand.vmem [shape: bf16[3072,256], index: 1, kind: input, shape index: {}]
  %s2 = inlined_call_operand.vmem [shape: f32[1,256], index: 2, kind: input, shape index: {}]
  %s3 = inlined_call_operand.vmem [shape: bf16[256,128], index: 3, kind: input, shape index: {}]
  %s4 = inlined_call_operand.vmem [shape: f32[1,128], index: 4, kind: input, shape index: {}]
  %s5 = inlined_call_operand.hbm [shape: f32[2,6], index: 5, kind: output, shape index: {}]
  %s6 = sld [smem:[#allocation0]]
  $region30: #{dueling_dqn_forward.7} parent=0
    _
  %s8 = ssub.s32 1, %s6
  %s9 = scalar_select 0, %s8, %s6
  $region1: #{dueling_dqn_forward.7} parent=0
    #allocation2 [shape = 'u8[1024]{0}', space=vmem, size = 0x400, scoped, tag = 'output window, operand 0, single buffered']
    #allocation3 [shape = 's32[1]{0}', space=sflag, size = 0x4, scoped, tag = 'scoped memory for dueling_dqn_forward.7']
    %10 = vsyncpa [#allocation3], 0
    // Predicated region
    $region2: #{dueling_dqn_forward.7} parent=1 // pred_check
      _
    $region3: #{dueling_dqn_forward.7} parent=1 // pred_check_branch
      %12 = sbr.rel (0) target = $region5
    $region4: #{dueling_dqn_forward.7} parent=1 // pred_region
      _
    $region5: #{dueling_dqn_forward.7} parent=1 // pred_fallthru
      _
    // Predicated region
    $region6: #{dueling_dqn_forward.7} parent=1 // pred_check
      _
    $region7: #{dueling_dqn_forward.7} parent=1 // pred_check_branch
      %14 = sbr.rel (0) target = $region9
    $region8: #{dueling_dqn_forward.7} parent=1 // pred_region
      _
    $region9: #{dueling_dqn_forward.7} parent=1 // pred_fallthru
      _
    // Predicated region
    $region10: #{dueling_dqn_forward.7} parent=1 // pred_check
      _
    $region11: #{dueling_dqn_forward.7} parent=1 // pred_check_branch
      %16 = sbr.rel (0) target = $region13
    $region12: #{dueling_dqn_forward.7} parent=1 // pred_region
      _
    $region13: #{dueling_dqn_forward.7} parent=1 // pred_fallthru
      _
    // Predicated region
    $region14: #{dueling_dqn_forward.7} parent=1 // pred_check
      _
    $region15: #{dueling_dqn_forward.7} parent=1 // pred_check_branch
      %18 = sbr.rel (0) target = $region17
    $region16: #{dueling_dqn_forward.7} parent=1 // pred_region
      _
    $region17: #{dueling_dqn_forward.7} parent=1 // pred_fallthru
      _
    // Predicated region
    $region18: #{dueling_dqn_forward.7} parent=1 // pred_check
      _
    $region19: #{dueling_dqn_forward.7} parent=1 // pred_check_branch
      %20 = sbr.rel (0) target = $region21
    $region20: #{dueling_dqn_forward.7} parent=1 // pred_region
      _
    $region21: #{dueling_dqn_forward.7} parent=1 // pred_fallthru
      _
    %v22 = vld [vmem:[%s0] sm:$0xff]
    %v23 = vld [vmem:[%s0 + $0x8] sm:$0xff]
    %v24 = vld [vmem:[%s0 + $0x10] sm:$0xff]
    %v25 = vld [vmem:[%s1] sm:$0xff]
    %v26 = vld [vmem:[%s1 + $0x8] sm:$0xff]
    %v27 = vld [vmem:[%s1 + $0x10] sm:$0xff]
    %v28 = vld [vmem:[%s1 + $0x18] sm:$0xff]
    %v29 = vld [vmem:[%s1 + $0x20] sm:$0xff]
    %v30 = vld [vmem:[%s1 + $0x28] sm:$0xff]
    %v31 = vld [vmem:[%s1 + $0x30] sm:$0xff]
    %v32 = vld [vmem:[%s1 + $0x38] sm:$0xff]
    %v33 = vld [vmem:[%s1 + $0x40] sm:$0xff]
    %v34 = vld [vmem:[%s1 + $0x48] sm:$0xff]
    %v35 = vld [vmem:[%s1 + $0x50] sm:$0xff]
    %v36 = vld [vmem:[%s1 + $0x58] sm:$0xff]
    %v37 = vld [vmem:[%s1 + $0x60] sm:$0xff]
    %v38 = vld [vmem:[%s1 + $0x68] sm:$0xff]
    %v39 = vld [vmem:[%s1 + $0x70] sm:$0xff]
    %v40 = vld [vmem:[%s1 + $0x78] sm:$0xff]
    %v41 = vld [vmem:[%s1 + $0x80] sm:$0xff]
    %v42 = vld [vmem:[%s1 + $0x88] sm:$0xff]
    %v43 = vld [vmem:[%s1 + $0x90] sm:$0xff]
    %v44 = vld [vmem:[%s1 + $0x98] sm:$0xff]
    %v45 = vld [vmem:[%s1 + $0xa0] sm:$0xff]
    %v46 = vld [vmem:[%s1 + $0xa8] sm:$0xff]
    %v47 = vld [vmem:[%s1 + $0xb0] sm:$0xff]
    %v48 = vld [vmem:[%s1 + $0xb8] sm:$0xff]
    %v49 = vld [vmem:[%s1 + $0xc0] sm:$0xff]
    %v50 = vld [vmem:[%s1 + $0xc8] sm:$0xff]
    %v51 = vld [vmem:[%s1 + $0xd0] sm:$0xff]
    %v52 = vld [vmem:[%s1 + $0xd8] sm:$0xff]
    %v53 = vld [vmem:[%s1 + $0xe0] sm:$0xff]
    %v54 = vld [vmem:[%s1 + $0xe8] sm:$0xff]
    %v55 = vld [vmem:[%s1 + $0xf0] sm:$0xff]
    %v56 = vld [vmem:[%s1 + $0xf8] sm:$0xff]
    %v57 = vld [vmem:[%s1 + $0x100] sm:$0xff]
    %v58 = vld [vmem:[%s1 + $0x108] sm:$0xff]
    %v59 = vld [vmem:[%s1 + $0x110] sm:$0xff]
    %v60 = vld [vmem:[%s1 + $0x118] sm:$0xff]
    %v61 = vld [vmem:[%s1 + $0x120] sm:$0xff]
    %v62 = vld [vmem:[%s1 + $0x128] sm:$0xff]
    %v63 = vld [vmem:[%s1 + $0x130] sm:$0xff]
    %v64 = vld [vmem:[%s1 + $0x138] sm:$0xff]
    %v65 = vld [vmem:[%s1 + $0x140] sm:$0xff]
    %v66 = vld [vmem:[%s1 + $0x148] sm:$0xff]
    %v67 = vld [vmem:[%s1 + $0x150] sm:$0xff]
    %v68 = vld [vmem:[%s1 + $0x158] sm:$0xff]
    %v69 = vld [vmem:[%s1 + $0x160] sm:$0xff]
    %v70 = vld [vmem:[%s1 + $0x168] sm:$0xff]
    %v71 = vld [vmem:[%s1 + $0x170] sm:$0xff]
    %v72 = vld [vmem:[%s1 + $0x178] sm:$0xff]
    %v73 = vld [vmem:[%s1 + $0x180] sm:$0xff]
    %v74 = vld [vmem:[%s1 + $0x188] sm:$0xff]
    %v75 = vld [vmem:[%s1 + $0x190] sm:$0xff]
    %v76 = vld [vmem:[%s1 + $0x198] sm:$0xff]
    %v77 = vld [vmem:[%s1 + $0x1a0] sm:$0xff]
    %v78 = vld [vmem:[%s1 + $0x1a8] sm:$0xff]
    %v79 = vld [vmem:[%s1 + $0x1b0] sm:$0xff]
    %v80 = vld [vmem:[%s1 + $0x1b8] sm:$0xff]
    %v81 = vld [vmem:[%s1 + $0x1c0] sm:$0xff]
    %v82 = vld [vmem:[%s1 + $0x1c8] sm:$0xff]
    %v83 = vld [vmem:[%s1 + $0x1d0] sm:$0xff]
    %v84 = vld [vmem:[%s1 + $0x1d8] sm:$0xff]
    %v85 = vld [vmem:[%s1 + $0x1e0] sm:$0xff]
    %v86 = vld [vmem:[%s1 + $0x1e8] sm:$0xff]
    %v87 = vld [vmem:[%s1 + $0x1f0] sm:$0xff]
    %v88 = vld [vmem:[%s1 + $0x1f8] sm:$0xff]
    %v89 = vld [vmem:[%s1 + $0x200] sm:$0xff]
    %v90 = vld [vmem:[%s1 + $0x208] sm:$0xff]
    %v91 = vld [vmem:[%s1 + $0x210] sm:$0xff]
    %v92 = vld [vmem:[%s1 + $0x218] sm:$0xff]
    %v93 = vld [vmem:[%s1 + $0x220] sm:$0xff]
    %v94 = vld [vmem:[%s1 + $0x228] sm:$0xff]
    %v95 = vld [vmem:[%s1 + $0x230] sm:$0xff]
    %v96 = vld [vmem:[%s1 + $0x238] sm:$0xff]
    %v97 = vld [vmem:[%s1 + $0x240] sm:$0xff]
    %v98 = vld [vmem:[%s1 + $0x248] sm:$0xff]
    %v99 = vld [vmem:[%s1 + $0x250] sm:$0xff]
    %v100 = vld [vmem:[%s1 + $0x258] sm:$0xff]
    %v101 = vld [vmem:[%s1 + $0x260] sm:$0xff]
    %v102 = vld [vmem:[%s1 + $0x268] sm:$0xff]
    %v103 = vld [vmem:[%s1 + $0x270] sm:$0xff]
    %v104 = vld [vmem:[%s1 + $0x278] sm:$0xff]
    %v105 = vld [vmem:[%s1 + $0x280] sm:$0xff]
    %v106 = vld [vmem:[%s1 + $0x288] sm:$0xff]
    %v107 = vld [vmem:[%s1 + $0x290] sm:$0xff]
    %v108 = vld [vmem:[%s1 + $0x298] sm:$0xff]
    %v109 = vld [vmem:[%s1 + $0x2a0] sm:$0xff]
    %v110 = vld [vmem:[%s1 + $0x2a8] sm:$0xff]
    %v111 = vld [vmem:[%s1 + $0x2b0] sm:$0xff]
    %v112 = vld [vmem:[%s1 + $0x2b8] sm:$0xff]
    %v113 = vld [vmem:[%s1 + $0x2c0] sm:$0xff]
    %v114 = vld [vmem:[%s1 + $0x2c8] sm:$0xff]
    %v115 = vld [vmem:[%s1 + $0x2d0] sm:$0xff]
    %v116 = vld [vmem:[%s1 + $0x2d8] sm:$0xff]
    %v117 = vld [vmem:[%s1 + $0x2e0] sm:$0xff]
    %v118 = vld [vmem:[%s1 + $0x2e8] sm:$0xff]
    %v119 = vld [vmem:[%s1 + $0x2f0] sm:$0xff]
    %v120 = vld [vmem:[%s1 + $0x2f8] sm:$0xff]
    %v121 = vld [vmem:[%s1 + $0x300] sm:$0xff]
    %v122 = vld [vmem:[%s1 + $0x308] sm:$0xff]
    %v123 = vld [vmem:[%s1 + $0x310] sm:$0xff]
    %v124 = vld [vmem:[%s1 + $0x318] sm:$0xff]
    %v125 = vld [vmem:[%s1 + $0x320] sm:$0xff]
    %v126 = vld [vmem:[%s1 + $0x328] sm:$0xff]
    %v127 = vld [vmem:[%s1 + $0x330] sm:$0xff]
    %v128 = vld [vmem:[%s1 + $0x338] sm:$0xff]
    %v129 = vld [vmem:[%s1 + $0x340] sm:$0xff]
    %v130 = vld [vmem:[%s1 + $0x348] sm:$0xff]
    %v131 = vld [vmem:[%s1 + $0x350] sm:$0xff]
    %v132 = vld [vmem:[%s1 + $0x358] sm:$0xff]
    %v133 = vld [vmem:[%s1 + $0x360] sm:$0xff]
    %v134 = vld [vmem:[%s1 + $0x368] sm:$0xff]
    %v135 = vld [vmem:[%s1 + $0x370] sm:$0xff]
    %v136 = vld [vmem:[%s1 + $0x378] sm:$0xff]
    %v137 = vld [vmem:[%s1 + $0x380] sm:$0xff]
    %v138 = vld [vmem:[%s1 + $0x388] sm:$0xff]
    %v139 = vld [vmem:[%s1 + $0x390] sm:$0xff]
    %v140 = vld [vmem:[%s1 + $0x398] sm:$0xff]
    %v141 = vld [vmem:[%s1 + $0x3a0] sm:$0xff]
    %v142 = vld [vmem:[%s1 + $0x3a8] sm:$0xff]
    %v143 = vld [vmem:[%s1 + $0x3b0] sm:$0xff]
    %v144 = vld [vmem:[%s1 + $0x3b8] sm:$0xff]
    %v145 = vld [vmem:[%s1 + $0x3c0] sm:$0xff]
    %v146 = vld [vmem:[%s1 + $0x3c8] sm:$0xff]
    %v147 = vld [vmem:[%s1 + $0x3d0] sm:$0xff]
    %v148 = vld [vmem:[%s1 + $0x3d8] sm:$0xff]
    %v149 = vld [vmem:[%s1 + $0x3e0] sm:$0xff]
    %v150 = vld [vmem:[%s1 + $0x3e8] sm:$0xff]
    %v151 = vld [vmem:[%s1 + $0x3f0] sm:$0xff]
    %v152 = vld [vmem:[%s1 + $0x3f8] sm:$0xff]
    %v153 = vld [vmem:[%s1 + $0x400] sm:$0xff]
    %v154 = vld [vmem:[%s1 + $0x408] sm:$0xff]
    %v155 = vld [vmem:[%s1 + $0x410] sm:$0xff]
    %v156 = vld [vmem:[%s1 + $0x418] sm:$0xff]
    %v157 = vld [vmem:[%s1 + $0x420] sm:$0xff]
    %v158 = vld [vmem:[%s1 + $0x428] sm:$0xff]
    %v159 = vld [vmem:[%s1 + $0x430] sm:$0xff]
    %v160 = vld [vmem:[%s1 + $0x438] sm:$0xff]
    %v161 = vld [vmem:[%s1 + $0x440] sm:$0xff]
    %v162 = vld [vmem:[%s1 + $0x448] sm:$0xff]
    %v163 = vld [vmem:[%s1 + $0x450] sm:$0xff]
    %v164 = vld [vmem:[%s1 + $0x458] sm:$0xff]
    %v165 = vld [vmem:[%s1 + $0x460] sm:$0xff]
    %v166 = vld [vmem:[%s1 + $0x468] sm:$0xff]
    %v167 = vld [vmem:[%s1 + $0x470] sm:$0xff]
    %v168 = vld [vmem:[%s1 + $0x478] sm:$0xff]
    %v169 = vld [vmem:[%s1 + $0x480] sm:$0xff]
    %v170 = vld [vmem:[%s1 + $0x488] sm:$0xff]
    %v171 = vld [vmem:[%s1 + $0x490] sm:$0xff]
    %v172 = vld [vmem:[%s1 + $0x498] sm:$0xff]
    %v173 = vld [vmem:[%s1 + $0x4a0] sm:$0xff]
    %v174 = vld [vmem:[%s1 + $0x4a8] sm:$0xff]
    %v175 = vld [vmem:[%s1 + $0x4b0] sm:$0xff]
    %v176 = vld [vmem:[%s1 + $0x4b8] sm:$0xff]
    %v177 = vld [vmem:[%s1 + $0x4c0] sm:$0xff]
    %v178 = vld [vmem:[%s1 + $0x4c8] sm:$0xff]
    %v179 = vld [vmem:[%s1 + $0x4d0] sm:$0xff]
    %v180 = vld [vmem:[%s1 + $0x4d8] sm:$0xff]
    %v181 = vld [vmem:[%s1 + $0x4e0] sm:$0xff]
    %v182 = vld [vmem:[%s1 + $0x4e8] sm:$0xff]
    %v183 = vld [vmem:[%s1 + $0x4f0] sm:$0xff]
    %v184 = vld [vmem:[%s1 + $0x4f8] sm:$0xff]
    %v185 = vld [vmem:[%s1 + $0x500] sm:$0xff]
    %v186 = vld [vmem:[%s1 + $0x508] sm:$0xff]
    %v187 = vld [vmem:[%s1 + $0x510] sm:$0xff]
    %v188 = vld [vmem:[%s1 + $0x518] sm:$0xff]
    %v189 = vld [vmem:[%s1 + $0x520] sm:$0xff]
    %v190 = vld [vmem:[%s1 + $0x528] sm:$0xff]
    %v191 = vld [vmem:[%s1 + $0x530] sm:$0xff]
    %v192 = vld [vmem:[%s1 + $0x538] sm:$0xff]
    %v193 = vld [vmem:[%s1 + $0x540] sm:$0xff]
    %v194 = vld [vmem:[%s1 + $0x548] sm:$0xff]
    %v195 = vld [vmem:[%s1 + $0x550] sm:$0xff]
    %v196 = vld [vmem:[%s1 + $0x558] sm:$0xff]
    %v197 = vld [vmem:[%s1 + $0x560] sm:$0xff]
    %v198 = vld [vmem:[%s1 + $0x568] sm:$0xff]
    %v199 = vld [vmem:[%s1 + $0x570] sm:$0xff]
    %v200 = vld [vmem:[%s1 + $0x578] sm:$0xff]
    %v201 = vld [vmem:[%s1 + $0x580] sm:$0xff]
    %v202 = vld [vmem:[%s1 + $0x588] sm:$0xff]
    %v203 = vld [vmem:[%s1 + $0x590] sm:$0xff]
    %v204 = vld [vmem:[%s1 + $0x598] sm:$0xff]
    %v205 = vld [vmem:[%s1 + $0x5a0] sm:$0xff]
    %v206 = vld [vmem:[%s1 + $0x5a8] sm:$0xff]
    %v207 = vld [vmem:[%s1 + $0x5b0] sm:$0xff]
    %v208 = vld [vmem:[%s1 + $0x5b8] sm:$0xff]
    %v209 = vld [vmem:[%s1 + $0x5c0] sm:$0xff]
    %v210 = vld [vmem:[%s1 + $0x5c8] sm:$0xff]
    %v211 = vld [vmem:[%s1 + $0x5d0] sm:$0xff]
    %v212 = vld [vmem:[%s1 + $0x5d8] sm:$0xff]
    %v213 = vld [vmem:[%s1 + $0x5e0] sm:$0xff]
    %v214 = vld [vmem:[%s1 + $0x5e8] sm:$0xff]
    %v215 = vld [vmem:[%s1 + $0x5f0] sm:$0xff]
    %v216 = vld [vmem:[%s1 + $0x5f8] sm:$0xff]
    %v217 = vld [vmem:[%s1 + $0x600] sm:$0xff]
    %v218 = vld [vmem:[%s1 + $0x608] sm:$0xff]
    %v219 = vld [vmem:[%s1 + $0x610] sm:$0xff]
    %v220 = vld [vmem:[%s1 + $0x618] sm:$0xff]
    %v221 = vld [vmem:[%s1 + $0x620] sm:$0xff]
    %v222 = vld [vmem:[%s1 + $0x628] sm:$0xff]
    %v223 = vld [vmem:[%s1 + $0x630] sm:$0xff]
    %v224 = vld [vmem:[%s1 + $0x638] sm:$0xff]
    %v225 = vld [vmem:[%s1 + $0x640] sm:$0xff]
    %v226 = vld [vmem:[%s1 + $0x648] sm:$0xff]
    %v227 = vld [vmem:[%s1 + $0x650] sm:$0xff]
    %v228 = vld [vmem:[%s1 + $0x658] sm:$0xff]
    %v229 = vld [vmem:[%s1 + $0x660] sm:$0xff]
    %v230 = vld [vmem:[%s1 + $0x668] sm:$0xff]
    %v231 = vld [vmem:[%s1 + $0x670] sm:$0xff]
    %v232 = vld [vmem:[%s1 + $0x678] sm:$0xff]
    %v233 = vld [vmem:[%s1 + $0x680] sm:$0xff]
    %v234 = vld [vmem:[%s1 + $0x688] sm:$0xff]
    %v235 = vld [vmem:[%s1 + $0x690] sm:$0xff]
    %v236 = vld [vmem:[%s1 + $0x698] sm:$0xff]
    %v237 = vld [vmem:[%s1 + $0x6a0] sm:$0xff]
    %v238 = vld [vmem:[%s1 + $0x6a8] sm:$0xff]
    %v239 = vld [vmem:[%s1 + $0x6b0] sm:$0xff]
    %v240 = vld [vmem:[%s1 + $0x6b8] sm:$0xff]
    %v241 = vld [vmem:[%s1 + $0x6c0] sm:$0xff]
    %v242 = vld [vmem:[%s1 + $0x6c8] sm:$0xff]
    %v243 = vld [vmem:[%s1 + $0x6d0] sm:$0xff]
    %v244 = vld [vmem:[%s1 + $0x6d8] sm:$0xff]
    %v245 = vld [vmem:[%s1 + $0x6e0] sm:$0xff]
    %v246 = vld [vmem:[%s1 + $0x6e8] sm:$0xff]
    %v247 = vld [vmem:[%s1 + $0x6f0] sm:$0xff]
    %v248 = vld [vmem:[%s1 + $0x6f8] sm:$0xff]
    %v249 = vld [vmem:[%s1 + $0x700] sm:$0xff]
    %v250 = vld [vmem:[%s1 + $0x708] sm:$0xff]
    %v251 = vld [vmem:[%s1 + $0x710] sm:$0xff]
    %v252 = vld [vmem:[%s1 + $0x718] sm:$0xff]
    %v253 = vld [vmem:[%s1 + $0x720] sm:$0xff]
    %v254 = vld [vmem:[%s1 + $0x728] sm:$0xff]
    %v255 = vld [vmem:[%s1 + $0x730] sm:$0xff]
    %v256 = vld [vmem:[%s1 + $0x738] sm:$0xff]
    %v257 = vld [vmem:[%s1 + $0x740] sm:$0xff]
    %v258 = vld [vmem:[%s1 + $0x748] sm:$0xff]
    %v259 = vld [vmem:[%s1 + $0x750] sm:$0xff]
    %v260 = vld [vmem:[%s1 + $0x758] sm:$0xff]
    %v261 = vld [vmem:[%s1 + $0x760] sm:$0xff]
    %v262 = vld [vmem:[%s1 + $0x768] sm:$0xff]
    %v263 = vld [vmem:[%s1 + $0x770] sm:$0xff]
    %v264 = vld [vmem:[%s1 + $0x778] sm:$0xff]
    %v265 = vld [vmem:[%s1 + $0x780] sm:$0xff]
    %v266 = vld [vmem:[%s1 + $0x788] sm:$0xff]
    %v267 = vld [vmem:[%s1 + $0x790] sm:$0xff]
    %v268 = vld [vmem:[%s1 + $0x798] sm:$0xff]
    %v269 = vld [vmem:[%s1 + $0x7a0] sm:$0xff]
    %v270 = vld [vmem:[%s1 + $0x7a8] sm:$0xff]
    %v271 = vld [vmem:[%s1 + $0x7b0] sm:$0xff]
    %v272 = vld [vmem:[%s1 + $0x7b8] sm:$0xff]
    %v273 = vld [vmem:[%s1 + $0x7c0] sm:$0xff]
    %v274 = vld [vmem:[%s1 + $0x7c8] sm:$0xff]
    %v275 = vld [vmem:[%s1 + $0x7d0] sm:$0xff]
    %v276 = vld [vmem:[%s1 + $0x7d8] sm:$0xff]
    %v277 = vld [vmem:[%s1 + $0x7e0] sm:$0xff]
    %v278 = vld [vmem:[%s1 + $0x7e8] sm:$0xff]
    %v279 = vld [vmem:[%s1 + $0x7f0] sm:$0xff]
    %v280 = vld [vmem:[%s1 + $0x7f8] sm:$0xff]
    %v281 = vld [vmem:[%s1 + $0x800] sm:$0xff]
    %v282 = vld [vmem:[%s1 + $0x808] sm:$0xff]
    %v283 = vld [vmem:[%s1 + $0x810] sm:$0xff]
    %v284 = vld [vmem:[%s1 + $0x818] sm:$0xff]
    %v285 = vld [vmem:[%s1 + $0x820] sm:$0xff]
    %v286 = vld [vmem:[%s1 + $0x828] sm:$0xff]
    %v287 = vld [vmem:[%s1 + $0x830] sm:$0xff]
    %v288 = vld [vmem:[%s1 + $0x838] sm:$0xff]
    %v289 = vld [vmem:[%s1 + $0x840] sm:$0xff]
    %v290 = vld [vmem:[%s1 + $0x848] sm:$0xff]
    %v291 = vld [vmem:[%s1 + $0x850] sm:$0xff]
    %v292 = vld [vmem:[%s1 + $0x858] sm:$0xff]
    %v293 = vld [vmem:[%s1 + $0x860] sm:$0xff]
    %v294 = vld [vmem:[%s1 + $0x868] sm:$0xff]
    %v295 = vld [vmem:[%s1 + $0x870] sm:$0xff]
    %v296 = vld [vmem:[%s1 + $0x878] sm:$0xff]
    %v297 = vld [vmem:[%s1 + $0x880] sm:$0xff]
    %v298 = vld [vmem:[%s1 + $0x888] sm:$0xff]
    %v299 = vld [vmem:[%s1 + $0x890] sm:$0xff]
    %v300 = vld [vmem:[%s1 + $0x898] sm:$0xff]
    %v301 = vld [vmem:[%s1 + $0x8a0] sm:$0xff]
    %v302 = vld [vmem:[%s1 + $0x8a8] sm:$0xff]
    %v303 = vld [vmem:[%s1 + $0x8b0] sm:$0xff]
    %v304 = vld [vmem:[%s1 + $0x8b8] sm:$0xff]
    %v305 = vld [vmem:[%s1 + $0x8c0] sm:$0xff]
    %v306 = vld [vmem:[%s1 + $0x8c8] sm:$0xff]
    %v307 = vld [vmem:[%s1 + $0x8d0] sm:$0xff]
    %v308 = vld [vmem:[%s1 + $0x8d8] sm:$0xff]
    %v309 = vld [vmem:[%s1 + $0x8e0] sm:$0xff]
    %v310 = vld [vmem:[%s1 + $0x8e8] sm:$0xff]
    %v311 = vld [vmem:[%s1 + $0x8f0] sm:$0xff]
    %v312 = vld [vmem:[%s1 + $0x8f8] sm:$0xff]
    %v313 = vld [vmem:[%s1 + $0x900] sm:$0xff]
    %v314 = vld [vmem:[%s1 + $0x908] sm:$0xff]
    %v315 = vld [vmem:[%s1 + $0x910] sm:$0xff]
    %v316 = vld [vmem:[%s1 + $0x918] sm:$0xff]
    %v317 = vld [vmem:[%s1 + $0x920] sm:$0xff]
    %v318 = vld [vmem:[%s1 + $0x928] sm:$0xff]
    %v319 = vld [vmem:[%s1 + $0x930] sm:$0xff]
    %v320 = vld [vmem:[%s1 + $0x938] sm:$0xff]
    %v321 = vld [vmem:[%s1 + $0x940] sm:$0xff]
    %v322 = vld [vmem:[%s1 + $0x948] sm:$0xff]
    %v323 = vld [vmem:[%s1 + $0x950] sm:$0xff]
    %v324 = vld [vmem:[%s1 + $0x958] sm:$0xff]
    %v325 = vld [vmem:[%s1 + $0x960] sm:$0xff]
    %v326 = vld [vmem:[%s1 + $0x968] sm:$0xff]
    %v327 = vld [vmem:[%s1 + $0x970] sm:$0xff]
    %v328 = vld [vmem:[%s1 + $0x978] sm:$0xff]
    %v329 = vld [vmem:[%s1 + $0x980] sm:$0xff]
    %v330 = vld [vmem:[%s1 + $0x988] sm:$0xff]
    %v331 = vld [vmem:[%s1 + $0x990] sm:$0xff]
    %v332 = vld [vmem:[%s1 + $0x998] sm:$0xff]
    %v333 = vld [vmem:[%s1 + $0x9a0] sm:$0xff]
    %v334 = vld [vmem:[%s1 + $0x9a8] sm:$0xff]
    %v335 = vld [vmem:[%s1 + $0x9b0] sm:$0xff]
    %v336 = vld [vmem:[%s1 + $0x9b8] sm:$0xff]
    %v337 = vld [vmem:[%s1 + $0x9c0] sm:$0xff]
    %v338 = vld [vmem:[%s1 + $0x9c8] sm:$0xff]
    %v339 = vld [vmem:[%s1 + $0x9d0] sm:$0xff]
    %v340 = vld [vmem:[%s1 + $0x9d8] sm:$0xff]
    %v341 = vld [vmem:[%s1 + $0x9e0] sm:$0xff]
    %v342 = vld [vmem:[%s1 + $0x9e8] sm:$0xff]
    %v343 = vld [vmem:[%s1 + $0x9f0] sm:$0xff]
    %v344 = vld [vmem:[%s1 + $0x9f8] sm:$0xff]
    %v345 = vld [vmem:[%s1 + $0xa00] sm:$0xff]
    %v346 = vld [vmem:[%s1 + $0xa08] sm:$0xff]
    %v347 = vld [vmem:[%s1 + $0xa10] sm:$0xff]
    %v348 = vld [vmem:[%s1 + $0xa18] sm:$0xff]
    %v349 = vld [vmem:[%s1 + $0xa20] sm:$0xff]
    %v350 = vld [vmem:[%s1 + $0xa28] sm:$0xff]
    %v351 = vld [vmem:[%s1 + $0xa30] sm:$0xff]
    %v352 = vld [vmem:[%s1 + $0xa38] sm:$0xff]
    %v353 = vld [vmem:[%s1 + $0xa40] sm:$0xff]
    %v354 = vld [vmem:[%s1 + $0xa48] sm:$0xff]
    %v355 = vld [vmem:[%s1 + $0xa50] sm:$0xff]
    %v356 = vld [vmem:[%s1 + $0xa58] sm:$0xff]
    %v357 = vld [vmem:[%s1 + $0xa60] sm:$0xff]
    %v358 = vld [vmem:[%s1 + $0xa68] sm:$0xff]
    %v359 = vld [vmem:[%s1 + $0xa70] sm:$0xff]
    %v360 = vld [vmem:[%s1 + $0xa78] sm:$0xff]
    %v361 = vld [vmem:[%s1 + $0xa80] sm:$0xff]
    %v362 = vld [vmem:[%s1 + $0xa88] sm:$0xff]
    %v363 = vld [vmem:[%s1 + $0xa90] sm:$0xff]
    %v364 = vld [vmem:[%s1 + $0xa98] sm:$0xff]
    %v365 = vld [vmem:[%s1 + $0xaa0] sm:$0xff]
    %v366 = vld [vmem:[%s1 + $0xaa8] sm:$0xff]
    %v367 = vld [vmem:[%s1 + $0xab0] sm:$0xff]
    %v368 = vld [vmem:[%s1 + $0xab8] sm:$0xff]
    %v369 = vld [vmem:[%s1 + $0xac0] sm:$0xff]
    %v370 = vld [vmem:[%s1 + $0xac8] sm:$0xff]
    %v371 = vld [vmem:[%s1 + $0xad0] sm:$0xff]
    %v372 = vld [vmem:[%s1 + $0xad8] sm:$0xff]
    %v373 = vld [vmem:[%s1 + $0xae0] sm:$0xff]
    %v374 = vld [vmem:[%s1 + $0xae8] sm:$0xff]
    %v375 = vld [vmem:[%s1 + $0xaf0] sm:$0xff]
    %v376 = vld [vmem:[%s1 + $0xaf8] sm:$0xff]
    %v377 = vld [vmem:[%s1 + $0xb00] sm:$0xff]
    %v378 = vld [vmem:[%s1 + $0xb08] sm:$0xff]
    %v379 = vld [vmem:[%s1 + $0xb10] sm:$0xff]
    %v380 = vld [vmem:[%s1 + $0xb18] sm:$0xff]
    %v381 = vld [vmem:[%s1 + $0xb20] sm:$0xff]
    %v382 = vld [vmem:[%s1 + $0xb28] sm:$0xff]
    %v383 = vld [vmem:[%s1 + $0xb30] sm:$0xff]
    %v384 = vld [vmem:[%s1 + $0xb38] sm:$0xff]
    %v385 = vld [vmem:[%s1 + $0xb40] sm:$0xff]
    %v386 = vld [vmem:[%s1 + $0xb48] sm:$0xff]
    %v387 = vld [vmem:[%s1 + $0xb50] sm:$0xff]
    %v388 = vld [vmem:[%s1 + $0xb58] sm:$0xff]
    %v389 = vld [vmem:[%s1 + $0xb60] sm:$0xff]
    %v390 = vld [vmem:[%s1 + $0xb68] sm:$0xff]
    %v391 = vld [vmem:[%s1 + $0xb70] sm:$0xff]
    %v392 = vld [vmem:[%s1 + $0xb78] sm:$0xff]
    %v393 = vld [vmem:[%s1 + $0xb80] sm:$0xff]
    %v394 = vld [vmem:[%s1 + $0xb88] sm:$0xff]
    %v395 = vld [vmem:[%s1 + $0xb90] sm:$0xff]
    %v396 = vld [vmem:[%s1 + $0xb98] sm:$0xff]
    %v397 = vld [vmem:[%s1 + $0xba0] sm:$0xff]
    %v398 = vld [vmem:[%s1 + $0xba8] sm:$0xff]
    %v399 = vld [vmem:[%s1 + $0xbb0] sm:$0xff]
    %v400 = vld [vmem:[%s1 + $0xbb8] sm:$0xff]
    %v401 = vld [vmem:[%s1 + $0xbc0] sm:$0xff]
    %v402 = vld [vmem:[%s1 + $0xbc8] sm:$0xff]
    %v403 = vld [vmem:[%s1 + $0xbd0] sm:$0xff]
    %v404 = vld [vmem:[%s1 + $0xbd8] sm:$0xff]
    %v405 = vld [vmem:[%s1 + $0xbe0] sm:$0xff]
    %v406 = vld [vmem:[%s1 + $0xbe8] sm:$0xff]
    %v407 = vld [vmem:[%s1 + $0xbf0] sm:$0xff]
    %v408 = vld [vmem:[%s1 + $0xbf8] sm:$0xff]
    %v409 = vld [vmem:[%s2] sm:$0x3]
    %v411 = vlaneseq
    %v412 = vshrl.u32 %v411, 7
    %v413 = vsub.s32 0, %v412
    %v414 = vrot.slane %v409, %v413
    %v415 = vlaneseq
    %v416 = vshrl.u32 %v415, 7
    %v417 = vsub.s32 1, %v416
    %v418 = vrot.slane %v409, %v417
    %v424 = vcombine.high %v22, %v22
    %v426 = vunpack.c.l.s4 1966171168
    %v427 = vunpack.c.0.s8 %v426
    %v428 = vlaneseq
    %v429 = vshrl.u32 %v428, 7
    %v430 = vsub.s32 %v427, %v429
    %v431 = vrot.slane %v22, %v430
    %v433 = vunpack.c.l.s4 1966171168
    %v434 = vunpack.c.0.s8 %v433
    %v435 = vlaneseq
    %v436 = vshrl.u32 %v435, 7
    %v437 = vsub.s32 %v434, %v436
    %v438 = vrot.slane %v424, %v437
    %v439 = vcombine.high %v431, %v431
    %v440 = vcombine.high %v438, %v438
    %v442 = vunpack.c.l.s4 1966171168
    %v443 = vunpack.c.0.s8 %v442
    %v444 = vlaneseq
    %v445 = vshrl.u32 %v444, 7
    %v446 = vsub.s32 %v443, %v445
    %v447 = vrot.slane %v431, %v446
    %v449 = vunpack.c.l.s4 1966171168
    %v450 = vunpack.c.0.s8 %v449
    %v451 = vlaneseq
    %v452 = vshrl.u32 %v451, 7
    %v453 = vsub.s32 %v450, %v452
    %v454 = vrot.slane %v438, %v453
    %v456 = vunpack.c.l.s4 1966171168
    %v457 = vunpack.c.0.s8 %v456
    %v458 = vlaneseq
    %v459 = vshrl.u32 %v458, 7
    %v460 = vsub.s32 %v457, %v459
    %v461 = vrot.slane %v439, %v460
    %v463 = vunpack.c.l.s4 1966171168
    %v464 = vunpack.c.0.s8 %v463
    %v465 = vlaneseq
    %v466 = vshrl.u32 %v465, 7
    %v467 = vsub.s32 %v464, %v466
    %v468 = vrot.slane %v440, %v467
    %v469 = vcombine.high %v447, %v447
    %v470 = vcombine.high %v454, %v454
    %v471 = vcombine.high %v461, %v461
    %v472 = vcombine.high %v468, %v468
    %v473 = vcombine.high %v23, %v23
    %v475 = vunpack.c.l.s4 1966171168
    %v476 = vunpack.c.0.s8 %v475
    %v477 = vlaneseq
    %v478 = vshrl.u32 %v477, 7
    %v479 = vsub.s32 %v476, %v478
    %v480 = vrot.slane %v23, %v479
    %v482 = vunpack.c.l.s4 1966171168
    %v483 = vunpack.c.0.s8 %v482
    %v484 = vlaneseq
    %v485 = vshrl.u32 %v484, 7
    %v486 = vsub.s32 %v483, %v485
    %v487 = vrot.slane %v473, %v486
    %v488 = vcombine.high %v480, %v480
    %v489 = vcombine.high %v487, %v487
    %v491 = vunpack.c.l.s4 1966171168
    %v492 = vunpack.c.0.s8 %v491
    %v493 = vlaneseq
    %v494 = vshrl.u32 %v493, 7
    %v495 = vsub.s32 %v492, %v494
    %v496 = vrot.slane %v480, %v495
    %v498 = vunpack.c.l.s4 1966171168
    %v499 = vunpack.c.0.s8 %v498
    %v500 = vlaneseq
    %v501 = vshrl.u32 %v500, 7
    %v502 = vsub.s32 %v499, %v501
    %v503 = vrot.slane %v487, %v502
    %v505 = vunpack.c.l.s4 1966171168
    %v506 = vunpack.c.0.s8 %v505
    %v507 = vlaneseq
    %v508 = vshrl.u32 %v507, 7
    %v509 = vsub.s32 %v506, %v508
    %v510 = vrot.slane %v488, %v509
    %v512 = vunpack.c.l.s4 1966171168
    %v513 = vunpack.c.0.s8 %v512
    %v514 = vlaneseq
    %v515 = vshrl.u32 %v514, 7
    %v516 = vsub.s32 %v513, %v515
    %v517 = vrot.slane %v489, %v516
    %v518 = vcombine.high %v496, %v496
    %v519 = vcombine.high %v503, %v503
    %v520 = vcombine.high %v510, %v510
    %v521 = vcombine.high %v517, %v517
    %v522 = vcombine.high %v24, %v24
    %v524 = vunpack.c.l.s4 1966171168
    %v525 = vunpack.c.0.s8 %v524
    %v526 = vlaneseq
    %v527 = vshrl.u32 %v526, 7
    %v528 = vsub.s32 %v525, %v527
    %v529 = vrot.slane %v24, %v528
    %v531 = vunpack.c.l.s4 1966171168
    %v532 = vunpack.c.0.s8 %v531
    %v533 = vlaneseq
    %v534 = vshrl.u32 %v533, 7
    %v535 = vsub.s32 %v532, %v534
    %v536 = vrot.slane %v522, %v535
    %v537 = vcombine.high %v529, %v529
    %v538 = vcombine.high %v536, %v536
    %v540 = vunpack.c.l.s4 1966171168
    %v541 = vunpack.c.0.s8 %v540
    %v542 = vlaneseq
    %v543 = vshrl.u32 %v542, 7
    %v544 = vsub.s32 %v541, %v543
    %v545 = vrot.slane %v529, %v544
    %v547 = vunpack.c.l.s4 1966171168
    %v548 = vunpack.c.0.s8 %v547
    %v549 = vlaneseq
    %v550 = vshrl.u32 %v549, 7
    %v551 = vsub.s32 %v548, %v550
    %v552 = vrot.slane %v536, %v551
    %v554 = vunpack.c.l.s4 1966171168
    %v555 = vunpack.c.0.s8 %v554
    %v556 = vlaneseq
    %v557 = vshrl.u32 %v556, 7
    %v558 = vsub.s32 %v555, %v557
    %v559 = vrot.slane %v537, %v558
    %v561 = vunpack.c.l.s4 1966171168
    %v562 = vunpack.c.0.s8 %v561
    %v563 = vlaneseq
    %v564 = vshrl.u32 %v563, 7
    %v565 = vsub.s32 %v562, %v564
    %v566 = vrot.slane %v538, %v565
    %v567 = vcombine.high %v545, %v545
    %v568 = vcombine.high %v552, %v552
    %v569 = vcombine.high %v559, %v559
    %v570 = vcombine.high %v566, %v566
    %v979 = vunpack.c.l.b16 %v25
    %v980 = vunpack.c.h.b16 %v25
    %v981 = vunpack.c.l.b16 %v26
    %v982 = vunpack.c.h.b16 %v26
    %v983 = vunpack.c.l.b16 %v27
    %v984 = vunpack.c.h.b16 %v27
    %v985 = vunpack.c.l.b16 %v28
    %v986 = vunpack.c.h.b16 %v28
    %v987 = vunpack.c.l.b16 %v29
    %v988 = vunpack.c.h.b16 %v29
    %v989 = vunpack.c.l.b16 %v30
    %v990 = vunpack.c.h.b16 %v30
    %v991 = vunpack.c.l.b16 %v31
    %v992 = vunpack.c.h.b16 %v31
    %v993 = vunpack.c.l.b16 %v32
    %v994 = vunpack.c.h.b16 %v32
    %v995 = vunpack.c.l.b16 %v33
    %v996 = vunpack.c.h.b16 %v33
    %v997 = vunpack.c.l.b16 %v34
    %v998 = vunpack.c.h.b16 %v34
    %v999 = vunpack.c.l.b16 %v35
    %v1000 = vunpack.c.h.b16 %v35
    %v1001 = vunpack.c.l.b16 %v36
    %v1002 = vunpack.c.h.b16 %v36
    %v1003 = vunpack.c.l.b16 %v37
    %v1004 = vunpack.c.h.b16 %v37
    %v1005 = vunpack.c.l.b16 %v38
    %v1006 = vunpack.c.h.b16 %v38
    %v1007 = vunpack.c.l.b16 %v39
    %v1008 = vunpack.c.h.b16 %v39
    %v1009 = vunpack.c.l.b16 %v40
    %v1010 = vunpack.c.h.b16 %v40
    %v1011 = vunpack.c.l.b16 %v41
    %v1012 = vunpack.c.h.b16 %v41
    %v1013 = vunpack.c.l.b16 %v42
    %v1014 = vunpack.c.h.b16 %v42
    %v1015 = vunpack.c.l.b16 %v43
    %v1016 = vunpack.c.h.b16 %v43
    %v1017 = vunpack.c.l.b16 %v44
    %v1018 = vunpack.c.h.b16 %v44
    %v1019 = vunpack.c.l.b16 %v45
    %v1020 = vunpack.c.h.b16 %v45
    %v1021 = vunpack.c.l.b16 %v46
    %v1022 = vunpack.c.h.b16 %v46
    %v1023 = vunpack.c.l.b16 %v47
    %v1024 = vunpack.c.h.b16 %v47
    %v1025 = vunpack.c.l.b16 %v48
    %v1026 = vunpack.c.h.b16 %v48
    %v1027 = vunpack.c.l.b16 %v49
    %v1028 = vunpack.c.h.b16 %v49
    %v1029 = vunpack.c.l.b16 %v50
    %v1030 = vunpack.c.h.b16 %v50
    %v1031 = vunpack.c.l.b16 %v51
    %v1032 = vunpack.c.h.b16 %v51
    %v1033 = vunpack.c.l.b16 %v52
    %v1034 = vunpack.c.h.b16 %v52
    %v1035 = vunpack.c.l.b16 %v53
    %v1036 = vunpack.c.h.b16 %v53
    %v1037 = vunpack.c.l.b16 %v54
    %v1038 = vunpack.c.h.b16 %v54
    %v1039 = vunpack.c.l.b16 %v55
    %v1040 = vunpack.c.h.b16 %v55
    %v1041 = vunpack.c.l.b16 %v56
    %v1042 = vunpack.c.h.b16 %v56
    %v1043 = vunpack.c.l.b16 %v57
    %v1044 = vunpack.c.h.b16 %v57
    %v1045 = vunpack.c.l.b16 %v58
    %v1046 = vunpack.c.h.b16 %v58
    %v1047 = vunpack.c.l.b16 %v59
    %v1048 = vunpack.c.h.b16 %v59
    %v1049 = vunpack.c.l.b16 %v60
    %v1050 = vunpack.c.h.b16 %v60
    %v1051 = vunpack.c.l.b16 %v61
    %v1052 = vunpack.c.h.b16 %v61
    %v1053 = vunpack.c.l.b16 %v62
    %v1054 = vunpack.c.h.b16 %v62
    %v1055 = vunpack.c.l.b16 %v63
    %v1056 = vunpack.c.h.b16 %v63
    %v1057 = vunpack.c.l.b16 %v64
    %v1058 = vunpack.c.h.b16 %v64
    %v1059 = vunpack.c.l.b16 %v65
    %v1060 = vunpack.c.h.b16 %v65
    %v1061 = vunpack.c.l.b16 %v66
    %v1062 = vunpack.c.h.b16 %v66
    %v1063 = vunpack.c.l.b16 %v67
    %v1064 = vunpack.c.h.b16 %v67
    %v1065 = vunpack.c.l.b16 %v68
    %v1066 = vunpack.c.h.b16 %v68
    %v1067 = vunpack.c.l.b16 %v69
    %v1068 = vunpack.c.h.b16 %v69
    %v1069 = vunpack.c.l.b16 %v70
    %v1070 = vunpack.c.h.b16 %v70
    %v1071 = vunpack.c.l.b16 %v71
    %v1072 = vunpack.c.h.b16 %v71
    %v1073 = vunpack.c.l.b16 %v72
    %v1074 = vunpack.c.h.b16 %v72
    %v1075 = vunpack.c.l.b16 %v73
    %v1076 = vunpack.c.h.b16 %v73
    %v1077 = vunpack.c.l.b16 %v74
    %v1078 = vunpack.c.h.b16 %v74
    %v1079 = vunpack.c.l.b16 %v75
    %v1080 = vunpack.c.h.b16 %v75
    %v1081 = vunpack.c.l.b16 %v76
    %v1082 = vunpack.c.h.b16 %v76
    %v1083 = vunpack.c.l.b16 %v77
    %v1084 = vunpack.c.h.b16 %v77
    %v1085 = vunpack.c.l.b16 %v78
    %v1086 = vunpack.c.h.b16 %v78
    %v1087 = vunpack.c.l.b16 %v79
    %v1088 = vunpack.c.h.b16 %v79
    %v1089 = vunpack.c.l.b16 %v80
    %v1090 = vunpack.c.h.b16 %v80
    %v1091 = vunpack.c.l.b16 %v81
    %v1092 = vunpack.c.h.b16 %v81
    %v1093 = vunpack.c.l.b16 %v82
    %v1094 = vunpack.c.h.b16 %v82
    %v1095 = vunpack.c.l.b16 %v83
    %v1096 = vunpack.c.h.b16 %v83
    %v1097 = vunpack.c.l.b16 %v84
    %v1098 = vunpack.c.h.b16 %v84
    %v1099 = vunpack.c.l.b16 %v85
    %v1100 = vunpack.c.h.b16 %v85
    %v1101 = vunpack.c.l.b16 %v86
    %v1102 = vunpack.c.h.b16 %v86
    %v1103 = vunpack.c.l.b16 %v87
    %v1104 = vunpack.c.h.b16 %v87
    %v1105 = vunpack.c.l.b16 %v88
    %v1106 = vunpack.c.h.b16 %v88
    %v1107 = vunpack.c.l.b16 %v89
    %v1108 = vunpack.c.h.b16 %v89
    %v1109 = vunpack.c.l.b16 %v90
    %v1110 = vunpack.c.h.b16 %v90
    %v1111 = vunpack.c.l.b16 %v91
    %v1112 = vunpack.c.h.b16 %v91
    %v1113 = vunpack.c.l.b16 %v92
    %v1114 = vunpack.c.h.b16 %v92
    %v1115 = vunpack.c.l.b16 %v93
    %v1116 = vunpack.c.h.b16 %v93
    %v1117 = vunpack.c.l.b16 %v94
    %v1118 = vunpack.c.h.b16 %v94
    %v1119 = vunpack.c.l.b16 %v95
    %v1120 = vunpack.c.h.b16 %v95
    %v1121 = vunpack.c.l.b16 %v96
    %v1122 = vunpack.c.h.b16 %v96
    %v1123 = vunpack.c.l.b16 %v97
    %v1124 = vunpack.c.h.b16 %v97
    %v1125 = vunpack.c.l.b16 %v98
    %v1126 = vunpack.c.h.b16 %v98
    %v1127 = vunpack.c.l.b16 %v99
    %v1128 = vunpack.c.h.b16 %v99
    %v1129 = vunpack.c.l.b16 %v100
    %v1130 = vunpack.c.h.b16 %v100
    %v1131 = vunpack.c.l.b16 %v101
    %v1132 = vunpack.c.h.b16 %v101
    %v1133 = vunpack.c.l.b16 %v102
    %v1134 = vunpack.c.h.b16 %v102
    %v1135 = vunpack.c.l.b16 %v103
    %v1136 = vunpack.c.h.b16 %v103
    %v1137 = vunpack.c.l.b16 %v104
    %v1138 = vunpack.c.h.b16 %v104
    %v1139 = vunpack.c.l.b16 %v105
    %v1140 = vunpack.c.h.b16 %v105
    %v1141 = vunpack.c.l.b16 %v106
    %v1142 = vunpack.c.h.b16 %v106
    %v1143 = vunpack.c.l.b16 %v107
    %v1144 = vunpack.c.h.b16 %v107
    %v1145 = vunpack.c.l.b16 %v108
    %v1146 = vunpack.c.h.b16 %v108
    %v1147 = vunpack.c.l.b16 %v109
    %v1148 = vunpack.c.h.b16 %v109
    %v1149 = vunpack.c.l.b16 %v110
    %v1150 = vunpack.c.h.b16 %v110
    %v1151 = vunpack.c.l.b16 %v111
    %v1152 = vunpack.c.h.b16 %v111
    %v1153 = vunpack.c.l.b16 %v112
    %v1154 = vunpack.c.h.b16 %v112
    %v1155 = vunpack.c.l.b16 %v113
    %v1156 = vunpack.c.h.b16 %v113
    %v1157 = vunpack.c.l.b16 %v114
    %v1158 = vunpack.c.h.b16 %v114
    %v1159 = vunpack.c.l.b16 %v115
    %v1160 = vunpack.c.h.b16 %v115
    %v1161 = vunpack.c.l.b16 %v116
    %v1162 = vunpack.c.h.b16 %v116
    %v1163 = vunpack.c.l.b16 %v117
    %v1164 = vunpack.c.h.b16 %v117
    %v1165 = vunpack.c.l.b16 %v118
    %v1166 = vunpack.c.h.b16 %v118
    %v1167 = vunpack.c.l.b16 %v119
    %v1168 = vunpack.c.h.b16 %v119
    %v1169 = vunpack.c.l.b16 %v120
    %v1170 = vunpack.c.h.b16 %v120
    %v1171 = vunpack.c.l.b16 %v121
    %v1172 = vunpack.c.h.b16 %v121
    %v1173 = vunpack.c.l.b16 %v122
    %v1174 = vunpack.c.h.b16 %v122
    %v1175 = vunpack.c.l.b16 %v123
    %v1176 = vunpack.c.h.b16 %v123
    %v1177 = vunpack.c.l.b16 %v124
    %v1178 = vunpack.c.h.b16 %v124
    %v1179 = vunpack.c.l.b16 %v125
    %v1180 = vunpack.c.h.b16 %v125
    %v1181 = vunpack.c.l.b16 %v126
    %v1182 = vunpack.c.h.b16 %v126
    %v1183 = vunpack.c.l.b16 %v127
    %v1184 = vunpack.c.h.b16 %v127
    %v1185 = vunpack.c.l.b16 %v128
    %v1186 = vunpack.c.h.b16 %v128
    %v1187 = vunpack.c.l.b16 %v129
    %v1188 = vunpack.c.h.b16 %v129
    %v1189 = vunpack.c.l.b16 %v130
    %v1190 = vunpack.c.h.b16 %v130
    %v1191 = vunpack.c.l.b16 %v131
    %v1192 = vunpack.c.h.b16 %v131
    %v1193 = vunpack.c.l.b16 %v132
    %v1194 = vunpack.c.h.b16 %v132
    %v1195 = vunpack.c.l.b16 %v133
    %v1196 = vunpack.c.h.b16 %v133
    %v1197 = vunpack.c.l.b16 %v134
    %v1198 = vunpack.c.h.b16 %v134
    %v1199 = vunpack.c.l.b16 %v135
    %v1200 = vunpack.c.h.b16 %v135
    %v1201 = vunpack.c.l.b16 %v136
    %v1202 = vunpack.c.h.b16 %v136
    %v1203 = vunpack.c.l.b16 %v137
    %v1204 = vunpack.c.h.b16 %v137
    %v1205 = vunpack.c.l.b16 %v138
    %v1206 = vunpack.c.h.b16 %v138
    %v1207 = vunpack.c.l.b16 %v139
    %v1208 = vunpack.c.h.b16 %v139
    %v1209 = vunpack.c.l.b16 %v140
    %v1210 = vunpack.c.h.b16 %v140
    %v1211 = vunpack.c.l.b16 %v141
    %v1212 = vunpack.c.h.b16 %v141
    %v1213 = vunpack.c.l.b16 %v142
    %v1214 = vunpack.c.h.b16 %v142
    %v1215 = vunpack.c.l.b16 %v143
    %v1216 = vunpack.c.h.b16 %v143
    %v1217 = vunpack.c.l.b16 %v144
    %v1218 = vunpack.c.h.b16 %v144
    %v1219 = vunpack.c.l.b16 %v145
    %v1220 = vunpack.c.h.b16 %v145
    %v1221 = vunpack.c.l.b16 %v146
    %v1222 = vunpack.c.h.b16 %v146
    %v1223 = vunpack.c.l.b16 %v147
    %v1224 = vunpack.c.h.b16 %v147
    %v1225 = vunpack.c.l.b16 %v148
    %v1226 = vunpack.c.h.b16 %v148
    %v1227 = vunpack.c.l.b16 %v149
    %v1228 = vunpack.c.h.b16 %v149
    %v1229 = vunpack.c.l.b16 %v150
    %v1230 = vunpack.c.h.b16 %v150
    %v1231 = vunpack.c.l.b16 %v151
    %v1232 = vunpack.c.h.b16 %v151
    %v1233 = vunpack.c.l.b16 %v152
    %v1234 = vunpack.c.h.b16 %v152
    %v1235 = vunpack.c.l.b16 %v153
    %v1236 = vunpack.c.h.b16 %v153
    %v1237 = vunpack.c.l.b16 %v154
    %v1238 = vunpack.c.h.b16 %v154
    %v1239 = vunpack.c.l.b16 %v155
    %v1240 = vunpack.c.h.b16 %v155
    %v1241 = vunpack.c.l.b16 %v156
    %v1242 = vunpack.c.h.b16 %v156
    %v1243 = vunpack.c.l.b16 %v157
    %v1244 = vunpack.c.h.b16 %v157
    %v1245 = vunpack.c.l.b16 %v158
    %v1246 = vunpack.c.h.b16 %v158
    %v1247 = vunpack.c.l.b16 %v159
    %v1248 = vunpack.c.h.b16 %v159
    %v1249 = vunpack.c.l.b16 %v160
    %v1250 = vunpack.c.h.b16 %v160
    %v1251 = vunpack.c.l.b16 %v161
    %v1252 = vunpack.c.h.b16 %v161
    %v1253 = vunpack.c.l.b16 %v162
    %v1254 = vunpack.c.h.b16 %v162
    %v1255 = vunpack.c.l.b16 %v163
    %v1256 = vunpack.c.h.b16 %v163
    %v1257 = vunpack.c.l.b16 %v164
    %v1258 = vunpack.c.h.b16 %v164
    %v1259 = vunpack.c.l.b16 %v165
    %v1260 = vunpack.c.h.b16 %v165
    %v1261 = vunpack.c.l.b16 %v166
    %v1262 = vunpack.c.h.b16 %v166
    %v1263 = vunpack.c.l.b16 %v167
    %v1264 = vunpack.c.h.b16 %v167
    %v1265 = vunpack.c.l.b16 %v168
    %v1266 = vunpack.c.h.b16 %v168
    %v1267 = vunpack.c.l.b16 %v169
    %v1268 = vunpack.c.h.b16 %v169
    %v1269 = vunpack.c.l.b16 %v170
    %v1270 = vunpack.c.h.b16 %v170
    %v1271 = vunpack.c.l.b16 %v171
    %v1272 = vunpack.c.h.b16 %v171
    %v1273 = vunpack.c.l.b16 %v172
    %v1274 = vunpack.c.h.b16 %v172
    %v1275 = vunpack.c.l.b16 %v173
    %v1276 = vunpack.c.h.b16 %v173
    %v1277 = vunpack.c.l.b16 %v174
    %v1278 = vunpack.c.h.b16 %v174
    %v1279 = vunpack.c.l.b16 %v175
    %v1280 = vunpack.c.h.b16 %v175
    %v1281 = vunpack.c.l.b16 %v176
    %v1282 = vunpack.c.h.b16 %v176
    %v1283 = vunpack.c.l.b16 %v177
    %v1284 = vunpack.c.h.b16 %v177
    %v1285 = vunpack.c.l.b16 %v178
    %v1286 = vunpack.c.h.b16 %v178
    %v1287 = vunpack.c.l.b16 %v179
    %v1288 = vunpack.c.h.b16 %v179
    %v1289 = vunpack.c.l.b16 %v180
    %v1290 = vunpack.c.h.b16 %v180
    %v1291 = vunpack.c.l.b16 %v181
    %v1292 = vunpack.c.h.b16 %v181
    %v1293 = vunpack.c.l.b16 %v182
    %v1294 = vunpack.c.h.b16 %v182
    %v1295 = vunpack.c.l.b16 %v183
    %v1296 = vunpack.c.h.b16 %v183
    %v1297 = vunpack.c.l.b16 %v184
    %v1298 = vunpack.c.h.b16 %v184
    %v1299 = vunpack.c.l.b16 %v185
    %v1300 = vunpack.c.h.b16 %v185
    %v1301 = vunpack.c.l.b16 %v186
    %v1302 = vunpack.c.h.b16 %v186
    %v1303 = vunpack.c.l.b16 %v187
    %v1304 = vunpack.c.h.b16 %v187
    %v1305 = vunpack.c.l.b16 %v188
    %v1306 = vunpack.c.h.b16 %v188
    %v1307 = vunpack.c.l.b16 %v189
    %v1308 = vunpack.c.h.b16 %v189
    %v1309 = vunpack.c.l.b16 %v190
    %v1310 = vunpack.c.h.b16 %v190
    %v1311 = vunpack.c.l.b16 %v191
    %v1312 = vunpack.c.h.b16 %v191
    %v1313 = vunpack.c.l.b16 %v192
    %v1314 = vunpack.c.h.b16 %v192
    %v1315 = vunpack.c.l.b16 %v193
    %v1316 = vunpack.c.h.b16 %v193
    %v1317 = vunpack.c.l.b16 %v194
    %v1318 = vunpack.c.h.b16 %v194
    %v1319 = vunpack.c.l.b16 %v195
    %v1320 = vunpack.c.h.b16 %v195
    %v1321 = vunpack.c.l.b16 %v196
    %v1322 = vunpack.c.h.b16 %v196
    %v1323 = vunpack.c.l.b16 %v197
    %v1324 = vunpack.c.h.b16 %v197
    %v1325 = vunpack.c.l.b16 %v198
    %v1326 = vunpack.c.h.b16 %v198
    %v1327 = vunpack.c.l.b16 %v199
    %v1328 = vunpack.c.h.b16 %v199
    %v1329 = vunpack.c.l.b16 %v200
    %v1330 = vunpack.c.h.b16 %v200
    %v1331 = vunpack.c.l.b16 %v201
    %v1332 = vunpack.c.h.b16 %v201
    %v1333 = vunpack.c.l.b16 %v202
    %v1334 = vunpack.c.h.b16 %v202
    %v1335 = vunpack.c.l.b16 %v203
    %v1336 = vunpack.c.h.b16 %v203
    %v1337 = vunpack.c.l.b16 %v204
    %v1338 = vunpack.c.h.b16 %v204
    %v1339 = vunpack.c.l.b16 %v205
    %v1340 = vunpack.c.h.b16 %v205
    %v1341 = vunpack.c.l.b16 %v206
    %v1342 = vunpack.c.h.b16 %v206
    %v1343 = vunpack.c.l.b16 %v207
    %v1344 = vunpack.c.h.b16 %v207
    %v1345 = vunpack.c.l.b16 %v208
    %v1346 = vunpack.c.h.b16 %v208
    %v1347 = vunpack.c.l.b16 %v209
    %v1348 = vunpack.c.h.b16 %v209
    %v1349 = vunpack.c.l.b16 %v210
    %v1350 = vunpack.c.h.b16 %v210
    %v1351 = vunpack.c.l.b16 %v211
    %v1352 = vunpack.c.h.b16 %v211
    %v1353 = vunpack.c.l.b16 %v212
    %v1354 = vunpack.c.h.b16 %v212
    %v1355 = vunpack.c.l.b16 %v213
    %v1356 = vunpack.c.h.b16 %v213
    %v1357 = vunpack.c.l.b16 %v214
    %v1358 = vunpack.c.h.b16 %v214
    %v1359 = vunpack.c.l.b16 %v215
    %v1360 = vunpack.c.h.b16 %v215
    %v1361 = vunpack.c.l.b16 %v216
    %v1362 = vunpack.c.h.b16 %v216
    %v1363 = vunpack.c.l.b16 %v217
    %v1364 = vunpack.c.h.b16 %v217
    %v1365 = vunpack.c.l.b16 %v218
    %v1366 = vunpack.c.h.b16 %v218
    %v1367 = vunpack.c.l.b16 %v219
    %v1368 = vunpack.c.h.b16 %v219
    %v1369 = vunpack.c.l.b16 %v220
    %v1370 = vunpack.c.h.b16 %v220
    %v1371 = vunpack.c.l.b16 %v221
    %v1372 = vunpack.c.h.b16 %v221
    %v1373 = vunpack.c.l.b16 %v222
    %v1374 = vunpack.c.h.b16 %v222
    %v1375 = vunpack.c.l.b16 %v223
    %v1376 = vunpack.c.h.b16 %v223
    %v1377 = vunpack.c.l.b16 %v224
    %v1378 = vunpack.c.h.b16 %v224
    %v1379 = vunpack.c.l.b16 %v225
    %v1380 = vunpack.c.h.b16 %v225
    %v1381 = vunpack.c.l.b16 %v226
    %v1382 = vunpack.c.h.b16 %v226
    %v1383 = vunpack.c.l.b16 %v227
    %v1384 = vunpack.c.h.b16 %v227
    %v1385 = vunpack.c.l.b16 %v228
    %v1386 = vunpack.c.h.b16 %v228
    %v1387 = vunpack.c.l.b16 %v229
    %v1388 = vunpack.c.h.b16 %v229
    %v1389 = vunpack.c.l.b16 %v230
    %v1390 = vunpack.c.h.b16 %v230
    %v1391 = vunpack.c.l.b16 %v231
    %v1392 = vunpack.c.h.b16 %v231
    %v1393 = vunpack.c.l.b16 %v232
    %v1394 = vunpack.c.h.b16 %v232
    %v1395 = vunpack.c.l.b16 %v233
    %v1396 = vunpack.c.h.b16 %v233
    %v1397 = vunpack.c.l.b16 %v234
    %v1398 = vunpack.c.h.b16 %v234
    %v1399 = vunpack.c.l.b16 %v235
    %v1400 = vunpack.c.h.b16 %v235
    %v1401 = vunpack.c.l.b16 %v236
    %v1402 = vunpack.c.h.b16 %v236
    %v1403 = vunpack.c.l.b16 %v237
    %v1404 = vunpack.c.h.b16 %v237
    %v1405 = vunpack.c.l.b16 %v238
    %v1406 = vunpack.c.h.b16 %v238
    %v1407 = vunpack.c.l.b16 %v239
    %v1408 = vunpack.c.h.b16 %v239
    %v1409 = vunpack.c.l.b16 %v240
    %v1410 = vunpack.c.h.b16 %v240
    %v1411 = vunpack.c.l.b16 %v241
    %v1412 = vunpack.c.h.b16 %v241
    %v1413 = vunpack.c.l.b16 %v242
    %v1414 = vunpack.c.h.b16 %v242
    %v1415 = vunpack.c.l.b16 %v243
    %v1416 = vunpack.c.h.b16 %v243
    %v1417 = vunpack.c.l.b16 %v244
    %v1418 = vunpack.c.h.b16 %v244
    %v1419 = vunpack.c.l.b16 %v245
    %v1420 = vunpack.c.h.b16 %v245
    %v1421 = vunpack.c.l.b16 %v246
    %v1422 = vunpack.c.h.b16 %v246
    %v1423 = vunpack.c.l.b16 %v247
    %v1424 = vunpack.c.h.b16 %v247
    %v1425 = vunpack.c.l.b16 %v248
    %v1426 = vunpack.c.h.b16 %v248
    %v1427 = vunpack.c.l.b16 %v249
    %v1428 = vunpack.c.h.b16 %v249
    %v1429 = vunpack.c.l.b16 %v250
    %v1430 = vunpack.c.h.b16 %v250
    %v1431 = vunpack.c.l.b16 %v251
    %v1432 = vunpack.c.h.b16 %v251
    %v1433 = vunpack.c.l.b16 %v252
    %v1434 = vunpack.c.h.b16 %v252
    %v1435 = vunpack.c.l.b16 %v253
    %v1436 = vunpack.c.h.b16 %v253
    %v1437 = vunpack.c.l.b16 %v254
    %v1438 = vunpack.c.h.b16 %v254
    %v1439 = vunpack.c.l.b16 %v255
    %v1440 = vunpack.c.h.b16 %v255
    %v1441 = vunpack.c.l.b16 %v256
    %v1442 = vunpack.c.h.b16 %v256
    %v1443 = vunpack.c.l.b16 %v257
    %v1444 = vunpack.c.h.b16 %v257
    %v1445 = vunpack.c.l.b16 %v258
    %v1446 = vunpack.c.h.b16 %v258
    %v1447 = vunpack.c.l.b16 %v259
    %v1448 = vunpack.c.h.b16 %v259
    %v1449 = vunpack.c.l.b16 %v260
    %v1450 = vunpack.c.h.b16 %v260
    %v1451 = vunpack.c.l.b16 %v261
    %v1452 = vunpack.c.h.b16 %v261
    %v1453 = vunpack.c.l.b16 %v262
    %v1454 = vunpack.c.h.b16 %v262
    %v1455 = vunpack.c.l.b16 %v263
    %v1456 = vunpack.c.h.b16 %v263
    %v1457 = vunpack.c.l.b16 %v264
    %v1458 = vunpack.c.h.b16 %v264
    %v1459 = vunpack.c.l.b16 %v265
    %v1460 = vunpack.c.h.b16 %v265
    %v1461 = vunpack.c.l.b16 %v266
    %v1462 = vunpack.c.h.b16 %v266
    %v1463 = vunpack.c.l.b16 %v267
    %v1464 = vunpack.c.h.b16 %v267
    %v1465 = vunpack.c.l.b16 %v268
    %v1466 = vunpack.c.h.b16 %v268
    %v1467 = vunpack.c.l.b16 %v269
    %v1468 = vunpack.c.h.b16 %v269
    %v1469 = vunpack.c.l.b16 %v270
    %v1470 = vunpack.c.h.b16 %v270
    %v1471 = vunpack.c.l.b16 %v271
    %v1472 = vunpack.c.h.b16 %v271
    %v1473 = vunpack.c.l.b16 %v272
    %v1474 = vunpack.c.h.b16 %v272
    %v1475 = vunpack.c.l.b16 %v273
    %v1476 = vunpack.c.h.b16 %v273
    %v1477 = vunpack.c.l.b16 %v274
    %v1478 = vunpack.c.h.b16 %v274
    %v1479 = vunpack.c.l.b16 %v275
    %v1480 = vunpack.c.h.b16 %v275
    %v1481 = vunpack.c.l.b16 %v276
    %v1482 = vunpack.c.h.b16 %v276
    %v1483 = vunpack.c.l.b16 %v277
    %v1484 = vunpack.c.h.b16 %v277
    %v1485 = vunpack.c.l.b16 %v278
    %v1486 = vunpack.c.h.b16 %v278
    %v1487 = vunpack.c.l.b16 %v279
    %v1488 = vunpack.c.h.b16 %v279
    %v1489 = vunpack.c.l.b16 %v280
    %v1490 = vunpack.c.h.b16 %v280
    %v1491 = vunpack.c.l.b16 %v281
    %v1492 = vunpack.c.h.b16 %v281
    %v1493 = vunpack.c.l.b16 %v282
    %v1494 = vunpack.c.h.b16 %v282
    %v1495 = vunpack.c.l.b16 %v283
    %v1496 = vunpack.c.h.b16 %v283
    %v1497 = vunpack.c.l.b16 %v284
    %v1498 = vunpack.c.h.b16 %v284
    %v1499 = vunpack.c.l.b16 %v285
    %v1500 = vunpack.c.h.b16 %v285
    %v1501 = vunpack.c.l.b16 %v286
    %v1502 = vunpack.c.h.b16 %v286
    %v1503 = vunpack.c.l.b16 %v287
    %v1504 = vunpack.c.h.b16 %v287
    %v1505 = vunpack.c.l.b16 %v288
    %v1506 = vunpack.c.h.b16 %v288
    %v1507 = vunpack.c.l.b16 %v289
    %v1508 = vunpack.c.h.b16 %v289
    %v1509 = vunpack.c.l.b16 %v290
    %v1510 = vunpack.c.h.b16 %v290
    %v1511 = vunpack.c.l.b16 %v291
    %v1512 = vunpack.c.h.b16 %v291
    %v1513 = vunpack.c.l.b16 %v292
    %v1514 = vunpack.c.h.b16 %v292
    %v1515 = vunpack.c.l.b16 %v293
    %v1516 = vunpack.c.h.b16 %v293
    %v1517 = vunpack.c.l.b16 %v294
    %v1518 = vunpack.c.h.b16 %v294
    %v1519 = vunpack.c.l.b16 %v295
    %v1520 = vunpack.c.h.b16 %v295
    %v1521 = vunpack.c.l.b16 %v296
    %v1522 = vunpack.c.h.b16 %v296
    %v1523 = vunpack.c.l.b16 %v297
    %v1524 = vunpack.c.h.b16 %v297
    %v1525 = vunpack.c.l.b16 %v298
    %v1526 = vunpack.c.h.b16 %v298
    %v1527 = vunpack.c.l.b16 %v299
    %v1528 = vunpack.c.h.b16 %v299
    %v1529 = vunpack.c.l.b16 %v300
    %v1530 = vunpack.c.h.b16 %v300
    %v1531 = vunpack.c.l.b16 %v301
    %v1532 = vunpack.c.h.b16 %v301
    %v1533 = vunpack.c.l.b16 %v302
    %v1534 = vunpack.c.h.b16 %v302
    %v1535 = vunpack.c.l.b16 %v303
    %v1536 = vunpack.c.h.b16 %v303
    %v1537 = vunpack.c.l.b16 %v304
    %v1538 = vunpack.c.h.b16 %v304
    %v1539 = vunpack.c.l.b16 %v305
    %v1540 = vunpack.c.h.b16 %v305
    %v1541 = vunpack.c.l.b16 %v306
    %v1542 = vunpack.c.h.b16 %v306
    %v1543 = vunpack.c.l.b16 %v307
    %v1544 = vunpack.c.h.b16 %v307
    %v1545 = vunpack.c.l.b16 %v308
    %v1546 = vunpack.c.h.b16 %v308
    %v1547 = vunpack.c.l.b16 %v309
    %v1548 = vunpack.c.h.b16 %v309
    %v1549 = vunpack.c.l.b16 %v310
    %v1550 = vunpack.c.h.b16 %v310
    %v1551 = vunpack.c.l.b16 %v311
    %v1552 = vunpack.c.h.b16 %v311
    %v1553 = vunpack.c.l.b16 %v312
    %v1554 = vunpack.c.h.b16 %v312
    %v1555 = vunpack.c.l.b16 %v313
    %v1556 = vunpack.c.h.b16 %v313
    %v1557 = vunpack.c.l.b16 %v314
    %v1558 = vunpack.c.h.b16 %v314
    %v1559 = vunpack.c.l.b16 %v315
    %v1560 = vunpack.c.h.b16 %v315
    %v1561 = vunpack.c.l.b16 %v316
    %v1562 = vunpack.c.h.b16 %v316
    %v1563 = vunpack.c.l.b16 %v317
    %v1564 = vunpack.c.h.b16 %v317
    %v1565 = vunpack.c.l.b16 %v318
    %v1566 = vunpack.c.h.b16 %v318
    %v1567 = vunpack.c.l.b16 %v319
    %v1568 = vunpack.c.h.b16 %v319
    %v1569 = vunpack.c.l.b16 %v320
    %v1570 = vunpack.c.h.b16 %v320
    %v1571 = vunpack.c.l.b16 %v321
    %v1572 = vunpack.c.h.b16 %v321
    %v1573 = vunpack.c.l.b16 %v322
    %v1574 = vunpack.c.h.b16 %v322
    %v1575 = vunpack.c.l.b16 %v323
    %v1576 = vunpack.c.h.b16 %v323
    %v1577 = vunpack.c.l.b16 %v324
    %v1578 = vunpack.c.h.b16 %v324
    %v1579 = vunpack.c.l.b16 %v325
    %v1580 = vunpack.c.h.b16 %v325
    %v1581 = vunpack.c.l.b16 %v326
    %v1582 = vunpack.c.h.b16 %v326
    %v1583 = vunpack.c.l.b16 %v327
    %v1584 = vunpack.c.h.b16 %v327
    %v1585 = vunpack.c.l.b16 %v328
    %v1586 = vunpack.c.h.b16 %v328
    %v1587 = vunpack.c.l.b16 %v329
    %v1588 = vunpack.c.h.b16 %v329
    %v1589 = vunpack.c.l.b16 %v330
    %v1590 = vunpack.c.h.b16 %v330
    %v1591 = vunpack.c.l.b16 %v331
    %v1592 = vunpack.c.h.b16 %v331
    %v1593 = vunpack.c.l.b16 %v332
    %v1594 = vunpack.c.h.b16 %v332
    %v1595 = vunpack.c.l.b16 %v333
    %v1596 = vunpack.c.h.b16 %v333
    %v1597 = vunpack.c.l.b16 %v334
    %v1598 = vunpack.c.h.b16 %v334
    %v1599 = vunpack.c.l.b16 %v335
    %v1600 = vunpack.c.h.b16 %v335
    %v1601 = vunpack.c.l.b16 %v336
    %v1602 = vunpack.c.h.b16 %v336
    %v1603 = vunpack.c.l.b16 %v337
    %v1604 = vunpack.c.h.b16 %v337
    %v1605 = vunpack.c.l.b16 %v338
    %v1606 = vunpack.c.h.b16 %v338
    %v1607 = vunpack.c.l.b16 %v339
    %v1608 = vunpack.c.h.b16 %v339
    %v1609 = vunpack.c.l.b16 %v340
    %v1610 = vunpack.c.h.b16 %v340
    %v1611 = vunpack.c.l.b16 %v341
    %v1612 = vunpack.c.h.b16 %v341
    %v1613 = vunpack.c.l.b16 %v342
    %v1614 = vunpack.c.h.b16 %v342
    %v1615 = vunpack.c.l.b16 %v343
    %v1616 = vunpack.c.h.b16 %v343
    %v1617 = vunpack.c.l.b16 %v344
    %v1618 = vunpack.c.h.b16 %v344
    %v1619 = vunpack.c.l.b16 %v345
    %v1620 = vunpack.c.h.b16 %v345
    %v1621 = vunpack.c.l.b16 %v346
    %v1622 = vunpack.c.h.b16 %v346
    %v1623 = vunpack.c.l.b16 %v347
    %v1624 = vunpack.c.h.b16 %v347
    %v1625 = vunpack.c.l.b16 %v348
    %v1626 = vunpack.c.h.b16 %v348
    %v1627 = vunpack.c.l.b16 %v349
    %v1628 = vunpack.c.h.b16 %v349
    %v1629 = vunpack.c.l.b16 %v350
    %v1630 = vunpack.c.h.b16 %v350
    %v1631 = vunpack.c.l.b16 %v351
    %v1632 = vunpack.c.h.b16 %v351
    %v1633 = vunpack.c.l.b16 %v352
    %v1634 = vunpack.c.h.b16 %v352
    %v1635 = vunpack.c.l.b16 %v353
    %v1636 = vunpack.c.h.b16 %v353
    %v1637 = vunpack.c.l.b16 %v354
    %v1638 = vunpack.c.h.b16 %v354
    %v1639 = vunpack.c.l.b16 %v355
    %v1640 = vunpack.c.h.b16 %v355
    %v1641 = vunpack.c.l.b16 %v356
    %v1642 = vunpack.c.h.b16 %v356
    %v1643 = vunpack.c.l.b16 %v357
    %v1644 = vunpack.c.h.b16 %v357
    %v1645 = vunpack.c.l.b16 %v358
    %v1646 = vunpack.c.h.b16 %v358
    %v1647 = vunpack.c.l.b16 %v359
    %v1648 = vunpack.c.h.b16 %v359
    %v1649 = vunpack.c.l.b16 %v360
    %v1650 = vunpack.c.h.b16 %v360
    %v1651 = vunpack.c.l.b16 %v361
    %v1652 = vunpack.c.h.b16 %v361
    %v1653 = vunpack.c.l.b16 %v362
    %v1654 = vunpack.c.h.b16 %v362
    %v1655 = vunpack.c.l.b16 %v363
    %v1656 = vunpack.c.h.b16 %v363
    %v1657 = vunpack.c.l.b16 %v364
    %v1658 = vunpack.c.h.b16 %v364
    %v1659 = vunpack.c.l.b16 %v365
    %v1660 = vunpack.c.h.b16 %v365
    %v1661 = vunpack.c.l.b16 %v366
    %v1662 = vunpack.c.h.b16 %v366
    %v1663 = vunpack.c.l.b16 %v367
    %v1664 = vunpack.c.h.b16 %v367
    %v1665 = vunpack.c.l.b16 %v368
    %v1666 = vunpack.c.h.b16 %v368
    %v1667 = vunpack.c.l.b16 %v369
    %v1668 = vunpack.c.h.b16 %v369
    %v1669 = vunpack.c.l.b16 %v370
    %v1670 = vunpack.c.h.b16 %v370
    %v1671 = vunpack.c.l.b16 %v371
    %v1672 = vunpack.c.h.b16 %v371
    %v1673 = vunpack.c.l.b16 %v372
    %v1674 = vunpack.c.h.b16 %v372
    %v1675 = vunpack.c.l.b16 %v373
    %v1676 = vunpack.c.h.b16 %v373
    %v1677 = vunpack.c.l.b16 %v374
    %v1678 = vunpack.c.h.b16 %v374
    %v1679 = vunpack.c.l.b16 %v375
    %v1680 = vunpack.c.h.b16 %v375
    %v1681 = vunpack.c.l.b16 %v376
    %v1682 = vunpack.c.h.b16 %v376
    %v1683 = vunpack.c.l.b16 %v377
    %v1684 = vunpack.c.h.b16 %v377
    %v1685 = vunpack.c.l.b16 %v378
    %v1686 = vunpack.c.h.b16 %v378
    %v1687 = vunpack.c.l.b16 %v379
    %v1688 = vunpack.c.h.b16 %v379
    %v1689 = vunpack.c.l.b16 %v380
    %v1690 = vunpack.c.h.b16 %v380
    %v1691 = vunpack.c.l.b16 %v381
    %v1692 = vunpack.c.h.b16 %v381
    %v1693 = vunpack.c.l.b16 %v382
    %v1694 = vunpack.c.h.b16 %v382
    %v1695 = vunpack.c.l.b16 %v383
    %v1696 = vunpack.c.h.b16 %v383
    %v1697 = vunpack.c.l.b16 %v384
    %v1698 = vunpack.c.h.b16 %v384
    %v1699 = vunpack.c.l.b16 %v385
    %v1700 = vunpack.c.h.b16 %v385
    %v1701 = vunpack.c.l.b16 %v386
    %v1702 = vunpack.c.h.b16 %v386
    %v1703 = vunpack.c.l.b16 %v387
    %v1704 = vunpack.c.h.b16 %v387
    %v1705 = vunpack.c.l.b16 %v388
    %v1706 = vunpack.c.h.b16 %v388
    %v1707 = vunpack.c.l.b16 %v389
    %v1708 = vunpack.c.h.b16 %v389
    %v1709 = vunpack.c.l.b16 %v390
    %v1710 = vunpack.c.h.b16 %v390
    %v1711 = vunpack.c.l.b16 %v391
    %v1712 = vunpack.c.h.b16 %v391
    %v1713 = vunpack.c.l.b16 %v392
    %v1714 = vunpack.c.h.b16 %v392
    %v1715 = vunpack.c.l.b16 %v393
    %v1716 = vunpack.c.h.b16 %v393
    %v1717 = vunpack.c.l.b16 %v394
    %v1718 = vunpack.c.h.b16 %v394
    %v1719 = vunpack.c.l.b16 %v395
    %v1720 = vunpack.c.h.b16 %v395
    %v1721 = vunpack.c.l.b16 %v396
    %v1722 = vunpack.c.h.b16 %v396
    %v1723 = vunpack.c.l.b16 %v397
    %v1724 = vunpack.c.h.b16 %v397
    %v1725 = vunpack.c.l.b16 %v398
    %v1726 = vunpack.c.h.b16 %v398
    %v1727 = vunpack.c.l.b16 %v399
    %v1728 = vunpack.c.h.b16 %v399
    %v1729 = vunpack.c.l.b16 %v400
    %v1730 = vunpack.c.h.b16 %v400
    %v1731 = vunpack.c.l.b16 %v401
    %v1732 = vunpack.c.h.b16 %v401
    %v1733 = vunpack.c.l.b16 %v402
    %v1734 = vunpack.c.h.b16 %v402
    %v1735 = vunpack.c.l.b16 %v403
    %v1736 = vunpack.c.h.b16 %v403
    %v1737 = vunpack.c.l.b16 %v404
    %v1738 = vunpack.c.h.b16 %v404
    %v1739 = vunpack.c.l.b16 %v405
    %v1740 = vunpack.c.h.b16 %v405
    %v1741 = vunpack.c.l.b16 %v406
    %v1742 = vunpack.c.h.b16 %v406
    %v1743 = vunpack.c.l.b16 %v407
    %v1744 = vunpack.c.h.b16 %v407
    %v1745 = vunpack.c.l.b16 %v408
    %v1746 = vunpack.c.h.b16 %v408
    %v1747 = vpack.c.b16 %v981, %v979
    %v1748 = vpack.c.b16 %v982, %v980
    %v1749 = vpack.c.b16 %v985, %v983
    %v1750 = vpack.c.b16 %v986, %v984
    %v1751 = vpack.c.b16 %v989, %v987
    %v1752 = vpack.c.b16 %v990, %v988
    %v1753 = vpack.c.b16 %v993, %v991
    %v1754 = vpack.c.b16 %v994, %v992
    %v1755 = vpack.c.b16 %v997, %v995
    %v1756 = vpack.c.b16 %v998, %v996
    %v1757 = vpack.c.b16 %v1001, %v999
    %v1758 = vpack.c.b16 %v1002, %v1000
    %v1759 = vpack.c.b16 %v1005, %v1003
    %v1760 = vpack.c.b16 %v1006, %v1004
    %v1761 = vpack.c.b16 %v1009, %v1007
    %v1762 = vpack.c.b16 %v1010, %v1008
    %v1763 = vpack.c.b16 %v1013, %v1011
    %v1764 = vpack.c.b16 %v1014, %v1012
    %v1765 = vpack.c.b16 %v1017, %v1015
    %v1766 = vpack.c.b16 %v1018, %v1016
    %v1767 = vpack.c.b16 %v1021, %v1019
    %v1768 = vpack.c.b16 %v1022, %v1020
    %v1769 = vpack.c.b16 %v1025, %v1023
    %v1770 = vpack.c.b16 %v1026, %v1024
    %v1771 = vpack.c.b16 %v1029, %v1027
    %v1772 = vpack.c.b16 %v1030, %v1028
    %v1773 = vpack.c.b16 %v1033, %v1031
    %v1774 = vpack.c.b16 %v1034, %v1032
    %v1775 = vpack.c.b16 %v1037, %v1035
    %v1776 = vpack.c.b16 %v1038, %v1036
    %v1777 = vpack.c.b16 %v1041, %v1039
    %v1778 = vpack.c.b16 %v1042, %v1040
    %v1779 = vpack.c.b16 %v1045, %v1043
    %v1780 = vpack.c.b16 %v1046, %v1044
    %v1781 = vpack.c.b16 %v1049, %v1047
    %v1782 = vpack.c.b16 %v1050, %v1048
    %v1783 = vpack.c.b16 %v1053, %v1051
    %v1784 = vpack.c.b16 %v1054, %v1052
    %v1785 = vpack.c.b16 %v1057, %v1055
    %v1786 = vpack.c.b16 %v1058, %v1056
    %v1787 = vpack.c.b16 %v1061, %v1059
    %v1788 = vpack.c.b16 %v1062, %v1060
    %v1789 = vpack.c.b16 %v1065, %v1063
    %v1790 = vpack.c.b16 %v1066, %v1064
    %v1791 = vpack.c.b16 %v1069, %v1067
    %v1792 = vpack.c.b16 %v1070, %v1068
    %v1793 = vpack.c.b16 %v1073, %v1071
    %v1794 = vpack.c.b16 %v1074, %v1072
    %v1795 = vpack.c.b16 %v1077, %v1075
    %v1796 = vpack.c.b16 %v1078, %v1076
    %v1797 = vpack.c.b16 %v1081, %v1079
    %v1798 = vpack.c.b16 %v1082, %v1080
    %v1799 = vpack.c.b16 %v1085, %v1083
    %v1800 = vpack.c.b16 %v1086, %v1084
    %v1801 = vpack.c.b16 %v1089, %v1087
    %v1802 = vpack.c.b16 %v1090, %v1088
    %v1803 = vpack.c.b16 %v1093, %v1091
    %v1804 = vpack.c.b16 %v1094, %v1092
    %v1805 = vpack.c.b16 %v1097, %v1095
    %v1806 = vpack.c.b16 %v1098, %v1096
    %v1807 = vpack.c.b16 %v1101, %v1099
    %v1808 = vpack.c.b16 %v1102, %v1100
    %v1809 = vpack.c.b16 %v1105, %v1103
    %v1810 = vpack.c.b16 %v1106, %v1104
    %v1811 = vpack.c.b16 %v1109, %v1107
    %v1812 = vpack.c.b16 %v1110, %v1108
    %v1813 = vpack.c.b16 %v1113, %v1111
    %v1814 = vpack.c.b16 %v1114, %v1112
    %v1815 = vpack.c.b16 %v1117, %v1115
    %v1816 = vpack.c.b16 %v1118, %v1116
    %v1817 = vpack.c.b16 %v1121, %v1119
    %v1818 = vpack.c.b16 %v1122, %v1120
    %v1819 = vpack.c.b16 %v1125, %v1123
    %v1820 = vpack.c.b16 %v1126, %v1124
    %v1821 = vpack.c.b16 %v1129, %v1127
    %v1822 = vpack.c.b16 %v1130, %v1128
    %v1823 = vpack.c.b16 %v1133, %v1131
    %v1824 = vpack.c.b16 %v1134, %v1132
    %v1825 = vpack.c.b16 %v1137, %v1135
    %v1826 = vpack.c.b16 %v1138, %v1136
    %v1827 = vpack.c.b16 %v1141, %v1139
    %v1828 = vpack.c.b16 %v1142, %v1140
    %v1829 = vpack.c.b16 %v1145, %v1143
    %v1830 = vpack.c.b16 %v1146, %v1144
    %v1831 = vpack.c.b16 %v1149, %v1147
    %v1832 = vpack.c.b16 %v1150, %v1148
    %v1833 = vpack.c.b16 %v1153, %v1151
    %v1834 = vpack.c.b16 %v1154, %v1152
    %v1835 = vpack.c.b16 %v1157, %v1155
    %v1836 = vpack.c.b16 %v1158, %v1156
    %v1837 = vpack.c.b16 %v1161, %v1159
    %v1838 = vpack.c.b16 %v1162, %v1160
    %v1839 = vpack.c.b16 %v1165, %v1163
    %v1840 = vpack.c.b16 %v1166, %v1164
    %v1841 = vpack.c.b16 %v1169, %v1167
    %v1842 = vpack.c.b16 %v1170, %v1168
    %v1843 = vpack.c.b16 %v1173, %v1171
    %v1844 = vpack.c.b16 %v1174, %v1172
    %v1845 = vpack.c.b16 %v1177, %v1175
    %v1846 = vpack.c.b16 %v1178, %v1176
    %v1847 = vpack.c.b16 %v1181, %v1179
    %v1848 = vpack.c.b16 %v1182, %v1180
    %v1849 = vpack.c.b16 %v1185, %v1183
    %v1850 = vpack.c.b16 %v1186, %v1184
    %v1851 = vpack.c.b16 %v1189, %v1187
    %v1852 = vpack.c.b16 %v1190, %v1188
    %v1853 = vpack.c.b16 %v1193, %v1191
    %v1854 = vpack.c.b16 %v1194, %v1192
    %v1855 = vpack.c.b16 %v1197, %v1195
    %v1856 = vpack.c.b16 %v1198, %v1196
    %v1857 = vpack.c.b16 %v1201, %v1199
    %v1858 = vpack.c.b16 %v1202, %v1200
    %v1859 = vpack.c.b16 %v1205, %v1203
    %v1860 = vpack.c.b16 %v1206, %v1204
    %v1861 = vpack.c.b16 %v1209, %v1207
    %v1862 = vpack.c.b16 %v1210, %v1208
    %v1863 = vpack.c.b16 %v1213, %v1211
    %v1864 = vpack.c.b16 %v1214, %v1212
    %v1865 = vpack.c.b16 %v1217, %v1215
    %v1866 = vpack.c.b16 %v1218, %v1216
    %v1867 = vpack.c.b16 %v1221, %v1219
    %v1868 = vpack.c.b16 %v1222, %v1220
    %v1869 = vpack.c.b16 %v1225, %v1223
    %v1870 = vpack.c.b16 %v1226, %v1224
    %v1871 = vpack.c.b16 %v1229, %v1227
    %v1872 = vpack.c.b16 %v1230, %v1228
    %v1873 = vpack.c.b16 %v1233, %v1231
    %v1874 = vpack.c.b16 %v1234, %v1232
    %v1875 = vpack.c.b16 %v1237, %v1235
    %v1876 = vpack.c.b16 %v1238, %v1236
    %v1877 = vpack.c.b16 %v1241, %v1239
    %v1878 = vpack.c.b16 %v1242, %v1240
    %v1879 = vpack.c.b16 %v1245, %v1243
    %v1880 = vpack.c.b16 %v1246, %v1244
    %v1881 = vpack.c.b16 %v1249, %v1247
    %v1882 = vpack.c.b16 %v1250, %v1248
    %v1883 = vpack.c.b16 %v1253, %v1251
    %v1884 = vpack.c.b16 %v1254, %v1252
    %v1885 = vpack.c.b16 %v1257, %v1255
    %v1886 = vpack.c.b16 %v1258, %v1256
    %v1887 = vpack.c.b16 %v1261, %v1259
    %v1888 = vpack.c.b16 %v1262, %v1260
    %v1889 = vpack.c.b16 %v1265, %v1263
    %v1890 = vpack.c.b16 %v1266, %v1264
    %v1891 = vpack.c.b16 %v1269, %v1267
    %v1892 = vpack.c.b16 %v1270, %v1268
    %v1893 = vpack.c.b16 %v1273, %v1271
    %v1894 = vpack.c.b16 %v1274, %v1272
    %v1895 = vpack.c.b16 %v1277, %v1275
    %v1896 = vpack.c.b16 %v1278, %v1276
    %v1897 = vpack.c.b16 %v1281, %v1279
    %v1898 = vpack.c.b16 %v1282, %v1280
    %v1899 = vpack.c.b16 %v1285, %v1283
    %v1900 = vpack.c.b16 %v1286, %v1284
    %v1901 = vpack.c.b16 %v1289, %v1287
    %v1902 = vpack.c.b16 %v1290, %v1288
    %v1903 = vpack.c.b16 %v1293, %v1291
    %v1904 = vpack.c.b16 %v1294, %v1292
    %v1905 = vpack.c.b16 %v1297, %v1295
    %v1906 = vpack.c.b16 %v1298, %v1296
    %v1907 = vpack.c.b16 %v1301, %v1299
    %v1908 = vpack.c.b16 %v1302, %v1300
    %v1909 = vpack.c.b16 %v1305, %v1303
    %v1910 = vpack.c.b16 %v1306, %v1304
    %v1911 = vpack.c.b16 %v1309, %v1307
    %v1912 = vpack.c.b16 %v1310, %v1308
    %v1913 = vpack.c.b16 %v1313, %v1311
    %v1914 = vpack.c.b16 %v1314, %v1312
    %v1915 = vpack.c.b16 %v1317, %v1315
    %v1916 = vpack.c.b16 %v1318, %v1316
    %v1917 = vpack.c.b16 %v1321, %v1319
    %v1918 = vpack.c.b16 %v1322, %v1320
    %v1919 = vpack.c.b16 %v1325, %v1323
    %v1920 = vpack.c.b16 %v1326, %v1324
    %v1921 = vpack.c.b16 %v1329, %v1327
    %v1922 = vpack.c.b16 %v1330, %v1328
    %v1923 = vpack.c.b16 %v1333, %v1331
    %v1924 = vpack.c.b16 %v1334, %v1332
    %v1925 = vpack.c.b16 %v1337, %v1335
    %v1926 = vpack.c.b16 %v1338, %v1336
    %v1927 = vpack.c.b16 %v1341, %v1339
    %v1928 = vpack.c.b16 %v1342, %v1340
    %v1929 = vpack.c.b16 %v1345, %v1343
    %v1930 = vpack.c.b16 %v1346, %v1344
    %v1931 = vpack.c.b16 %v1349, %v1347
    %v1932 = vpack.c.b16 %v1350, %v1348
    %v1933 = vpack.c.b16 %v1353, %v1351
    %v1934 = vpack.c.b16 %v1354, %v1352
    %v1935 = vpack.c.b16 %v1357, %v1355
    %v1936 = vpack.c.b16 %v1358, %v1356
    %v1937 = vpack.c.b16 %v1361, %v1359
    %v1938 = vpack.c.b16 %v1362, %v1360
    %v1939 = vpack.c.b16 %v1365, %v1363
    %v1940 = vpack.c.b16 %v1366, %v1364
    %v1941 = vpack.c.b16 %v1369, %v1367
    %v1942 = vpack.c.b16 %v1370, %v1368
    %v1943 = vpack.c.b16 %v1373, %v1371
    %v1944 = vpack.c.b16 %v1374, %v1372
    %v1945 = vpack.c.b16 %v1377, %v1375
    %v1946 = vpack.c.b16 %v1378, %v1376
    %v1947 = vpack.c.b16 %v1381, %v1379
    %v1948 = vpack.c.b16 %v1382, %v1380
    %v1949 = vpack.c.b16 %v1385, %v1383
    %v1950 = vpack.c.b16 %v1386, %v1384
    %v1951 = vpack.c.b16 %v1389, %v1387
    %v1952 = vpack.c.b16 %v1390, %v1388
    %v1953 = vpack.c.b16 %v1393, %v1391
    %v1954 = vpack.c.b16 %v1394, %v1392
    %v1955 = vpack.c.b16 %v1397, %v1395
    %v1956 = vpack.c.b16 %v1398, %v1396
    %v1957 = vpack.c.b16 %v1401, %v1399
    %v1958 = vpack.c.b16 %v1402, %v1400
    %v1959 = vpack.c.b16 %v1405, %v1403
    %v1960 = vpack.c.b16 %v1406, %v1404
    %v1961 = vpack.c.b16 %v1409, %v1407
    %v1962 = vpack.c.b16 %v1410, %v1408
    %v1963 = vpack.c.b16 %v1413, %v1411
    %v1964 = vpack.c.b16 %v1414, %v1412
    %v1965 = vpack.c.b16 %v1417, %v1415
    %v1966 = vpack.c.b16 %v1418, %v1416
    %v1967 = vpack.c.b16 %v1421, %v1419
    %v1968 = vpack.c.b16 %v1422, %v1420
    %v1969 = vpack.c.b16 %v1425, %v1423
    %v1970 = vpack.c.b16 %v1426, %v1424
    %v1971 = vpack.c.b16 %v1429, %v1427
    %v1972 = vpack.c.b16 %v1430, %v1428
    %v1973 = vpack.c.b16 %v1433, %v1431
    %v1974 = vpack.c.b16 %v1434, %v1432
    %v1975 = vpack.c.b16 %v1437, %v1435
    %v1976 = vpack.c.b16 %v1438, %v1436
    %v1977 = vpack.c.b16 %v1441, %v1439
    %v1978 = vpack.c.b16 %v1442, %v1440
    %v1979 = vpack.c.b16 %v1445, %v1443
    %v1980 = vpack.c.b16 %v1446, %v1444
    %v1981 = vpack.c.b16 %v1449, %v1447
    %v1982 = vpack.c.b16 %v1450, %v1448
    %v1983 = vpack.c.b16 %v1453, %v1451
    %v1984 = vpack.c.b16 %v1454, %v1452
    %v1985 = vpack.c.b16 %v1457, %v1455
    %v1986 = vpack.c.b16 %v1458, %v1456
    %v1987 = vpack.c.b16 %v1461, %v1459
    %v1988 = vpack.c.b16 %v1462, %v1460
    %v1989 = vpack.c.b16 %v1465, %v1463
    %v1990 = vpack.c.b16 %v1466, %v1464
    %v1991 = vpack.c.b16 %v1469, %v1467
    %v1992 = vpack.c.b16 %v1470, %v1468
    %v1993 = vpack.c.b16 %v1473, %v1471
    %v1994 = vpack.c.b16 %v1474, %v1472
    %v1995 = vpack.c.b16 %v1477, %v1475
    %v1996 = vpack.c.b16 %v1478, %v1476
    %v1997 = vpack.c.b16 %v1481, %v1479
    %v1998 = vpack.c.b16 %v1482, %v1480
    %v1999 = vpack.c.b16 %v1485, %v1483
    %v2000 = vpack.c.b16 %v1486, %v1484
    %v2001 = vpack.c.b16 %v1489, %v1487
    %v2002 = vpack.c.b16 %v1490, %v1488
    %v2003 = vpack.c.b16 %v1493, %v1491
    %v2004 = vpack.c.b16 %v1494, %v1492
    %v2005 = vpack.c.b16 %v1497, %v1495
    %v2006 = vpack.c.b16 %v1498, %v1496
    %v2007 = vpack.c.b16 %v1501, %v1499
    %v2008 = vpack.c.b16 %v1502, %v1500
    %v2009 = vpack.c.b16 %v1505, %v1503
    %v2010 = vpack.c.b16 %v1506, %v1504
    %v2011 = vpack.c.b16 %v1509, %v1507
    %v2012 = vpack.c.b16 %v1510, %v1508
    %v2013 = vpack.c.b16 %v1513, %v1511
    %v2014 = vpack.c.b16 %v1514, %v1512
    %v2015 = vpack.c.b16 %v1517, %v1515
    %v2016 = vpack.c.b16 %v1518, %v1516
    %v2017 = vpack.c.b16 %v1521, %v1519
    %v2018 = vpack.c.b16 %v1522, %v1520
    %v2019 = vpack.c.b16 %v1525, %v1523
    %v2020 = vpack.c.b16 %v1526, %v1524
    %v2021 = vpack.c.b16 %v1529, %v1527
    %v2022 = vpack.c.b16 %v1530, %v1528
    %v2023 = vpack.c.b16 %v1533, %v1531
    %v2024 = vpack.c.b16 %v1534, %v1532
    %v2025 = vpack.c.b16 %v1537, %v1535
    %v2026 = vpack.c.b16 %v1538, %v1536
    %v2027 = vpack.c.b16 %v1541, %v1539
    %v2028 = vpack.c.b16 %v1542, %v1540
    %v2029 = vpack.c.b16 %v1545, %v1543
    %v2030 = vpack.c.b16 %v1546, %v1544
    %v2031 = vpack.c.b16 %v1549, %v1547
    %v2032 = vpack.c.b16 %v1550, %v1548
    %v2033 = vpack.c.b16 %v1553, %v1551
    %v2034 = vpack.c.b16 %v1554, %v1552
    %v2035 = vpack.c.b16 %v1557, %v1555
    %v2036 = vpack.c.b16 %v1558, %v1556
    %v2037 = vpack.c.b16 %v1561, %v1559
    %v2038 = vpack.c.b16 %v1562, %v1560
    %v2039 = vpack.c.b16 %v1565, %v1563
    %v2040 = vpack.c.b16 %v1566, %v1564
    %v2041 = vpack.c.b16 %v1569, %v1567
    %v2042 = vpack.c.b16 %v1570, %v1568
    %v2043 = vpack.c.b16 %v1573, %v1571
    %v2044 = vpack.c.b16 %v1574, %v1572
    %v2045 = vpack.c.b16 %v1577, %v1575
    %v2046 = vpack.c.b16 %v1578, %v1576
    %v2047 = vpack.c.b16 %v1581, %v1579
    %v2048 = vpack.c.b16 %v1582, %v1580
    %v2049 = vpack.c.b16 %v1585, %v1583
    %v2050 = vpack.c.b16 %v1586, %v1584
    %v2051 = vpack.c.b16 %v1589, %v1587
    %v2052 = vpack.c.b16 %v1590, %v1588
    %v2053 = vpack.c.b16 %v1593, %v1591
    %v2054 = vpack.c.b16 %v1594, %v1592
    %v2055 = vpack.c.b16 %v1597, %v1595
    %v2056 = vpack.c.b16 %v1598, %v1596
    %v2057 = vpack.c.b16 %v1601, %v1599
    %v2058 = vpack.c.b16 %v1602, %v1600
    %v2059 = vpack.c.b16 %v1605, %v1603
    %v2060 = vpack.c.b16 %v1606, %v1604
    %v2061 = vpack.c.b16 %v1609, %v1607
    %v2062 = vpack.c.b16 %v1610, %v1608
    %v2063 = vpack.c.b16 %v1613, %v1611
    %v2064 = vpack.c.b16 %v1614, %v1612
    %v2065 = vpack.c.b16 %v1617, %v1615
    %v2066 = vpack.c.b16 %v1618, %v1616
    %v2067 = vpack.c.b16 %v1621, %v1619
    %v2068 = vpack.c.b16 %v1622, %v1620
    %v2069 = vpack.c.b16 %v1625, %v1623
    %v2070 = vpack.c.b16 %v1626, %v1624
    %v2071 = vpack.c.b16 %v1629, %v1627
    %v2072 = vpack.c.b16 %v1630, %v1628
    %v2073 = vpack.c.b16 %v1633, %v1631
    %v2074 = vpack.c.b16 %v1634, %v1632
    %v2075 = vpack.c.b16 %v1637, %v1635
    %v2076 = vpack.c.b16 %v1638, %v1636
    %v2077 = vpack.c.b16 %v1641, %v1639
    %v2078 = vpack.c.b16 %v1642, %v1640
    %v2079 = vpack.c.b16 %v1645, %v1643
    %v2080 = vpack.c.b16 %v1646, %v1644
    %v2081 = vpack.c.b16 %v1649, %v1647
    %v2082 = vpack.c.b16 %v1650, %v1648
    %v2083 = vpack.c.b16 %v1653, %v1651
    %v2084 = vpack.c.b16 %v1654, %v1652
    %v2085 = vpack.c.b16 %v1657, %v1655
    %v2086 = vpack.c.b16 %v1658, %v1656
    %v2087 = vpack.c.b16 %v1661, %v1659
    %v2088 = vpack.c.b16 %v1662, %v1660
    %v2089 = vpack.c.b16 %v1665, %v1663
    %v2090 = vpack.c.b16 %v1666, %v1664
    %v2091 = vpack.c.b16 %v1669, %v1667
    %v2092 = vpack.c.b16 %v1670, %v1668
    %v2093 = vpack.c.b16 %v1673, %v1671
    %v2094 = vpack.c.b16 %v1674, %v1672
    %v2095 = vpack.c.b16 %v1677, %v1675
    %v2096 = vpack.c.b16 %v1678, %v1676
    %v2097 = vpack.c.b16 %v1681, %v1679
    %v2098 = vpack.c.b16 %v1682, %v1680
    %v2099 = vpack.c.b16 %v1685, %v1683
    %v2100 = vpack.c.b16 %v1686, %v1684
    %v2101 = vpack.c.b16 %v1689, %v1687
    %v2102 = vpack.c.b16 %v1690, %v1688
    %v2103 = vpack.c.b16 %v1693, %v1691
    %v2104 = vpack.c.b16 %v1694, %v1692
    %v2105 = vpack.c.b16 %v1697, %v1695
    %v2106 = vpack.c.b16 %v1698, %v1696
    %v2107 = vpack.c.b16 %v1701, %v1699
    %v2108 = vpack.c.b16 %v1702, %v1700
    %v2109 = vpack.c.b16 %v1705, %v1703
    %v2110 = vpack.c.b16 %v1706, %v1704
    %v2111 = vpack.c.b16 %v1709, %v1707
    %v2112 = vpack.c.b16 %v1710, %v1708
    %v2113 = vpack.c.b16 %v1713, %v1711
    %v2114 = vpack.c.b16 %v1714, %v1712
    %v2115 = vpack.c.b16 %v1717, %v1715
    %v2116 = vpack.c.b16 %v1718, %v1716
    %v2117 = vpack.c.b16 %v1721, %v1719
    %v2118 = vpack.c.b16 %v1722, %v1720
    %v2119 = vpack.c.b16 %v1725, %v1723
    %v2120 = vpack.c.b16 %v1726, %v1724
    %v2121 = vpack.c.b16 %v1729, %v1727
    %v2122 = vpack.c.b16 %v1730, %v1728
    %v2123 = vpack.c.b16 %v1733, %v1731
    %v2124 = vpack.c.b16 %v1734, %v1732
    %v2125 = vpack.c.b16 %v1737, %v1735
    %v2126 = vpack.c.b16 %v1738, %v1736
    %v2127 = vpack.c.b16 %v1741, %v1739
    %v2128 = vpack.c.b16 %v1742, %v1740
    %v2129 = vpack.c.b16 %v1745, %v1743
    %v2130 = vpack.c.b16 %v1746, %v1744
    %2515 = vmatprep.subr.bf16.mxu0 %v1748
    %2516 = vmatpush1.bf16.msra.mxu0 %v1747
    %2517 = vmatprep.subr.bf16.mxu0 %v1750
    %2518 = vmatpush1.bf16.msra.mxu0 %v1749
    %2519 = vmatprep.subr.bf16.mxu0 %v1752
    %2520 = vmatpush1.bf16.msra.mxu0 %v1751
    %2521 = vmatprep.subr.bf16.mxu0 %v1754
    %2522 = vmatpush1.bf16.msra.mxu0 %v1753
    %2523 = vmatprep.subr.bf16.mxu0 %v1756
    %2524 = vmatpush1.bf16.msra.mxu0 %v1755
    %2525 = vmatprep.subr.bf16.mxu0 %v1758
    %2526 = vmatpush1.bf16.msra.mxu0 %v1757
    %2527 = vmatprep.subr.bf16.mxu0 %v1760
    %2528 = vmatpush1.bf16.msra.mxu0 %v1759
    %2529 = vmatprep.subr.bf16.mxu0 %v1762
    %2530 = vmatpush1.bf16.msra.mxu0 %v1761
    %2531 = vmatprep.subr.bf16.mxu0 %v1764
    %2532 = vmatpush1.bf16.msra.mxu0 %v1763
    %2533 = vmatprep.subr.bf16.mxu0 %v1766
    %2534 = vmatpush1.bf16.msra.mxu0 %v1765
    %2535 = vmatprep.subr.bf16.mxu0 %v1768
    %2536 = vmatpush1.bf16.msra.mxu0 %v1767
    %2537 = vmatprep.subr.bf16.mxu0 %v1770
    %2538 = vmatpush1.bf16.msra.mxu0 %v1769
    %2539 = vmatprep.subr.bf16.mxu0 %v1772
    %2540 = vmatpush1.bf16.msra.mxu0 %v1771
    %2541 = vmatprep.subr.bf16.mxu0 %v1774
    %2542 = vmatpush1.bf16.msra.mxu0 %v1773
    %2543 = vmatprep.subr.bf16.mxu0 %v1776
    %2544 = vmatpush1.bf16.msra.mxu0 %v1775
    %2545 = vmatprep.subr.bf16.mxu0 %v1778
    %2546 = vmatpush1.bf16.msra.mxu0 %v1777
    %2547 = vmatprep.mubr.bf16.mxu0 %v461
    %2548 = vmatmul.mubr.bf16.gmra.mrb[0].mxu0 %v447
    %v2549 = vpop.f32.mrb[0].mxu0
    %v2550 = vadd.f32 %v414, %v2549
    %v2551 = vpop.f32.mrb[0].mxu0
    %v2552 = vadd.f32 %v418, %v2551
    %v2553 = vpop.f32.mrb[0].mxu0
    %v2554 = vpop.f32.mrb[0].mxu0
    %2555 = vdwg.mxu0
    %2556 = vmatprep.subr.bf16.mxu0 %v1780
    %2557 = vmatpush1.bf16.msra.mxu0 %v1779
    %2558 = vmatprep.subr.bf16.mxu0 %v1782
    %2559 = vmatpush1.bf16.msra.mxu0 %v1781
    %2560 = vmatprep.subr.bf16.mxu0 %v1784
    %2561 = vmatpush1.bf16.msra.mxu0 %v1783
    %2562 = vmatprep.subr.bf16.mxu0 %v1786
    %2563 = vmatpush1.bf16.msra.mxu0 %v1785
    %2564 = vmatprep.subr.bf16.mxu0 %v1788
    %2565 = vmatpush1.bf16.msra.mxu0 %v1787
    %2566 = vmatprep.subr.bf16.mxu0 %v1790
    %2567 = vmatpush1.bf16.msra.mxu0 %v1789
    %2568 = vmatprep.subr.bf16.mxu0 %v1792
    %2569 = vmatpush1.bf16.msra.mxu0 %v1791
    %2570 = vmatprep.subr.bf16.mxu0 %v1794
    %2571 = vmatpush1.bf16.msra.mxu0 %v1793
    %2572 = vmatprep.subr.bf16.mxu0 %v1796
    %2573 = vmatpush1.bf16.msra.mxu0 %v1795
    %2574 = vmatprep.subr.bf16.mxu0 %v1798
    %2575 = vmatpush1.bf16.msra.mxu0 %v1797
    %2576 = vmatprep.subr.bf16.mxu0 %v1800
    %2577 = vmatpush1.bf16.msra.mxu0 %v1799
    %2578 = vmatprep.subr.bf16.mxu0 %v1802
    %2579 = vmatpush1.bf16.msra.mxu0 %v1801
    %2580 = vmatprep.subr.bf16.mxu0 %v1804
    %2581 = vmatpush1.bf16.msra.mxu0 %v1803
    %2582 = vmatprep.subr.bf16.mxu0 %v1806
    %2583 = vmatpush1.bf16.msra.mxu0 %v1805
    %2584 = vmatprep.subr.bf16.mxu0 %v1808
    %2585 = vmatpush1.bf16.msra.mxu0 %v1807
    %2586 = vmatprep.subr.bf16.mxu0 %v1810
    %2587 = vmatpush1.bf16.msra.mxu0 %v1809
    %2588 = vmatprep.mubr.bf16.mxu0 %v471
    %2589 = vmatmul.mubr.bf16.gmra.mrb[0].mxu0 %v469
    %v2590 = vpop.f32.mrb[0].mxu0
    %v2591 = vadd.f32 %v2550, %v2590
    %v2592 = vpop.f32.mrb[0].mxu0
    %v2593 = vadd.f32 %v2552, %v2592
    %v2594 = vpop.f32.mrb[0].mxu0
    %v2595 = vpop.f32.mrb[0].mxu0
    %2596 = vdwg.mxu0
    %2597 = vmatprep.subr.bf16.mxu0 %v1812
    %2598 = vmatpush1.bf16.msra.mxu0 %v1811
    %2599 = vmatprep.subr.bf16.mxu0 %v1814
    %2600 = vmatpush1.bf16.msra.mxu0 %v1813
    %2601 = vmatprep.subr.bf16.mxu0 %v1816
    %2602 = vmatpush1.bf16.msra.mxu0 %v1815
    %2603 = vmatprep.subr.bf16.mxu0 %v1818
    %2604 = vmatpush1.bf16.msra.mxu0 %v1817
    %2605 = vmatprep.subr.bf16.mxu0 %v1820
    %2606 = vmatpush1.bf16.msra.mxu0 %v1819
    %2607 = vmatprep.subr.bf16.mxu0 %v1822
    %2608 = vmatpush1.bf16.msra.mxu0 %v1821
    %2609 = vmatprep.subr.bf16.mxu0 %v1824
    %2610 = vmatpush1.bf16.msra.mxu0 %v1823
    %2611 = vmatprep.subr.bf16.mxu0 %v1826
    %2612 = vmatpush1.bf16.msra.mxu0 %v1825
    %2613 = vmatprep.subr.bf16.mxu0 %v1828
    %2614 = vmatpush1.bf16.msra.mxu0 %v1827
    %2615 = vmatprep.subr.bf16.mxu0 %v1830
    %2616 = vmatpush1.bf16.msra.mxu0 %v1829
    %2617 = vmatprep.subr.bf16.mxu0 %v1832
    %2618 = vmatpush1.bf16.msra.mxu0 %v1831
    %2619 = vmatprep.subr.bf16.mxu0 %v1834
    %2620 = vmatpush1.bf16.msra.mxu0 %v1833
    %2621 = vmatprep.subr.bf16.mxu0 %v1836
    %2622 = vmatpush1.bf16.msra.mxu0 %v1835
    %2623 = vmatprep.subr.bf16.mxu0 %v1838
    %2624 = vmatpush1.bf16.msra.mxu0 %v1837
    %2625 = vmatprep.subr.bf16.mxu0 %v1840
    %2626 = vmatpush1.bf16.msra.mxu0 %v1839
    %2627 = vmatprep.subr.bf16.mxu0 %v1842
    %2628 = vmatpush1.bf16.msra.mxu0 %v1841
    %2629 = vmatprep.mubr.bf16.mxu0 %v468
    %2630 = vmatmul.mubr.bf16.gmra.mrb[0].mxu0 %v454
    %v2631 = vpop.f32.mrb[0].mxu0
    %v2632 = vadd.f32 %v2591, %v2631
    %v2633 = vpop.f32.mrb[0].mxu0
    %v2634 = vadd.f32 %v2593, %v2633
    %v2635 = vpop.f32.mrb[0].mxu0
    %v2636 = vpop.f32.mrb[0].mxu0
    %2637 = vdwg.mxu0
    %2638 = vmatprep.subr.bf16.mxu0 %v1844
    %2639 = vmatpush1.bf16.msra.mxu0 %v1843
    %2640 = vmatprep.subr.bf16.mxu0 %v1846
    %2641 = vmatpush1.bf16.msra.mxu0 %v1845
    %2642 = vmatprep.subr.bf16.mxu0 %v1848
    %2643 = vmatpush1.bf16.msra.mxu0 %v1847
    %2644 = vmatprep.subr.bf16.mxu0 %v1850
    %2645 = vmatpush1.bf16.msra.mxu0 %v1849
    %2646 = vmatprep.subr.bf16.mxu0 %v1852
    %2647 = vmatpush1.bf16.msra.mxu0 %v1851
    %2648 = vmatprep.subr.bf16.mxu0 %v1854
    %2649 = vmatpush1.bf16.msra.mxu0 %v1853
    %2650 = vmatprep.subr.bf16.mxu0 %v1856
    %2651 = vmatpush1.bf16.msra.mxu0 %v1855
    %2652 = vmatprep.subr.bf16.mxu0 %v1858
    %2653 = vmatpush1.bf16.msra.mxu0 %v1857
    %2654 = vmatprep.subr.bf16.mxu0 %v1860
    %2655 = vmatpush1.bf16.msra.mxu0 %v1859
    %2656 = vmatprep.subr.bf16.mxu0 %v1862
    %2657 = vmatpush1.bf16.msra.mxu0 %v1861
    %2658 = vmatprep.subr.bf16.mxu0 %v1864
    %2659 = vmatpush1.bf16.msra.mxu0 %v1863
    %2660 = vmatprep.subr.bf16.mxu0 %v1866
    %2661 = vmatpush1.bf16.msra.mxu0 %v1865
    %2662 = vmatprep.subr.bf16.mxu0 %v1868
    %2663 = vmatpush1.bf16.msra.mxu0 %v1867
    %2664 = vmatprep.subr.bf16.mxu0 %v1870
    %2665 = vmatpush1.bf16.msra.mxu0 %v1869
    %2666 = vmatprep.subr.bf16.mxu0 %v1872
    %2667 = vmatpush1.bf16.msra.mxu0 %v1871
    %2668 = vmatprep.subr.bf16.mxu0 %v1874
    %2669 = vmatpush1.bf16.msra.mxu0 %v1873
    %2670 = vmatprep.mubr.bf16.mxu0 %v472
    %2671 = vmatmul.mubr.bf16.gmra.mrb[0].mxu0 %v470
    %v2672 = vpop.f32.mrb[0].mxu0
    %v2673 = vadd.f32 %v2632, %v2672
    %v2674 = vpop.f32.mrb[0].mxu0
    %v2675 = vadd.f32 %v2634, %v2674
    %v2676 = vpop.f32.mrb[0].mxu0
    %v2677 = vpop.f32.mrb[0].mxu0
    %2678 = vdwg.mxu0
    %2679 = vmatprep.subr.bf16.mxu0 %v1876
    %2680 = vmatpush1.bf16.msra.mxu0 %v1875
    %2681 = vmatprep.subr.bf16.mxu0 %v1878
    %2682 = vmatpush1.bf16.msra.mxu0 %v1877
    %2683 = vmatprep.subr.bf16.mxu0 %v1880
    %2684 = vmatpush1.bf16.msra.mxu0 %v1879
    %2685 = vmatprep.subr.bf16.mxu0 %v1882
    %2686 = vmatpush1.bf16.msra.mxu0 %v1881
    %2687 = vmatprep.subr.bf16.mxu0 %v1884
    %2688 = vmatpush1.bf16.msra.mxu0 %v1883
    %2689 = vmatprep.subr.bf16.mxu0 %v1886
    %2690 = vmatpush1.bf16.msra.mxu0 %v1885
    %2691 = vmatprep.subr.bf16.mxu0 %v1888
    %2692 = vmatpush1.bf16.msra.mxu0 %v1887
    %2693 = vmatprep.subr.bf16.mxu0 %v1890
    %2694 = vmatpush1.bf16.msra.mxu0 %v1889
    %2695 = vmatprep.subr.bf16.mxu0 %v1892
    %2696 = vmatpush1.bf16.msra.mxu0 %v1891
    %2697 = vmatprep.subr.bf16.mxu0 %v1894
    %2698 = vmatpush1.bf16.msra.mxu0 %v1893
    %2699 = vmatprep.subr.bf16.mxu0 %v1896
    %2700 = vmatpush1.bf16.msra.mxu0 %v1895
    %2701 = vmatprep.subr.bf16.mxu0 %v1898
    %2702 = vmatpush1.bf16.msra.mxu0 %v1897
    %2703 = vmatprep.subr.bf16.mxu0 %v1900
    %2704 = vmatpush1.bf16.msra.mxu0 %v1899
    %2705 = vmatprep.subr.bf16.mxu0 %v1902
    %2706 = vmatpush1.bf16.msra.mxu0 %v1901
    %2707 = vmatprep.subr.bf16.mxu0 %v1904
    %2708 = vmatpush1.bf16.msra.mxu0 %v1903
    %2709 = vmatprep.subr.bf16.mxu0 %v1906
    %2710 = vmatpush1.bf16.msra.mxu0 %v1905
    %2711 = vmatprep.mubr.bf16.mxu0 %v510
    %2712 = vmatmul.mubr.bf16.gmra.mrb[0].mxu0 %v496
    %v2713 = vpop.f32.mrb[0].mxu0
    %v2714 = vadd.f32 %v2673, %v2713
    %v2715 = vpop.f32.mrb[0].mxu0
    %v2716 = vadd.f32 %v2675, %v2715
    %v2717 = vpop.f32.mrb[0].mxu0
    %v2718 = vpop.f32.mrb[0].mxu0
    %2719 = vdwg.mxu0
    %2720 = vmatprep.subr.bf16.mxu0 %v1908
    %2721 = vmatpush1.bf16.msra.mxu0 %v1907
    %2722 = vmatprep.subr.bf16.mxu0 %v1910
    %2723 = vmatpush1.bf16.msra.mxu0 %v1909
    %2724 = vmatprep.subr.bf16.mxu0 %v1912
    %2725 = vmatpush1.bf16.msra.mxu0 %v1911
    %2726 = vmatprep.subr.bf16.mxu0 %v1914
    %2727 = vmatpush1.bf16.msra.mxu0 %v1913
    %2728 = vmatprep.subr.bf16.mxu0 %v1916
    %2729 = vmatpush1.bf16.msra.mxu0 %v1915
    %2730 = vmatprep.subr.bf16.mxu0 %v1918
    %2731 = vmatpush1.bf16.msra.mxu0 %v1917
    %2732 = vmatprep.subr.bf16.mxu0 %v1920
    %2733 = vmatpush1.bf16.msra.mxu0 %v1919
    %2734 = vmatprep.subr.bf16.mxu0 %v1922
    %2735 = vmatpush1.bf16.msra.mxu0 %v1921
    %2736 = vmatprep.subr.bf16.mxu0 %v1924
    %2737 = vmatpush1.bf16.msra.mxu0 %v1923
    %2738 = vmatprep.subr.bf16.mxu0 %v1926
    %2739 = vmatpush1.bf16.msra.mxu0 %v1925
    %2740 = vmatprep.subr.bf16.mxu0 %v1928
    %2741 = vmatpush1.bf16.msra.mxu0 %v1927
    %2742 = vmatprep.subr.bf16.mxu0 %v1930
    %2743 = vmatpush1.bf16.msra.mxu0 %v1929
    %2744 = vmatprep.subr.bf16.mxu0 %v1932
    %2745 = vmatpush1.bf16.msra.mxu0 %v1931
    %2746 = vmatprep.subr.bf16.mxu0 %v1934
    %2747 = vmatpush1.bf16.msra.mxu0 %v1933
    %2748 = vmatprep.subr.bf16.mxu0 %v1936
    %2749 = vmatpush1.bf16.msra.mxu0 %v1935
    %2750 = vmatprep.subr.bf16.mxu0 %v1938
    %2751 = vmatpush1.bf16.msra.mxu0 %v1937
    %2752 = vmatprep.mubr.bf16.mxu0 %v520
    %2753 = vmatmul.mubr.bf16.gmra.mrb[0].mxu0 %v518
    %v2754 = vpop.f32.mrb[0].mxu0
    %v2755 = vadd.f32 %v2714, %v2754
    %v2756 = vpop.f32.mrb[0].mxu0
    %v2757 = vadd.f32 %v2716, %v2756
    %v2758 = vpop.f32.mrb[0].mxu0
    %v2759 = vpop.f32.mrb[0].mxu0
    %2760 = vdwg.mxu0
    %2761 = vmatprep.subr.bf16.mxu0 %v1940
    %2762 = vmatpush1.bf16.msra.mxu0 %v1939
    %2763 = vmatprep.subr.bf16.mxu0 %v1942
    %2764 = vmatpush1.bf16.msra.mxu0 %v1941
    %2765 = vmatprep.subr.bf16.mxu0 %v1944
    %2766 = vmatpush1.bf16.msra.mxu0 %v1943
    %2767 = vmatprep.subr.bf16.mxu0 %v1946
    %2768 = vmatpush1.bf16.msra.mxu0 %v1945
    %2769 = vmatprep.subr.bf16.mxu0 %v1948
    %2770 = vmatpush1.bf16.msra.mxu0 %v1947
    %2771 = vmatprep.subr.bf16.mxu0 %v1950
    %2772 = vmatpush1.bf16.msra.mxu0 %v1949
    %2773 = vmatprep.subr.bf16.mxu0 %v1952
    %2774 = vmatpush1.bf16.msra.mxu0 %v1951
    %2775 = vmatprep.subr.bf16.mxu0 %v1954
    %2776 = vmatpush1.bf16.msra.mxu0 %v1953
    %2777 = vmatprep.subr.bf16.mxu0 %v1956
    %2778 = vmatpush1.bf16.msra.mxu0 %v1955
    %2779 = vmatprep.subr.bf16.mxu0 %v1958
    %2780 = vmatpush1.bf16.msra.mxu0 %v1957
    %2781 = vmatprep.subr.bf16.mxu0 %v1960
    %2782 = vmatpush1.bf16.msra.mxu0 %v1959
    %2783 = vmatprep.subr.bf16.mxu0 %v1962
    %2784 = vmatpush1.bf16.msra.mxu0 %v1961
    %2785 = vmatprep.subr.bf16.mxu0 %v1964
    %2786 = vmatpush1.bf16.msra.mxu0 %v1963
    %2787 = vmatprep.subr.bf16.mxu0 %v1966
    %2788 = vmatpush1.bf16.msra.mxu0 %v1965
    %2789 = vmatprep.subr.bf16.mxu0 %v1968
    %2790 = vmatpush1.bf16.msra.mxu0 %v1967
    %2791 = vmatprep.subr.bf16.mxu0 %v1970
    %2792 = vmatpush1.bf16.msra.mxu0 %v1969
    %2793 = vmatprep.mubr.bf16.mxu0 %v517
    %2794 = vmatmul.mubr.bf16.gmra.mrb[0].mxu0 %v503
    %v2795 = vpop.f32.mrb[0].mxu0
    %v2796 = vadd.f32 %v2755, %v2795
    %v2797 = vpop.f32.mrb[0].mxu0
    %v2798 = vadd.f32 %v2757, %v2797
    %v2799 = vpop.f32.mrb[0].mxu0
    %v2800 = vpop.f32.mrb[0].mxu0
    %2801 = vdwg.mxu0
    %2802 = vmatprep.subr.bf16.mxu0 %v1972
    %2803 = vmatpush1.bf16.msra.mxu0 %v1971
    %2804 = vmatprep.subr.bf16.mxu0 %v1974
    %2805 = vmatpush1.bf16.msra.mxu0 %v1973
    %2806 = vmatprep.subr.bf16.mxu0 %v1976
    %2807 = vmatpush1.bf16.msra.mxu0 %v1975
    %2808 = vmatprep.subr.bf16.mxu0 %v1978
    %2809 = vmatpush1.bf16.msra.mxu0 %v1977
    %2810 = vmatprep.subr.bf16.mxu0 %v1980
    %2811 = vmatpush1.bf16.msra.mxu0 %v1979
    %2812 = vmatprep.subr.bf16.mxu0 %v1982
    %2813 = vmatpush1.bf16.msra.mxu0 %v1981
    %2814 = vmatprep.subr.bf16.mxu0 %v1984
    %2815 = vmatpush1.bf16.msra.mxu0 %v1983
    %2816 = vmatprep.subr.bf16.mxu0 %v1986
    %2817 = vmatpush1.bf16.msra.mxu0 %v1985
    %2818 = vmatprep.subr.bf16.mxu0 %v1988
    %2819 = vmatpush1.bf16.msra.mxu0 %v1987
    %2820 = vmatprep.subr.bf16.mxu0 %v1990
    %2821 = vmatpush1.bf16.msra.mxu0 %v1989
    %2822 = vmatprep.subr.bf16.mxu0 %v1992
    %2823 = vmatpush1.bf16.msra.mxu0 %v1991
    %2824 = vmatprep.subr.bf16.mxu0 %v1994
    %2825 = vmatpush1.bf16.msra.mxu0 %v1993
    %2826 = vmatprep.subr.bf16.mxu0 %v1996
    %2827 = vmatpush1.bf16.msra.mxu0 %v1995
    %2828 = vmatprep.subr.bf16.mxu0 %v1998
    %2829 = vmatpush1.bf16.msra.mxu0 %v1997
    %2830 = vmatprep.subr.bf16.mxu0 %v2000
    %2831 = vmatpush1.bf16.msra.mxu0 %v1999
    %2832 = vmatprep.subr.bf16.mxu0 %v2002
    %2833 = vmatpush1.bf16.msra.mxu0 %v2001
    %2834 = vmatprep.mubr.bf16.mxu0 %v521
    %2835 = vmatmul.mubr.bf16.gmra.mrb[0].mxu0 %v519
    %v2836 = vpop.f32.mrb[0].mxu0
    %v2837 = vadd.f32 %v2796, %v2836
    %v2838 = vpop.f32.mrb[0].mxu0
    %v2839 = vadd.f32 %v2798, %v2838
    %v2840 = vpop.f32.mrb[0].mxu0
    %v2841 = vpop.f32.mrb[0].mxu0
    %2842 = vdwg.mxu0
    %2843 = vmatprep.subr.bf16.mxu0 %v2004
    %2844 = vmatpush1.bf16.msra.mxu0 %v2003
    %2845 = vmatprep.subr.bf16.mxu0 %v2006
    %2846 = vmatpush1.bf16.msra.mxu0 %v2005
    %2847 = vmatprep.subr.bf16.mxu0 %v2008
    %2848 = vmatpush1.bf16.msra.mxu0 %v2007
    %2849 = vmatprep.subr.bf16.mxu0 %v2010
    %2850 = vmatpush1.bf16.msra.mxu0 %v2009
    %2851 = vmatprep.subr.bf16.mxu0 %v2012
    %2852 = vmatpush1.bf16.msra.mxu0 %v2011
    %2853 = vmatprep.subr.bf16.mxu0 %v2014
    %2854 = vmatpush1.bf16.msra.mxu0 %v2013
    %2855 = vmatprep.subr.bf16.mxu0 %v2016
    %2856 = vmatpush1.bf16.msra.mxu0 %v2015
    %2857 = vmatprep.subr.bf16.mxu0 %v2018
    %2858 = vmatpush1.bf16.msra.mxu0 %v2017
    %2859 = vmatprep.subr.bf16.mxu0 %v2020
    %2860 = vmatpush1.bf16.msra.mxu0 %v2019
    %2861 = vmatprep.subr.bf16.mxu0 %v2022
    %2862 = vmatpush1.bf16.msra.mxu0 %v2021
    %2863 = vmatprep.subr.bf16.mxu0 %v2024
    %2864 = vmatpush1.bf16.msra.mxu0 %v2023
    %2865 = vmatprep.subr.bf16.mxu0 %v2026
    %2866 = vmatpush1.bf16.msra.mxu0 %v2025
    %2867 = vmatprep.subr.bf16.mxu0 %v2028
    %2868 = vmatpush1.bf16.msra.mxu0 %v2027
    %2869 = vmatprep.subr.bf16.mxu0 %v2030
    %2870 = vmatpush1.bf16.msra.mxu0 %v2029
    %2871 = vmatprep.subr.bf16.mxu0 %v2032
    %2872 = vmatpush1.bf16.msra.mxu0 %v2031
    %2873 = vmatprep.subr.bf16.mxu0 %v2034
    %2874 = vmatpush1.bf16.msra.mxu0 %v2033
    %2875 = vmatprep.mubr.bf16.mxu0 %v559
    %2876 = vmatmul.mubr.bf16.gmra.mrb[0].mxu0 %v545
    %v2877 = vpop.f32.mrb[0].mxu0
    %v2878 = vadd.f32 %v2837, %v2877
    %v2879 = vpop.f32.mrb[0].mxu0
    %v2880 = vadd.f32 %v2839, %v2879
    %v2881 = vpop.f32.mrb[0].mxu0
    %v2882 = vpop.f32.mrb[0].mxu0
    %2883 = vdwg.mxu0
    %2884 = vmatprep.subr.bf16.mxu0 %v2036
    %2885 = vmatpush1.bf16.msra.mxu0 %v2035
    %2886 = vmatprep.subr.bf16.mxu0 %v2038
    %2887 = vmatpush1.bf16.msra.mxu0 %v2037
    %2888 = vmatprep.subr.bf16.mxu0 %v2040
    %2889 = vmatpush1.bf16.msra.mxu0 %v2039
    %2890 = vmatprep.subr.bf16.mxu0 %v2042
    %2891 = vmatpush1.bf16.msra.mxu0 %v2041
    %2892 = vmatprep.subr.bf16.mxu0 %v2044
    %2893 = vmatpush1.bf16.msra.mxu0 %v2043
    %2894 = vmatprep.subr.bf16.mxu0 %v2046
    %2895 = vmatpush1.bf16.msra.mxu0 %v2045
    %2896 = vmatprep.subr.bf16.mxu0 %v2048
    %2897 = vmatpush1.bf16.msra.mxu0 %v2047
    %2898 = vmatprep.subr.bf16.mxu0 %v2050
    %2899 = vmatpush1.bf16.msra.mxu0 %v2049
    %2900 = vmatprep.subr.bf16.mxu0 %v2052
    %2901 = vmatpush1.bf16.msra.mxu0 %v2051
    %2902 = vmatprep.subr.bf16.mxu0 %v2054
    %2903 = vmatpush1.bf16.msra.mxu0 %v2053
    %2904 = vmatprep.subr.bf16.mxu0 %v2056
    %2905 = vmatpush1.bf16.msra.mxu0 %v2055
    %2906 = vmatprep.subr.bf16.mxu0 %v2058
    %2907 = vmatpush1.bf16.msra.mxu0 %v2057
    %2908 = vmatprep.subr.bf16.mxu0 %v2060
    %2909 = vmatpush1.bf16.msra.mxu0 %v2059
    %2910 = vmatprep.subr.bf16.mxu0 %v2062
    %2911 = vmatpush1.bf16.msra.mxu0 %v2061
    %2912 = vmatprep.subr.bf16.mxu0 %v2064
    %2913 = vmatpush1.bf16.msra.mxu0 %v2063
    %2914 = vmatprep.subr.bf16.mxu0 %v2066
    %2915 = vmatpush1.bf16.msra.mxu0 %v2065
    %2916 = vmatprep.mubr.bf16.mxu0 %v569
    %2917 = vmatmul.mubr.bf16.gmra.mrb[0].mxu0 %v567
    %v2918 = vpop.f32.mrb[0].mxu0
    %v2919 = vadd.f32 %v2878, %v2918
    %v2920 = vpop.f32.mrb[0].mxu0
    %v2921 = vadd.f32 %v2880, %v2920
    %v2922 = vpop.f32.mrb[0].mxu0
    %v2923 = vpop.f32.mrb[0].mxu0
    %2924 = vdwg.mxu0
    %2925 = vmatprep.subr.bf16.mxu0 %v2068
    %2926 = vmatpush1.bf16.msra.mxu0 %v2067
    %2927 = vmatprep.subr.bf16.mxu0 %v2070
    %2928 = vmatpush1.bf16.msra.mxu0 %v2069
    %2929 = vmatprep.subr.bf16.mxu0 %v2072
    %2930 = vmatpush1.bf16.msra.mxu0 %v2071
    %2931 = vmatprep.subr.bf16.mxu0 %v2074
    %2932 = vmatpush1.bf16.msra.mxu0 %v2073
    %2933 = vmatprep.subr.bf16.mxu0 %v2076
    %2934 = vmatpush1.bf16.msra.mxu0 %v2075
    %2935 = vmatprep.subr.bf16.mxu0 %v2078
    %2936 = vmatpush1.bf16.msra.mxu0 %v2077
    %2937 = vmatprep.subr.bf16.mxu0 %v2080
    %2938 = vmatpush1.bf16.msra.mxu0 %v2079
    %2939 = vmatprep.subr.bf16.mxu0 %v2082
    %2940 = vmatpush1.bf16.msra.mxu0 %v2081
    %2941 = vmatprep.subr.bf16.mxu0 %v2084
    %2942 = vmatpush1.bf16.msra.mxu0 %v2083
    %2943 = vmatprep.subr.bf16.mxu0 %v2086
    %2944 = vmatpush1.bf16.msra.mxu0 %v2085
    %2945 = vmatprep.subr.bf16.mxu0 %v2088
    %2946 = vmatpush1.bf16.msra.mxu0 %v2087
    %2947 = vmatprep.subr.bf16.mxu0 %v2090
    %2948 = vmatpush1.bf16.msra.mxu0 %v2089
    %2949 = vmatprep.subr.bf16.mxu0 %v2092
    %2950 = vmatpush1.bf16.msra.mxu0 %v2091
    %2951 = vmatprep.subr.bf16.mxu0 %v2094
    %2952 = vmatpush1.bf16.msra.mxu0 %v2093
    %2953 = vmatprep.subr.bf16.mxu0 %v2096
    %2954 = vmatpush1.bf16.msra.mxu0 %v2095
    %2955 = vmatprep.subr.bf16.mxu0 %v2098
    %2956 = vmatpush1.bf16.msra.mxu0 %v2097
    %2957 = vmatprep.mubr.bf16.mxu0 %v566
    %2958 = vmatmul.mubr.bf16.gmra.mrb[0].mxu0 %v552
    %v2959 = vpop.f32.mrb[0].mxu0
    %v2960 = vadd.f32 %v2919, %v2959
    %v2961 = vpop.f32.mrb[0].mxu0
    %v2962 = vadd.f32 %v2921, %v2961
    %v2963 = vpop.f32.mrb[0].mxu0
    %v2964 = vpop.f32.mrb[0].mxu0
    %2965 = vdwg.mxu0
    %2966 = vmatprep.subr.bf16.mxu0 %v2100
    %2967 = vmatpush1.bf16.msra.mxu0 %v2099
    %2968 = vmatprep.subr.bf16.mxu0 %v2102
    %2969 = vmatpush1.bf16.msra.mxu0 %v2101
    %2970 = vmatprep.subr.bf16.mxu0 %v2104
    %2971 = vmatpush1.bf16.msra.mxu0 %v2103
    %2972 = vmatprep.subr.bf16.mxu0 %v2106
    %2973 = vmatpush1.bf16.msra.mxu0 %v2105
    %2974 = vmatprep.subr.bf16.mxu0 %v2108
    %2975 = vmatpush1.bf16.msra.mxu0 %v2107
    %2976 = vmatprep.subr.bf16.mxu0 %v2110
    %2977 = vmatpush1.bf16.msra.mxu0 %v2109
    %2978 = vmatprep.subr.bf16.mxu0 %v2112
    %2979 = vmatpush1.bf16.msra.mxu0 %v2111
    %2980 = vmatprep.subr.bf16.mxu0 %v2114
    %2981 = vmatpush1.bf16.msra.mxu0 %v2113
    %2982 = vmatprep.subr.bf16.mxu0 %v2116
    %2983 = vmatpush1.bf16.msra.mxu0 %v2115
    %2984 = vmatprep.subr.bf16.mxu0 %v2118
    %2985 = vmatpush1.bf16.msra.mxu0 %v2117
    %2986 = vmatprep.subr.bf16.mxu0 %v2120
    %2987 = vmatpush1.bf16.msra.mxu0 %v2119
    %2988 = vmatprep.subr.bf16.mxu0 %v2122
    %2989 = vmatpush1.bf16.msra.mxu0 %v2121
    %2990 = vmatprep.subr.bf16.mxu0 %v2124
    %2991 = vmatpush1.bf16.msra.mxu0 %v2123
    %2992 = vmatprep.subr.bf16.mxu0 %v2126
    %2993 = vmatpush1.bf16.msra.mxu0 %v2125
    %2994 = vmatprep.subr.bf16.mxu0 %v2128
    %2995 = vmatpush1.bf16.msra.mxu0 %v2127
    %2996 = vmatprep.subr.bf16.mxu0 %v2130
    %2997 = vmatpush1.bf16.msra.mxu0 %v2129
    %2998 = vmatprep.mubr.bf16.mxu0 %v570
    %2999 = vmatmul.mubr.bf16.gmra.mrb[0].mxu0 %v568
    %v3000 = vpop.f32.mrb[0].mxu0
    %v3001 = vadd.f32 %v2960, %v3000
    %v3002 = vpop.f32.mrb[0].mxu0
    %v3003 = vadd.f32 %v2962, %v3002
    %v3004 = vpop.f32.mrb[0].mxu0
    %v3005 = vpop.f32.mrb[0].mxu0
    %3006 = vdwg.mxu0
    %vm3007 = vcmp.ge.f32.partialorder %v3001, 0.0
    %vm3008 = vcmp.ge.f32.partialorder %v3003, 0.0
    %v3009 = vmul.f32 %v3001, 0.01
    %v3010 = vmul.f32 %v3003, 0.01
    %v3011 = vsel %vm3007, %v3001, %v3009
    %v3012 = vsel %vm3008, %v3003, %v3010
    %v3013 = vpack.c.bf16 %v3011, %v3011
    %v3014 = vpack.c.bf16 %v3012, %v3012
    %v3015 = vld [vmem:[%s3] sm:$0xf]
    %v3016 = vld [vmem:[%s3 + $0x4] sm:$0xf]
    %v3017 = vld [vmem:[%s3 + $0x8] sm:$0xf]
    %v3018 = vld [vmem:[%s3 + $0xc] sm:$0xf]
    %v3019 = vld [vmem:[%s3 + $0x10] sm:$0xf]
    %v3020 = vld [vmem:[%s3 + $0x14] sm:$0xf]
    %v3021 = vld [vmem:[%s3 + $0x18] sm:$0xf]
    %v3022 = vld [vmem:[%s3 + $0x1c] sm:$0xf]
    %v3023 = vld [vmem:[%s3 + $0x20] sm:$0xf]
    %v3024 = vld [vmem:[%s3 + $0x24] sm:$0xf]
    %v3025 = vld [vmem:[%s3 + $0x28] sm:$0xf]
    %v3026 = vld [vmem:[%s3 + $0x2c] sm:$0xf]
    %v3027 = vld [vmem:[%s3 + $0x30] sm:$0xf]
    %v3028 = vld [vmem:[%s3 + $0x34] sm:$0xf]
    %v3029 = vld [vmem:[%s3 + $0x38] sm:$0xf]
    %v3030 = vld [vmem:[%s3 + $0x3c] sm:$0xf]
    %v3031 = vld [vmem:[%s3 + $0x40] sm:$0xf]
    %v3032 = vld [vmem:[%s3 + $0x44] sm:$0xf]
    %v3033 = vld [vmem:[%s3 + $0x48] sm:$0xf]
    %v3034 = vld [vmem:[%s3 + $0x4c] sm:$0xf]
    %v3035 = vld [vmem:[%s3 + $0x50] sm:$0xf]
    %v3036 = vld [vmem:[%s3 + $0x54] sm:$0xf]
    %v3037 = vld [vmem:[%s3 + $0x58] sm:$0xf]
    %v3038 = vld [vmem:[%s3 + $0x5c] sm:$0xf]
    %v3039 = vld [vmem:[%s3 + $0x60] sm:$0xf]
    %v3040 = vld [vmem:[%s3 + $0x64] sm:$0xf]
    %v3041 = vld [vmem:[%s3 + $0x68] sm:$0xf]
    %v3042 = vld [vmem:[%s3 + $0x6c] sm:$0xf]
    %v3043 = vld [vmem:[%s3 + $0x70] sm:$0xf]
    %v3044 = vld [vmem:[%s3 + $0x74] sm:$0xf]
    %v3045 = vld [vmem:[%s3 + $0x78] sm:$0xf]
    %v3046 = vld [vmem:[%s3 + $0x7c] sm:$0xf]
    %v3047 = vld [vmem:[%s4] sm:$0x1]
    %v3049 = vlaneseq
    %v3050 = vshrl.u32 %v3049, 7
    %v3051 = vsub.s32 0, %v3050
    %v3052 = vrot.slane %v3047, %v3051
    %v3086 = vunpack.c.l.b16 %v3015
    %v3087 = vunpack.c.l.b16 %v3016
    %v3088 = vunpack.c.l.b16 %v3017
    %v3089 = vunpack.c.l.b16 %v3018
    %v3090 = vunpack.c.l.b16 %v3019
    %v3091 = vunpack.c.l.b16 %v3020
    %v3092 = vunpack.c.l.b16 %v3021
    %v3093 = vunpack.c.l.b16 %v3022
    %v3094 = vunpack.c.l.b16 %v3023
    %v3095 = vunpack.c.l.b16 %v3024
    %v3096 = vunpack.c.l.b16 %v3025
    %v3097 = vunpack.c.l.b16 %v3026
    %v3098 = vunpack.c.l.b16 %v3027
    %v3099 = vunpack.c.l.b16 %v3028
    %v3100 = vunpack.c.l.b16 %v3029
    %v3101 = vunpack.c.l.b16 %v3030
    %v3102 = vunpack.c.l.b16 %v3031
    %v3103 = vunpack.c.l.b16 %v3032
    %v3104 = vunpack.c.l.b16 %v3033
    %v3105 = vunpack.c.l.b16 %v3034
    %v3106 = vunpack.c.l.b16 %v3035
    %v3107 = vunpack.c.l.b16 %v3036
    %v3108 = vunpack.c.l.b16 %v3037
    %v3109 = vunpack.c.l.b16 %v3038
    %v3110 = vunpack.c.l.b16 %v3039
    %v3111 = vunpack.c.l.b16 %v3040
    %v3112 = vunpack.c.l.b16 %v3041
    %v3113 = vunpack.c.l.b16 %v3042
    %v3114 = vunpack.c.l.b16 %v3043
    %v3115 = vunpack.c.l.b16 %v3044
    %v3116 = vunpack.c.l.b16 %v3045
    %v3117 = vunpack.c.l.b16 %v3046
    %v3118 = vpack.c.b16 %v3087, %v3086
    %v3119 = vpack.c.b16 %v3089, %v3088
    %v3120 = vpack.c.b16 %v3091, %v3090
    %v3121 = vpack.c.b16 %v3093, %v3092
    %v3122 = vpack.c.b16 %v3095, %v3094
    %v3123 = vpack.c.b16 %v3097, %v3096
    %v3124 = vpack.c.b16 %v3099, %v3098
    %v3125 = vpack.c.b16 %v3101, %v3100
    %v3126 = vpack.c.b16 %v3103, %v3102
    %v3127 = vpack.c.b16 %v3105, %v3104
    %v3128 = vpack.c.b16 %v3107, %v3106
    %v3129 = vpack.c.b16 %v3109, %v3108
    %v3130 = vpack.c.b16 %v3111, %v3110
    %v3131 = vpack.c.b16 %v3113, %v3112
    %v3132 = vpack.c.b16 %v3115, %v3114
    %v3133 = vpack.c.b16 %v3117, %v3116
    %3150 = vmatprep.subr.bf16.mxu0 0
    %3151 = vmatpush1.bf16.msra.mxu0 %v3118
    %3152 = vmatprep.subr.bf16.mxu0 0
    %3153 = vmatpush1.bf16.msra.mxu0 %v3119
    %3154 = vmatprep.subr.bf16.mxu0 0
    %3155 = vmatpush1.bf16.msra.mxu0 %v3120
    %3156 = vmatprep.subr.bf16.mxu0 0
    %3157 = vmatpush1.bf16.msra.mxu0 %v3121
    %3158 = vmatprep.subr.bf16.mxu0 0
    %3159 = vmatpush1.bf16.msra.mxu0 %v3122
    %3160 = vmatprep.subr.bf16.mxu0 0
    %3161 = vmatpush1.bf16.msra.mxu0 %v3123
    %3162 = vmatprep.subr.bf16.mxu0 0
    %3163 = vmatpush1.bf16.msra.mxu0 %v3124
    %3164 = vmatprep.subr.bf16.mxu0 0
    %3165 = vmatpush1.bf16.msra.mxu0 %v3125
    %3166 = vmatprep.subr.bf16.mxu0 0
    %3167 = vmatpush1.bf16.msra.mxu0 %v3126
    %3168 = vmatprep.subr.bf16.mxu0 0
    %3169 = vmatpush1.bf16.msra.mxu0 %v3127
    %3170 = vmatprep.subr.bf16.mxu0 0
    %3171 = vmatpush1.bf16.msra.mxu0 %v3128
    %3172 = vmatprep.subr.bf16.mxu0 0
    %3173 = vmatpush1.bf16.msra.mxu0 %v3129
    %3174 = vmatprep.subr.bf16.mxu0 0
    %3175 = vmatpush1.bf16.msra.mxu0 %v3130
    %3176 = vmatprep.subr.bf16.mxu0 0
    %3177 = vmatpush1.bf16.msra.mxu0 %v3131
    %3178 = vmatprep.subr.bf16.mxu0 0
    %3179 = vmatpush1.bf16.msra.mxu0 %v3132
    %3180 = vmatprep.subr.bf16.mxu0 0
    %3181 = vmatpush1.bf16.msra.mxu0 %v3133
    %3182 = vmatprep.mubr.bf16.mxu0 %v3014
    %3183 = vmatmul.mubr.bf16.gmra.mrb[0].mxu0 %v3013
    %v3184 = vpop.f32.mrb[0].mxu0
    %v3185 = vadd.f32 %v3052, %v3184
    %v3186 = vpop.f32.mrb[0].mxu0
    %v3187 = vpop.f32.mrb[0].mxu0
    %v3188 = vpop.f32.mrb[0].mxu0
    %3189 = vdwg.mxu0
    %vm3190 = vcmask 41984
    %v3191 = vsel %vm3190, %v3185, 0.0
    %3192 = vadd.xlane.f32.xlu0 %v3191
    %v3193 = vpop.xlane.xlu0 %3192
    %v3194 = vrot.slane %v3193, 4
    %v3195 = vadd.f32 %v3193, %v3194
    %v3196 = vrot.slane %v3195, 2
    %v3197 = vadd.f32 %v3195, %v3196
    %v3198 = vrot.slane %v3197, 1
    %v3199 = vadd.f32 %v3197, %v3198
    %s3200 = vtos %v3199
    %v3201 = vrcp.pop 12.0
    %s3202 = vtos %v3201
    %s3203 = smul.f32 %s3200, %s3202
    %v3204 = vstv %s3203
    %v3205 = vsub.f32 %v3185, %v3204
    %3207 = vset.pattern.permute.xlu0 6
    %3208 = vperm.xlu0 %3207, %v3185
    %v3209 = vpop.permute.xlu0 %3208
    %v3211 = vadd.f32 %v3209, %v3205
    %3212 = vst.msk [vmem:[#allocation2] sm:$0x3] %vm3190, %v3211
    // Predicated region
    $region22: #{dueling_dqn_forward.7} parent=1 // pred_check
      _
    $region23: #{dueling_dqn_forward.7} parent=1 // pred_check_branch
      %3214 = sbr.rel (0) target = $region25
    $region24: #{dueling_dqn_forward.7} parent=1 // pred_region
      %s3216 = ssub.s32 32, 32
      %3217 = vsyncadd [#allocation3], %s3216
      %s3219 = sshll.u32 [#allocation2], 4
      %s3220 = int_to_ptr.vmem [resolvable:$true] %s3219
      %3222 = dma.vmem_to_hbm [thread:$0]  %s3220, 32, %s5, [#allocation3]
    $region25: #{dueling_dqn_forward.7} parent=1 // pred_fallthru
      _
    // Predicated region
    $region26: #{dueling_dqn_forward.7} parent=1 // pred_check
      _
    $region27: #{dueling_dqn_forward.7} parent=1 // pred_check_branch
      %3224 = sbr.rel (0) target = $region29
    $region28: #{dueling_dqn_forward.7} parent=1 // pred_region
      %3225 = dma.done [#allocation3], 32
    $region29: #{dueling_dqn_forward.7} parent=1 // pred_fallthru
      _
    %3226 = vsyncpa [#allocation3], 1

</llo_original>
